<compile_context>
chip_gen: v5e
topology: v5e:2x2
jax: 0.10.0
libtpu: 0.0.40
codegen_flags: <defaults>
</compile_context>

<pallas_src>
import functools

import jax
import jax.numpy as jnp
from jax.experimental import pallas as pl
from jax.experimental.pallas import tpu as pltpu


def _leaky(x, slope=0.1):
    return jnp.where(x > 0, x, slope * x)


def _round_up(x, m):
    return ((x + m - 1) // m) * m


def _residual_block_kernel(x_ref, w1_ref, b1_ref, w2_ref, b2_ref, o_ref,
                           hp_ref, *, H, W, Cp, Cm, use_residual):
    """One (batch-element, repeat) grid step.

    x_ref/o_ref : (1, H, W, Cp) f32      -- o_ref stays VMEM-resident across repeats
    w1_ref      : (R, Cp, Cm)   bf16     -- resident, BN1 scale folded in
    b1_ref      : (R, 1, Cm)    f32
    w2_ref      : (R*9, Cm, Cp) bf16     -- resident, (dy,dx) flattened, BN2 scale folded
    b2_ref      : (R, 1, Cp)    f32
    hp_ref      : (H+2, W+2, Cm) bf16    -- persistent zero-haloed conv1 output
    """
    r = pl.program_id(1)

    @pl.when(r == 0)
    def _seed():
        # Seed the resident activation and the zero halo once per sample.
        # (Kept per-sample -- not n==0 only -- so it stays correct when the
        #  "parallel" batch axis is sharded across TensorCores.)
        o_ref[...] = x_ref[...]
        hp_ref[...] = jnp.zeros_like(hp_ref)

    # ---- ConvBlock 1: 1x1 conv (bf16 MXU, f32 acc) + bias + LeakyReLU ----
    x2d = o_ref[...].reshape(H * W, Cp).astype(jnp.bfloat16)
    h = jnp.dot(x2d, w1_ref[r], preferred_element_type=jnp.float32)   # (HW, Cm)
    h = _leaky(h + b1_ref[r])

    # Store straight into the interior of the halo scratch; rows/cols 0 and
    # H+1/W+1 stay zero from the r==0 seed -> free zero padding, no temps.
    hp_ref[pl.ds(1, H), pl.ds(1, W), :] = (
        h.reshape(H, W, Cm).astype(jnp.bfloat16))

    # ---- ConvBlock 2: 3x3 conv as 9 direct K=Cm matmuls (no im2col temps) ----
    acc = None
    for dy in range(3):                      # static, unrolled
        for dx in range(3):
            lhs = hp_ref[pl.ds(dy, H), pl.ds(dx, W), :].reshape(H * W, Cm)
            part = jnp.dot(lhs, w2_ref[r * 9 + dy * 3 + dx],
                           preferred_element_type=jnp.float32)        # (HW, Cp)
            acc = part if acc is None else acc + part
    y = _leaky(acc + b2_ref[r]).reshape(1, H, W, Cp)

    # ---- epilogue: residual folded into the single lane-dense store ----
    if use_residual:
        o_ref[...] += y
    else:
        o_ref[...] = y


def _vmem_limit_bytes(H, W, Cp, Cm, R):
    """Generation-aware VMEM budget: actual need + headroom, capped by HW."""
    act_blk = H * W * Cp * 4                       # one f32 activation block
    wgt = R * (Cp * Cm + 9 * Cm * Cp) * 2          # resident bf16 weights (all repeats)
    bias = R * (Cm + Cp) * 4
    halo = (H + 2) * (W + 2) * Cm * 2              # persistent bf16 scratch
    tmp = H * W * (10 * Cp + 10 * Cm)              # in-kernel value temps (generous)
    need = 2 * (2 * act_blk) + 2 * (wgt + bias) + halo + tmp
    try:
        cap = int(getattr(pltpu.get_tpu_info(), "vmem_capacity_bytes", 128 << 20))
    except Exception:  # pragma: no cover
        cap = 128 << 20
    soft_cap = cap - (8 << 20)                     # leave compiler headroom
    return int(min(max(need + (8 << 20), 32 << 20), soft_cap))


def residual_block(x_nchw, all_params, use_residual=True):
    """Full ResidualBlock.  x_nchw: (N, C, H, W) like the PyTorch module."""
    N, C, H, W = x_nchw.shape
    R = len(all_params)
    Cmid = C // 2
    Cp = max(128, _round_up(C, 128))      # lane-dense padded channel widths
    Cm = max(128, _round_up(Cmid, 128))

    # NCHW -> NHWC, pad channels with zeros (preserved exactly by the kernel).
    x = jnp.transpose(x_nchw, (0, 2, 3, 1)).astype(jnp.float32)
    x = jnp.pad(x, ((0, 0), (0, 0), (0, 0), (0, Cp - C)))

    # Fold BN scale into conv weights (f32, pre-bf16-cast), pad, stack over R.
    w1s, b1s, w2s, b2s = [], [], [], []
    for (w1, s1, b1, w2, s2, b2) in all_params:
        w1f = w1 * s1.reshape(1, Cmid)                    # (C, Cmid) f32
        w2f = w2 * s2.reshape(1, 1, 1, C)                 # (3, 3, Cmid, C) f32
        w1s.append(jnp.pad(w1f, ((0, Cp - C), (0, Cm - Cmid))).astype(jnp.bfloat16))
        b1s.append(jnp.pad(b1, ((0, 0), (0, Cm - Cmid))).astype(jnp.float32))
        w2p = jnp.pad(w2f, ((0, 0), (0, 0), (0, Cm - Cmid), (0, Cp - C)))
        w2s.append(w2p.reshape(9, Cm, Cp).astype(jnp.bfloat16))   # k = dy*3+dx
        b2s.append(jnp.pad(b2, ((0, 0), (0, Cp - C))).astype(jnp.float32))
    w1_all = jnp.stack(w1s)                       # (R, Cp, Cm)   bf16
    b1_all = jnp.stack(b1s)                       # (R, 1, Cm)    f32
    w2_all = jnp.concatenate(w2s, axis=0)         # (R*9, Cm, Cp) bf16
    b2_all = jnp.stack(b2s)                       # (R, 1, Cp)    f32

    kernel = functools.partial(_residual_block_kernel, H=H, W=W, Cp=Cp, Cm=Cm,
                               use_residual=bool(use_residual))

    out = pl.pallas_call(
        kernel,
        out_shape=jax.ShapeDtypeStruct((N, H, W, Cp), jnp.float32),
        grid_spec=pltpu.PrefetchScalarGridSpec(
            num_scalar_prefetch=0,
            grid=(N, R),
            in_specs=[
                pl.BlockSpec((1, H, W, Cp), lambda n, r: (n, 0, 0, 0)),
                # Weights/biases: resident blocks (constant index_map) so they
                # are DMA'd from HBM once, not N*R times.
                pl.BlockSpec((R, Cp, Cm), lambda n, r: (0, 0, 0)),
                pl.BlockSpec((R, 1, Cm), lambda n, r: (0, 0, 0)),
                pl.BlockSpec((R * 9, Cm, Cp), lambda n, r: (0, 0, 0)),
                pl.BlockSpec((R, 1, Cp), lambda n, r: (0, 0, 0)),
            ],
            out_specs=pl.BlockSpec((1, H, W, Cp), lambda n, r: (n, 0, 0, 0)),
            scratch_shapes=[pltpu.VMEM((H + 2, W + 2, Cm), jnp.bfloat16)],
        ),
        compiler_params=pltpu.CompilerParams(
            dimension_semantics=("parallel", "arbitrary"),
            vmem_limit_bytes=_vmem_limit_bytes(H, W, Cp, Cm, R),
        ),
    )(x, w1_all, b1_all, w2_all, b2_all)

    out = out[..., :C]                              # drop channel padding
    return jnp.transpose(out, (0, 3, 1, 2))         # -> NCHW


# ------------------------- parameter construction -------------------------

def make_params(key, channels, num_repeats):
    """Deterministic synthetic params; BN folded to (scale, bias) per channel."""
    C = channels
    Cmid = C // 2
    eps = 1e-5
    all_params = []
    for _ in range(num_repeats):
        keys = jax.random.split(key, 11)
        key = keys[0]
        # conv1: torch weight (Cmid, C, 1, 1) -> matmul weight (C, Cmid)
        w1 = jax.random.normal(keys[1], (C, Cmid), jnp.float32) * 0.1
        g1 = jax.random.normal(keys[2], (Cmid,), jnp.float32) * 0.1 + 1.0
        be1 = jax.random.normal(keys[3], (Cmid,), jnp.float32) * 0.1
        rm1 = jax.random.normal(keys[4], (Cmid,), jnp.float32) * 0.1
        rv1 = jax.random.uniform(keys[5], (Cmid,), jnp.float32, 0.5, 1.5)
        s1 = (g1 / jnp.sqrt(rv1 + eps)).reshape(1, Cmid)
        b1 = (be1 - rm1 * g1 / jnp.sqrt(rv1 + eps)).reshape(1, Cmid)
        # conv2: torch weight (C, Cmid, 3, 3) -> HWIO (3, 3, Cmid, C)
        w2 = jax.random.normal(keys[6], (3, 3, Cmid, C), jnp.float32) * 0.1
        g2 = jax.random.normal(keys[7], (C,), jnp.float32) * 0.1 + 1.0
        be2 = jax.random.normal(keys[8], (C,), jnp.float32) * 0.1
        rm2 = jax.random.normal(keys[9], (C,), jnp.float32) * 0.1
        rv2 = jax.random.uniform(keys[10], (C,), jnp.float32, 0.5, 1.5)
        s2 = (g2 / jnp.sqrt(rv2 + eps)).reshape(1, C)
        b2 = (be2 - rm2 * g2 / jnp.sqrt(rv2 + eps)).reshape(1, C)
        all_params.append((w1, s1, b1, w2, s2, b2))
    return all_params


# ------------------------------ reference ---------------------------------

def residual_block_ref(x_nchw, all_params, use_residual=True):
    """Plain-JAX (XLA) reference with the same precision policy as the kernel:
    BN scale folded into the weight in f32, bf16 conv operands, f32
    accumulation, f32 bias/LeakyReLU/residual."""
    x = jnp.transpose(x_nchw, (0, 2, 3, 1)).astype(jnp.float32)
    dn = jax.lax.conv_dimension_numbers(x.shape, (1, 1, 1, 1),
                                        ("NHWC", "HWIO", "NHWC"))
    for (w1, s1, b1, w2, s2, b2) in all_params:
        C, Cmid = w1.shape
        w1f = (w1 * s1.reshape(1, Cmid)).astype(jnp.bfloat16)
        w2f = (w2 * s2.reshape(1, 1, 1, C)).astype(jnp.bfloat16)
        h = jax.lax.conv_general_dilated(
            x.astype(jnp.bfloat16), w1f.reshape(1, 1, C, Cmid),
            (1, 1), "VALID", dimension_numbers=dn,
            preferred_element_type=jnp.float32)
        h = _leaky(h + b1.reshape(1, 1, 1, -1))
        y = jax.lax.conv_general_dilated(
            h.astype(jnp.bfloat16), w2f,
            (1, 1), ((1, 1), (1, 1)), dimension_numbers=dn,
            preferred_element_type=jnp.float32)
        y = _leaky(y + b2.reshape(1, 1, 1, -1))
        x = x + y if use_residual else y
    return jnp.transpose(x, (0, 3, 1, 2))


if __name__ == "__main__":
    N, C, H, W = 2, 4, 16, 16
    num_repeats = 2
    key = jax.random.PRNGKey(0)
    kx, kp = jax.random.split(key)

    x = jax.random.normal(kx, (N, C, H, W), jnp.float32)
    params = make_params(kp, C, num_repeats)

    # use_residual=True
    out = residual_block(x, params, use_residual=True)
    out = jax.block_until_ready(out)
    ref = residual_block_ref(x, params, use_residual=True)
    assert out.shape == (N, C, H, W)
    err = float(jnp.max(jnp.abs(out - ref)))
    assert jnp.allclose(out, ref, atol=1e-2, rtol=1e-2), err

    # use_residual=False
    out2 = jax.block_until_ready(residual_block(x, params, use_residual=False))
    ref2 = residual_block_ref(x, params, use_residual=False)
    err2 = float(jnp.max(jnp.abs(out2 - ref2)))
    assert jnp.allclose(out2, ref2, atol=1e-2, rtol=1e-2), err2

    print("KERNEL_OK")
</pallas_src>

<mosaic_0001>
module attributes {stable_mosaic.version = 11 : i64} {
  func.func @_residual_block_kernel(%arg0: i32, %arg1: i32, %arg2: memref<1x16x16x128xf32, #tpu.memory_space<vmem>>, %arg3: memref<2x128x128xbf16, #tpu.memory_space<vmem>>, %arg4: memref<2x1x128xf32, #tpu.memory_space<vmem>>, %arg5: memref<18x128x128xbf16, #tpu.memory_space<vmem>>, %arg6: memref<2x1x128xf32, #tpu.memory_space<vmem>>, %arg7: memref<1x16x16x128xf32, #tpu.memory_space<vmem>>, %arg8: memref<18x18x128xbf16, #tpu.memory_space<vmem>>) attributes {dimension_semantics = [#tpu.dimension_semantics<parallel>, #tpu.dimension_semantics<arbitrary>], iteration_bounds = array<i64: 2, 2>, scalar_prefetch = 0 : i64, scratch_operands = 1 : i64, tpu.core_type = #tpu.core_type<tc>, window_params = [{transform_indices = @transform_0, window_bounds = array<i64: 1, 16, 16, 128>}, {pipeline_mode = #tpu.pipeline_mode<synchronous>, transform_indices = @transform_1, window_bounds = array<i64: 2, 128, 128>}, {pipeline_mode = #tpu.pipeline_mode<synchronous>, transform_indices = @transform_2, window_bounds = array<i64: 2, 1, 128>}, {pipeline_mode = #tpu.pipeline_mode<synchronous>, transform_indices = @transform_3, window_bounds = array<i64: 18, 128, 128>}, {pipeline_mode = #tpu.pipeline_mode<synchronous>, transform_indices = @transform_4, window_bounds = array<i64: 2, 1, 128>}, {transform_indices = @transform_5, window_bounds = array<i64: 1, 16, 16, 128>}]} {
    %c0_i32 = arith.constant 0 : i32
    %0 = arith.cmpi eq, %arg1, %c0_i32 : i32
    %1 = arith.extui %0 : i1 to i32
    %c0_i32_0 = arith.constant 0 : i32
    %2 = arith.cmpi ne, %1, %c0_i32_0 : i32
    scf.if %2 {
      %c0_99 = arith.constant 0 : index
      %c0_100 = arith.constant 0 : index
      %c0_101 = arith.constant 0 : index
      %c0_102 = arith.constant 0 : index
      %126 = vector.load %arg2[%c0_99, %c0_100, %c0_101, %c0_102] : memref<1x16x16x128xf32, #tpu.memory_space<vmem>>, vector<1x16x16x128xf32>
      %c0_103 = arith.constant 0 : index
      %c0_104 = arith.constant 0 : index
      %c0_105 = arith.constant 0 : index
      %c0_106 = arith.constant 0 : index
      %127 = vector.load %arg7[%c0_103, %c0_104, %c0_105, %c0_106] : memref<1x16x16x128xf32, #tpu.memory_space<vmem>>, vector<1x16x16x128xf32>
      tpu.vector_store %arg7[%c0_103, %c0_104, %c0_105, %c0_106], %126 {strides = array<i32>} : memref<1x16x16x128xf32, #tpu.memory_space<vmem>>, vector<1x16x16x128xf32>,
      %cst_107 = arith.constant 0.000000e+00 : bf16
      %128 = vector.broadcast %cst_107 : bf16 to vector<18x18x128xbf16>
      %c0_108 = arith.constant 0 : index
      %c0_109 = arith.constant 0 : index
      %c0_110 = arith.constant 0 : index
      %129 = vector.load %arg8[%c0_108, %c0_109, %c0_110] : memref<18x18x128xbf16, #tpu.memory_space<vmem>>, vector<18x18x128xbf16>
      tpu.vector_store %arg8[%c0_108, %c0_109, %c0_110], %128 {strides = array<i32>} : memref<18x18x128xbf16, #tpu.memory_space<vmem>>, vector<18x18x128xbf16>,
    } else {
    }
    %c0 = arith.constant 0 : index
    %c0_1 = arith.constant 0 : index
    %c0_2 = arith.constant 0 : index
    %c0_3 = arith.constant 0 : index
    %3 = vector.load %arg7[%c0, %c0_1, %c0_2, %c0_3] : memref<1x16x16x128xf32, #tpu.memory_space<vmem>>, vector<1x16x16x128xf32>
    %4 = vector.shape_cast %3 : vector<1x16x16x128xf32> to vector<256x128xf32>
    %5 = arith.truncf %4 : vector<256x128xf32> to vector<256x128xbf16>
    %6 = arith.index_cast %arg1 : i32 to index
    %c0_4 = arith.constant 0 : index
    %c0_5 = arith.constant 0 : index
    %7 = vector.load %arg3[%6, %c0_4, %c0_5] : memref<2x128x128xbf16, #tpu.memory_space<vmem>>, vector<1x128x128xbf16>
    %8 = vector.shape_cast %7 : vector<1x128x128xbf16> to vector<128x128xbf16>
    %cst = arith.constant dense<0.000000e+00> : vector<256x128xf32>
    %9 = tpu.matmul %5, %8, %cst {dimension_numbers = #tpu.dot_dimension_numbers<[1], [0], [0], [1], [0, 0, 1, 1], [], []>} : vector<256x128xbf16>, vector<128x128xbf16>, vector<256x128xf32> -> vector<256x128xf32>
    %10 = arith.index_cast %arg1 : i32 to index
    %c0_6 = arith.constant 0 : index
    %c0_7 = arith.constant 0 : index
    %11 = vector.load %arg4[%10, %c0_6, %c0_7] : memref<2x1x128xf32, #tpu.memory_space<vmem>>, vector<1x1x128xf32>
    %12 = vector.shape_cast %11 : vector<1x1x128xf32> to vector<1x128xf32>
    %13 = vector.broadcast %12 : vector<1x128xf32> to vector<256x128xf32>
    %14 = arith.addf %9, %13 : vector<256x128xf32>
    %cst_8 = arith.constant 0.000000e+00 : f32
    %15 = vector.broadcast %cst_8 : f32 to vector<256x128xf32>
    %16 = arith.cmpf ogt, %14, %15 : vector<256x128xf32>
    %cst_9 = arith.constant 1.000000e-01 : f32
    %17 = vector.broadcast %cst_9 : f32 to vector<256x128xf32>
    %18 = arith.mulf %17, %14 : vector<256x128xf32>
    %19 = arith.select %16, %14, %18 : vector<256x128xi1>, vector<256x128xf32>
    %20 = vector.shape_cast %19 : vector<256x128xf32> to vector<16x16x128xf32>
    %21 = arith.truncf %20 : vector<16x16x128xf32> to vector<16x16x128xbf16>
    %c1 = arith.constant 1 : index
    %c1_10 = arith.constant 1 : index
    %c0_11 = arith.constant 0 : index
    %22 = vector.load %arg8[%c1, %c1_10, %c0_11] : memref<18x18x128xbf16, #tpu.memory_space<vmem>>, vector<16x16x128xbf16>
    tpu.vector_store %arg8[%c1, %c1_10, %c0_11], %21 {strides = array<i32>} : memref<18x18x128xbf16, #tpu.memory_space<vmem>>, vector<16x16x128xbf16>,
    %c0_12 = arith.constant 0 : index
    %c0_13 = arith.constant 0 : index
    %c0_14 = arith.constant 0 : index
    %23 = vector.load %arg8[%c0_12, %c0_13, %c0_14] : memref<18x18x128xbf16, #tpu.memory_space<vmem>>, vector<16x16x128xbf16>
    %24 = vector.shape_cast %23 : vector<16x16x128xbf16> to vector<256x128xbf16>
    %c9_i32 = arith.constant 9 : i32
    %25 = arith.muli %arg1, %c9_i32 : i32
    %c0_i32_15 = arith.constant 0 : i32
    %26 = arith.addi %25, %c0_i32_15 : i32
    %c0_i32_16 = arith.constant 0 : i32
    %27 = arith.addi %26, %c0_i32_16 : i32
    %28 = arith.index_cast %27 : i32 to index
    %c0_17 = arith.constant 0 : index
    %c0_18 = arith.constant 0 : index
    %29 = vector.load %arg5[%28, %c0_17, %c0_18] : memref<18x128x128xbf16, #tpu.memory_space<vmem>>, vector<1x128x128xbf16>
    %30 = vector.shape_cast %29 : vector<1x128x128xbf16> to vector<128x128xbf16>
    %cst_19 = arith.constant dense<0.000000e+00> : vector<256x128xf32>
    %31 = tpu.matmul %24, %30, %cst_19 {dimension_numbers = #tpu.dot_dimension_numbers<[1], [0], [0], [1], [0, 0, 1, 1], [], []>} : vector<256x128xbf16>, vector<128x128xbf16>, vector<256x128xf32> -> vector<256x128xf32>
    %c0_20 = arith.constant 0 : index
    %c1_21 = arith.constant 1 : index
    %c0_22 = arith.constant 0 : index
    %32 = vector.load %arg8[%c0_20, %c1_21, %c0_22] : memref<18x18x128xbf16, #tpu.memory_space<vmem>>, vector<16x16x128xbf16>
    %33 = vector.shape_cast %32 : vector<16x16x128xbf16> to vector<256x128xbf16>
    %c9_i32_23 = arith.constant 9 : i32
    %34 = arith.muli %arg1, %c9_i32_23 : i32
    %c0_i32_24 = arith.constant 0 : i32
    %35 = arith.addi %34, %c0_i32_24 : i32
    %c1_i32 = arith.constant 1 : i32
    %36 = arith.addi %35, %c1_i32 : i32
    %37 = arith.index_cast %36 : i32 to index
    %c0_25 = arith.constant 0 : index
    %c0_26 = arith.constant 0 : index
    %38 = vector.load %arg5[%37, %c0_25, %c0_26] : memref<18x128x128xbf16, #tpu.memory_space<vmem>>, vector<1x128x128xbf16>
    %39 = vector.shape_cast %38 : vector<1x128x128xbf16> to vector<128x128xbf16>
    %cst_27 = arith.constant dense<0.000000e+00> : vector<256x128xf32>
    %40 = tpu.matmul %33, %39, %cst_27 {dimension_numbers = #tpu.dot_dimension_numbers<[1], [0], [0], [1], [0, 0, 1, 1], [], []>} : vector<256x128xbf16>, vector<128x128xbf16>, vector<256x128xf32> -> vector<256x128xf32>
    %41 = arith.addf %31, %40 : vector<256x128xf32>
    %c0_28 = arith.constant 0 : index
    %c2 = arith.constant 2 : index
    %c0_29 = arith.constant 0 : index
    %42 = vector.load %arg8[%c0_28, %c2, %c0_29] : memref<18x18x128xbf16, #tpu.memory_space<vmem>>, vector<16x16x128xbf16>
    %43 = vector.shape_cast %42 : vector<16x16x128xbf16> to vector<256x128xbf16>
    %c9_i32_30 = arith.constant 9 : i32
    %44 = arith.muli %arg1, %c9_i32_30 : i32
    %c0_i32_31 = arith.constant 0 : i32
    %45 = arith.addi %44, %c0_i32_31 : i32
    %c2_i32 = arith.constant 2 : i32
    %46 = arith.addi %45, %c2_i32 : i32
    %47 = arith.index_cast %46 : i32 to index
    %c0_32 = arith.constant 0 : index
    %c0_33 = arith.constant 0 : index
    %48 = vector.load %arg5[%47, %c0_32, %c0_33] : memref<18x128x128xbf16, #tpu.memory_space<vmem>>, vector<1x128x128xbf16>
    %49 = vector.shape_cast %48 : vector<1x128x128xbf16> to vector<128x128xbf16>
    %cst_34 = arith.constant dense<0.000000e+00> : vector<256x128xf32>
    %50 = tpu.matmul %43, %49, %cst_34 {dimension_numbers = #tpu.dot_dimension_numbers<[1], [0], [0], [1], [0, 0, 1, 1], [], []>} : vector<256x128xbf16>, vector<128x128xbf16>, vector<256x128xf32> -> vector<256x128xf32>
    %51 = arith.addf %41, %50 : vector<256x128xf32>
    %c1_35 = arith.constant 1 : index
    %c0_36 = arith.constant 0 : index
    %c0_37 = arith.constant 0 : index
    %52 = vector.load %arg8[%c1_35, %c0_36, %c0_37] : memref<18x18x128xbf16, #tpu.memory_space<vmem>>, vector<16x16x128xbf16>
    %53 = vector.shape_cast %52 : vector<16x16x128xbf16> to vector<256x128xbf16>
    %c9_i32_38 = arith.constant 9 : i32
    %54 = arith.muli %arg1, %c9_i32_38 : i32
    %c3_i32 = arith.constant 3 : i32
    %55 = arith.addi %54, %c3_i32 : i32
    %c0_i32_39 = arith.constant 0 : i32
    %56 = arith.addi %55, %c0_i32_39 : i32
    %57 = arith.index_cast %56 : i32 to index
    %c0_40 = arith.constant 0 : index
    %c0_41 = arith.constant 0 : index
    %58 = vector.load %arg5[%57, %c0_40, %c0_41] : memref<18x128x128xbf16, #tpu.memory_space<vmem>>, vector<1x128x128xbf16>
    %59 = vector.shape_cast %58 : vector<1x128x128xbf16> to vector<128x128xbf16>
    %cst_42 = arith.constant dense<0.000000e+00> : vector<256x128xf32>
    %60 = tpu.matmul %53, %59, %cst_42 {dimension_numbers = #tpu.dot_dimension_numbers<[1], [0], [0], [1], [0, 0, 1, 1], [], []>} : vector<256x128xbf16>, vector<128x128xbf16>, vector<256x128xf32> -> vector<256x128xf32>
    %61 = arith.addf %51, %60 : vector<256x128xf32>
    %c1_43 = arith.constant 1 : index
    %c1_44 = arith.constant 1 : index
    %c0_45 = arith.constant 0 : index
    %62 = vector.load %arg8[%c1_43, %c1_44, %c0_45] : memref<18x18x128xbf16, #tpu.memory_space<vmem>>, vector<16x16x128xbf16>
    %63 = vector.shape_cast %62 : vector<16x16x128xbf16> to vector<256x128xbf16>
    %c9_i32_46 = arith.constant 9 : i32
    %64 = arith.muli %arg1, %c9_i32_46 : i32
    %c3_i32_47 = arith.constant 3 : i32
    %65 = arith.addi %64, %c3_i32_47 : i32
    %c1_i32_48 = arith.constant 1 : i32
    %66 = arith.addi %65, %c1_i32_48 : i32
    %67 = arith.index_cast %66 : i32 to index
    %c0_49 = arith.constant 0 : index
    %c0_50 = arith.constant 0 : index
    %68 = vector.load %arg5[%67, %c0_49, %c0_50] : memref<18x128x128xbf16, #tpu.memory_space<vmem>>, vector<1x128x128xbf16>
    %69 = vector.shape_cast %68 : vector<1x128x128xbf16> to vector<128x128xbf16>
    %cst_51 = arith.constant dense<0.000000e+00> : vector<256x128xf32>
    %70 = tpu.matmul %63, %69, %cst_51 {dimension_numbers = #tpu.dot_dimension_numbers<[1], [0], [0], [1], [0, 0, 1, 1], [], []>} : vector<256x128xbf16>, vector<128x128xbf16>, vector<256x128xf32> -> vector<256x128xf32>
    %71 = arith.addf %61, %70 : vector<256x128xf32>
    %c1_52 = arith.constant 1 : index
    %c2_53 = arith.constant 2 : index
    %c0_54 = arith.constant 0 : index
    %72 = vector.load %arg8[%c1_52, %c2_53, %c0_54] : memref<18x18x128xbf16, #tpu.memory_space<vmem>>, vector<16x16x128xbf16>
    %73 = vector.shape_cast %72 : vector<16x16x128xbf16> to vector<256x128xbf16>
    %c9_i32_55 = arith.constant 9 : i32
    %74 = arith.muli %arg1, %c9_i32_55 : i32
    %c3_i32_56 = arith.constant 3 : i32
    %75 = arith.addi %74, %c3_i32_56 : i32
    %c2_i32_57 = arith.constant 2 : i32
    %76 = arith.addi %75, %c2_i32_57 : i32
    %77 = arith.index_cast %76 : i32 to index
    %c0_58 = arith.constant 0 : index
    %c0_59 = arith.constant 0 : index
    %78 = vector.load %arg5[%77, %c0_58, %c0_59] : memref<18x128x128xbf16, #tpu.memory_space<vmem>>, vector<1x128x128xbf16>
    %79 = vector.shape_cast %78 : vector<1x128x128xbf16> to vector<128x128xbf16>
    %cst_60 = arith.constant dense<0.000000e+00> : vector<256x128xf32>
    %80 = tpu.matmul %73, %79, %cst_60 {dimension_numbers = #tpu.dot_dimension_numbers<[1], [0], [0], [1], [0, 0, 1, 1], [], []>} : vector<256x128xbf16>, vector<128x128xbf16>, vector<256x128xf32> -> vector<256x128xf32>
    %81 = arith.addf %71, %80 : vector<256x128xf32>
    %c2_61 = arith.constant 2 : index
    %c0_62 = arith.constant 0 : index
    %c0_63 = arith.constant 0 : index
    %82 = vector.load %arg8[%c2_61, %c0_62, %c0_63] : memref<18x18x128xbf16, #tpu.memory_space<vmem>>, vector<16x16x128xbf16>
    %83 = vector.shape_cast %82 : vector<16x16x128xbf16> to vector<256x128xbf16>
    %c9_i32_64 = arith.constant 9 : i32
    %84 = arith.muli %arg1, %c9_i32_64 : i32
    %c6_i32 = arith.constant 6 : i32
    %85 = arith.addi %84, %c6_i32 : i32
    %c0_i32_65 = arith.constant 0 : i32
    %86 = arith.addi %85, %c0_i32_65 : i32
    %87 = arith.index_cast %86 : i32 to index
    %c0_66 = arith.constant 0 : index
    %c0_67 = arith.constant 0 : index
    %88 = vector.load %arg5[%87, %c0_66, %c0_67] : memref<18x128x128xbf16, #tpu.memory_space<vmem>>, vector<1x128x128xbf16>
    %89 = vector.shape_cast %88 : vector<1x128x128xbf16> to vector<128x128xbf16>
    %cst_68 = arith.constant dense<0.000000e+00> : vector<256x128xf32>
    %90 = tpu.matmul %83, %89, %cst_68 {dimension_numbers = #tpu.dot_dimension_numbers<[1], [0], [0], [1], [0, 0, 1, 1], [], []>} : vector<256x128xbf16>, vector<128x128xbf16>, vector<256x128xf32> -> vector<256x128xf32>
    %91 = arith.addf %81, %90 : vector<256x128xf32>
    %c2_69 = arith.constant 2 : index
    %c1_70 = arith.constant 1 : index
    %c0_71 = arith.constant 0 : index
    %92 = vector.load %arg8[%c2_69, %c1_70, %c0_71] : memref<18x18x128xbf16, #tpu.memory_space<vmem>>, vector<16x16x128xbf16>
    %93 = vector.shape_cast %92 : vector<16x16x128xbf16> to vector<256x128xbf16>
    %c9_i32_72 = arith.constant 9 : i32
    %94 = arith.muli %arg1, %c9_i32_72 : i32
    %c6_i32_73 = arith.constant 6 : i32
    %95 = arith.addi %94, %c6_i32_73 : i32
    %c1_i32_74 = arith.constant 1 : i32
    %96 = arith.addi %95, %c1_i32_74 : i32
    %97 = arith.index_cast %96 : i32 to index
    %c0_75 = arith.constant 0 : index
    %c0_76 = arith.constant 0 : index
    %98 = vector.load %arg5[%97, %c0_75, %c0_76] : memref<18x128x128xbf16, #tpu.memory_space<vmem>>, vector<1x128x128xbf16>
    %99 = vector.shape_cast %98 : vector<1x128x128xbf16> to vector<128x128xbf16>
    %cst_77 = arith.constant dense<0.000000e+00> : vector<256x128xf32>
    %100 = tpu.matmul %93, %99, %cst_77 {dimension_numbers = #tpu.dot_dimension_numbers<[1], [0], [0], [1], [0, 0, 1, 1], [], []>} : vector<256x128xbf16>, vector<128x128xbf16>, vector<256x128xf32> -> vector<256x128xf32>
    %101 = arith.addf %91, %100 : vector<256x128xf32>
    %c2_78 = arith.constant 2 : index
    %c2_79 = arith.constant 2 : index
    %c0_80 = arith.constant 0 : index
    %102 = vector.load %arg8[%c2_78, %c2_79, %c0_80] : memref<18x18x128xbf16, #tpu.memory_space<vmem>>, vector<16x16x128xbf16>
    %103 = vector.shape_cast %102 : vector<16x16x128xbf16> to vector<256x128xbf16>
    %c9_i32_81 = arith.constant 9 : i32
    %104 = arith.muli %arg1, %c9_i32_81 : i32
    %c6_i32_82 = arith.constant 6 : i32
    %105 = arith.addi %104, %c6_i32_82 : i32
    %c2_i32_83 = arith.constant 2 : i32
    %106 = arith.addi %105, %c2_i32_83 : i32
    %107 = arith.index_cast %106 : i32 to index
    %c0_84 = arith.constant 0 : index
    %c0_85 = arith.constant 0 : index
    %108 = vector.load %arg5[%107, %c0_84, %c0_85] : memref<18x128x128xbf16, #tpu.memory_space<vmem>>, vector<1x128x128xbf16>
    %109 = vector.shape_cast %108 : vector<1x128x128xbf16> to vector<128x128xbf16>
    %cst_86 = arith.constant dense<0.000000e+00> : vector<256x128xf32>
    %110 = tpu.matmul %103, %109, %cst_86 {dimension_numbers = #tpu.dot_dimension_numbers<[1], [0], [0], [1], [0, 0, 1, 1], [], []>} : vector<256x128xbf16>, vector<128x128xbf16>, vector<256x128xf32> -> vector<256x128xf32>
    %111 = arith.addf %101, %110 : vector<256x128xf32>
    %112 = arith.index_cast %arg1 : i32 to index
    %c0_87 = arith.constant 0 : index
    %c0_88 = arith.constant 0 : index
    %113 = vector.load %arg6[%112, %c0_87, %c0_88] : memref<2x1x128xf32, #tpu.memory_space<vmem>>, vector<1x1x128xf32>
    %114 = vector.shape_cast %113 : vector<1x1x128xf32> to vector<1x128xf32>
    %115 = vector.broadcast %114 : vector<1x128xf32> to vector<256x128xf32>
    %116 = arith.addf %111, %115 : vector<256x128xf32>
    %cst_89 = arith.constant 0.000000e+00 : f32
    %117 = vector.broadcast %cst_89 : f32 to vector<256x128xf32>
    %118 = arith.cmpf ogt, %116, %117 : vector<256x128xf32>
    %cst_90 = arith.constant 1.000000e-01 : f32
    %119 = vector.broadcast %cst_90 : f32 to vector<256x128xf32>
    %120 = arith.mulf %119, %116 : vector<256x128xf32>
    %121 = arith.select %118, %116, %120 : vector<256x128xi1>, vector<256x128xf32>
    %122 = vector.shape_cast %121 : vector<256x128xf32> to vector<1x16x16x128xf32>
    %c0_91 = arith.constant 0 : index
    %c0_92 = arith.constant 0 : index
    %c0_93 = arith.constant 0 : index
    %c0_94 = arith.constant 0 : index
    %123 = vector.load %arg7[%c0_91, %c0_92, %c0_93, %c0_94] : memref<1x16x16x128xf32, #tpu.memory_space<vmem>>, vector<1x16x16x128xf32>
    %124 = arith.addf %123, %122 : vector<1x16x16x128xf32>
    %c0_95 = arith.constant 0 : index
    %c0_96 = arith.constant 0 : index
    %c0_97 = arith.constant 0 : index
    %c0_98 = arith.constant 0 : index
    %125 = vector.load %arg7[%c0_95, %c0_96, %c0_97, %c0_98] : memref<1x16x16x128xf32, #tpu.memory_space<vmem>>, vector<1x16x16x128xf32>
    tpu.vector_store %arg7[%c0_95, %c0_96, %c0_97, %c0_98], %124 {strides = array<i32>} : memref<1x16x16x128xf32, #tpu.memory_space<vmem>>, vector<1x16x16x128xf32>,
    return
  }
  func.func @transform_0(%arg0: i32, %arg1: i32) -> (i32, i32, i32, i32) {
    %c0_i32 = arith.constant 0 : i32
    %c0_i32_0 = arith.constant 0 : i32
    %c0_i32_1 = arith.constant 0 : i32
    %c0_i32_2 = arith.constant 0 : i32
    return %arg0, %c0_i32, %c0_i32_0, %c0_i32_1 : i32, i32, i32, i32
  }
  func.func @transform_1(%arg0: i32, %arg1: i32) -> (i32, i32, i32) {
    %c0_i32 = arith.constant 0 : i32
    %c0_i32_0 = arith.constant 0 : i32
    %c0_i32_1 = arith.constant 0 : i32
    %c0_i32_2 = arith.constant 0 : i32
    return %c0_i32, %c0_i32_0, %c0_i32_1 : i32, i32, i32
  }
  func.func @transform_2(%arg0: i32, %arg1: i32) -> (i32, i32, i32) {
    %c0_i32 = arith.constant 0 : i32
    %c0_i32_0 = arith.constant 0 : i32
    %c0_i32_1 = arith.constant 0 : i32
    %c0_i32_2 = arith.constant 0 : i32
    return %c0_i32, %c0_i32_0, %c0_i32_1 : i32, i32, i32
  }
  func.func @transform_3(%arg0: i32, %arg1: i32) -> (i32, i32, i32) {
    %c0_i32 = arith.constant 0 : i32
    %c0_i32_0 = arith.constant 0 : i32
    %c0_i32_1 = arith.constant 0 : i32
    %c0_i32_2 = arith.constant 0 : i32
    return %c0_i32, %c0_i32_0, %c0_i32_1 : i32, i32, i32
  }
  func.func @transform_4(%arg0: i32, %arg1: i32) -> (i32, i32, i32) {
    %c0_i32 = arith.constant 0 : i32
    %c0_i32_0 = arith.constant 0 : i32
    %c0_i32_1 = arith.constant 0 : i32
    %c0_i32_2 = arith.constant 0 : i32
    return %c0_i32, %c0_i32_0, %c0_i32_1 : i32, i32, i32
  }
  func.func @transform_5(%arg0: i32, %arg1: i32) -> (i32, i32, i32, i32) {
    %c0_i32 = arith.constant 0 : i32
    %c0_i32_0 = arith.constant 0 : i32
    %c0_i32_1 = arith.constant 0 : i32
    %c0_i32_2 = arith.constant 0 : i32
    return %arg0, %c0_i32, %c0_i32_0, %c0_i32_1 : i32, i32, i32, i32
  }
}

</mosaic_0001>

<llo_original>
// kernel: tpu_custom_call.1
$region0: #{tpu_custom_call.1}
  #allocation0 [shape = 'u32[]', space=smem, size = 0x4, offset = 0x4, fixed_abs, tag = 'smem constant byte address 0x4 - core index']
  #allocation1 [shape = 'u32[72,128]{1,0:T(1,128)}', space=vmem, size = 0x9000, scoped, tag = 'internal scratch']
  #allocation2 [shape = 'bf16[18,18,128]{2,1,0:T(8,128)(2,1)}', space=vmem, size = 0x1b000, scoped, tag = 'scratch operand']
  %s0 = inlined_call_operand.hbm [shape: f32[2,16,16,128], index: 0, kind: input, shape index: {}]
  %s1 = inlined_call_operand.hbm [shape: bf16[2,128,128], index: 1, kind: input, shape index: {}]
  %s2 = inlined_call_operand.hbm [shape: f32[2,1,128], index: 2, kind: input, shape index: {}]
  %s3 = inlined_call_operand.hbm [shape: bf16[18,128,128], index: 3, kind: input, shape index: {}]
  %s4 = inlined_call_operand.vmem [shape: f32[2,1,128], index: 4, kind: input, shape index: {}]
  %s5 = inlined_call_operand.hbm [shape: f32[2,16,16,128], index: 5, kind: output, shape index: {}]
  %s6 = sld [smem:[#allocation0]]
  $region73: #{tpu_custom_call.1} parent=0
    _
  %s8 = ssub.s32 1, %s6
  %s9 = scalar_select 0, %s8, %s6
  $region1: #{tpu_custom_call.1} parent=0
    #allocation3 [shape = 'u8[262144]{0}', space=vmem, size = 0x40000, scoped, tag = 'input window, operand 0']
    #allocation4 [shape = 's32[2]{0}', space=sflag, size = 0x8, scoped, tag = 'scoped memory for tpu_custom_call.1']
    #allocation5 [shape = 's32[2]{0}', space=sflag, size = 0x8, scoped, tag = 'scoped memory for tpu_custom_call.1']
    #allocation6 [shape = 'u8[65536]{0}', space=vmem, size = 0x10000, scoped, tag = 'input window, operand 1, single buffered']
    #allocation7 [shape = 's32[1]{0}', space=sflag, size = 0x4, scoped, tag = 'scoped memory for tpu_custom_call.1']
    #allocation8 [shape = 'u8[1024]{0}', space=vmem, size = 0x400, scoped, tag = 'input window, operand 2, single buffered']
    #allocation9 [shape = 'u8[589824]{0}', space=vmem, size = 0x90000, scoped, tag = 'input window, operand 3, single buffered']
    #allocation10 [shape = 's32[1]{0}', space=sflag, size = 0x4, scoped, tag = 'scoped memory for tpu_custom_call.1']
    #allocation11 [shape = 'u8[262144]{0}', space=vmem, size = 0x40000, scoped, tag = 'output window, operand 0']
    %10 = vsyncpa [#allocation4], 0
    %s11 = scalar_lea.sflag [#allocation4], 1
    %12 = vsyncpa %s11, 0
    %13 = vsyncpa [#allocation7], 0
    %14 = vsyncpa [#allocation10], 0
    %15 = vsyncpa [#allocation5], 0
    %s16 = scalar_lea.sflag [#allocation5], 1
    %17 = vsyncpa %s16, 0
    loop: start=0, step=1, limit=6
    $region2: #{tpu_custom_call.1} parent=1 // loop_pre_header
      _
    $region3: #{tpu_custom_call.1} parent=1 // loop_header
      %s19 = sphi 0, %s23
      %p20 = scmp.ge.s32.totalorder %s19, 6
      %s26 = sphi 0, %s38
      %s27 = sphi 0, %s34
      %s28 = sphi 0, %s26
      %s29 = sphi 0, %s27
      %s30 = sphi 0, %s28
      %s31 = sphi 0, %s29
      %s41 = sphi 0, %s43
      %s44 = sphi 0, %s41
      %s45 = sphi 0, %s44
      %s61 = sphi 0, %s45
      %s65 = sphi 0, %s65
      %s67 = sphi 0, %s65
      %s68 = sphi 0, %s67
      %s82 = sphi 0, %s68
      %s86 = sphi 0, %s86
      %s88 = sphi 0, %s86
      %s89 = sphi 0, %s88
      %s103 = sphi 0, %s89
      %s107 = sphi 0, %s107
      %s109 = sphi 0, %s107
      %s110 = sphi 0, %s109
      %s124 = sphi 0, %s110
      %s128 = sphi 0, %s128
      %s130 = sphi 0, %s128
      %s131 = sphi 0, %s130
      %s145 = sphi 0, %s131
      %s151 = sphi 0, %s153
      %s154 = sphi 0, %s151
      %s155 = sphi 0, %s154
      %s171 = sphi 0, %s155
    $region4: #{tpu_custom_call.1} parent=1 // loop_header_branch
      %22 = sbr.rel (%p20) target = $region8
    $region5: #{tpu_custom_call.1} parent=1 // loop_body
      %s24 = ssub.s32 %s19, 1
      %s25 = ssub.s32 %s19, 2
      %s32 = sadd.s32 1, %s27
      %p33 = scmp.ge.s32.totalorder %s32, 2
      %s34 = scalar_select %p33, 0, %s32
      %s35 = sadd.s32 1, %s26
      %s36 = scalar_select %p33, %s35, %s26
      %p37 = scmp.ge.s32.totalorder %s36, 2
      %s38 = scalar_select %p37, 0, %s36
      %s39 = ssub.s32 %s26, %s38
      %p40 = scmp.eq.s32.totalorder %s39, 0
      %s42 = sadd.s32 %s41, 1
      %s43 = scalar_select %p40, %s41, %s42
      %p46 = pneg %p40
      %p47 = scmp.eq.s32.totalorder %s19, 3
      %p48 = por %p46, %p47
      %p49 = scmp.ne.s32.totalorder %s41, %s44
      %p50 = scmp.eq.s32.totalorder %s19, 0
      %p51 = por %p49, %p50
      %p52 = scmp.ne.s32.totalorder %s41, %s44
      %p53 = scmp.eq.s32.totalorder %s24, 3
      %p54 = por %p52, %p53
      %p55 = scmp.ne.s32.totalorder %s44, %s45
      %p56 = scmp.eq.s32.totalorder %s24, 0
      %p57 = por %p55, %p56
      %p58 = scmp.ne.s32.totalorder %s44, %s45
      %p59 = scmp.eq.s32.totalorder %s25, 3
      %p60 = por %p58, %p59
      %p62 = scmp.ne.s32.totalorder %s45, %s61
      %p63 = scmp.eq.s32.totalorder %s25, 0
      %p64 = por %p62, %p63
      %s66 = sadd.s32 %s65, 1
      %p69 = scmp.eq.s32.totalorder %s19, 3
      %p70 = scmp.ne.s32.totalorder %s65, %s67
      %p71 = scmp.eq.s32.totalorder %s19, 0
      %p72 = por %p70, %p71
      %p73 = scmp.ne.s32.totalorder %s65, %s67
      %p74 = scmp.eq.s32.totalorder %s24, 3
      %p75 = por %p73, %p74
      %p76 = scmp.ne.s32.totalorder %s67, %s68
      %p77 = scmp.eq.s32.totalorder %s24, 0
      %p78 = por %p76, %p77
      %p79 = scmp.ne.s32.totalorder %s67, %s68
      %p80 = scmp.eq.s32.totalorder %s25, 3
      %p81 = por %p79, %p80
      %p83 = scmp.ne.s32.totalorder %s68, %s82
      %p84 = scmp.eq.s32.totalorder %s25, 0
      %p85 = por %p83, %p84
      %s87 = sadd.s32 %s86, 1
      %p90 = scmp.eq.s32.totalorder %s19, 3
      %p91 = scmp.ne.s32.totalorder %s86, %s88
      %p92 = scmp.eq.s32.totalorder %s19, 0
      %p93 = por %p91, %p92
      %p94 = scmp.ne.s32.totalorder %s86, %s88
      %p95 = scmp.eq.s32.totalorder %s24, 3
      %p96 = por %p94, %p95
      %p97 = scmp.ne.s32.totalorder %s88, %s89
      %p98 = scmp.eq.s32.totalorder %s24, 0
      %p99 = por %p97, %p98
      %p100 = scmp.ne.s32.totalorder %s88, %s89
      %p101 = scmp.eq.s32.totalorder %s25, 3
      %p102 = por %p100, %p101
      %p104 = scmp.ne.s32.totalorder %s89, %s103
      %p105 = scmp.eq.s32.totalorder %s25, 0
      %p106 = por %p104, %p105
      %s108 = sadd.s32 %s107, 1
      %p111 = scmp.eq.s32.totalorder %s19, 3
      %p112 = scmp.ne.s32.totalorder %s107, %s109
      %p113 = scmp.eq.s32.totalorder %s19, 0
      %p114 = por %p112, %p113
      %p115 = scmp.ne.s32.totalorder %s107, %s109
      %p116 = scmp.eq.s32.totalorder %s24, 3
      %p117 = por %p115, %p116
      %p118 = scmp.ne.s32.totalorder %s109, %s110
      %p119 = scmp.eq.s32.totalorder %s24, 0
      %p120 = por %p118, %p119
      %p121 = scmp.ne.s32.totalorder %s109, %s110
      %p122 = scmp.eq.s32.totalorder %s25, 3
      %p123 = por %p121, %p122
      %p125 = scmp.ne.s32.totalorder %s110, %s124
      %p126 = scmp.eq.s32.totalorder %s25, 0
      %p127 = por %p125, %p126
      %s129 = sadd.s32 %s128, 1
      %p132 = scmp.eq.s32.totalorder %s19, 3
      %p133 = scmp.ne.s32.totalorder %s128, %s130
      %p134 = scmp.eq.s32.totalorder %s19, 0
      %p135 = por %p133, %p134
      %p136 = scmp.ne.s32.totalorder %s128, %s130
      %p137 = scmp.eq.s32.totalorder %s24, 3
      %p138 = por %p136, %p137
      %p139 = scmp.ne.s32.totalorder %s130, %s131
      %p140 = scmp.eq.s32.totalorder %s24, 0
      %p141 = por %p139, %p140
      %p142 = scmp.ne.s32.totalorder %s130, %s131
      %p143 = scmp.eq.s32.totalorder %s25, 3
      %p144 = por %p142, %p143
      %p146 = scmp.ne.s32.totalorder %s131, %s145
      %p147 = scmp.eq.s32.totalorder %s25, 0
      %p148 = por %p146, %p147
      %s149 = ssub.s32 %s26, %s38
      %p150 = scmp.eq.s32.totalorder %s149, 0
      %s152 = sadd.s32 %s151, 1
      %s153 = scalar_select %p150, %s151, %s152
      %p156 = pneg %p150
      %p157 = scmp.eq.s32.totalorder %s19, 3
      %p158 = por %p156, %p157
      %p159 = scmp.ne.s32.totalorder %s151, %s154
      %p160 = scmp.eq.s32.totalorder %s19, 0
      %p161 = por %p159, %p160
      %p162 = scmp.ne.s32.totalorder %s151, %s154
      %p163 = scmp.eq.s32.totalorder %s24, 3
      %p164 = por %p162, %p163
      %p165 = scmp.ne.s32.totalorder %s154, %s155
      %p166 = scmp.eq.s32.totalorder %s24, 0
      %p167 = por %p165, %p166
      %p168 = scmp.ne.s32.totalorder %s154, %s155
      %p169 = scmp.eq.s32.totalorder %s25, 3
      %p170 = por %p168, %p169
      %p172 = scmp.ne.s32.totalorder %s155, %s171
      %p173 = scmp.eq.s32.totalorder %s25, 0
      %p174 = por %p172, %p173
      %p175 = scmp.le.s32.totalorder 1, %s19
      %p176 = scmp.lt.s32.totalorder %s19, 5
      %p177 = pnand %p175, %p176
      %p178 = pneg %p177
      // Predicated region
      $region9: #{tpu_custom_call.1} parent=5 // pred_check
        _
      $region10: #{tpu_custom_call.1} parent=5 // pred_check_branch
        %180 = sbr.rel (%p177) target = $region12
      $region11: #{tpu_custom_call.1} parent=5 // pred_region
        %s181 = ssub.s32 %s19, 1
        // Predicated region
        $region13: #{tpu_custom_call.1} parent=11 // pred_check
          %p182 = pneg %p78
        $region14: #{tpu_custom_call.1} parent=11 // pred_check_branch
          %184 = sbr.rel (%p182) target = $region16
        $region15: #{tpu_custom_call.1} parent=11 // pred_region
          %186 = vsyncadd [#allocation7], 0
          %s187 = sshll.u32 %s1, 4
          %s188 = int_to_ptr.hbm [resolvable:$true] %s187
          %s189 = sshll.u32 [#allocation6], 4
          %s190 = int_to_ptr.vmem [resolvable:$true] %s189
          %195 = dma.hbm_to_vmem [thread:$0]  %s188, 2048, %s190, [#allocation7], 64, 64, 4
        $region16: #{tpu_custom_call.1} parent=11 // pred_fallthru
          _
        // Predicated region
        $region17: #{tpu_custom_call.1} parent=11 // pred_check
          %p196 = pneg %p99
        $region18: #{tpu_custom_call.1} parent=11 // pred_check_branch
          %198 = sbr.rel (%p196) target = $region20
        $region19: #{tpu_custom_call.1} parent=11 // pred_region
          %200 = vsyncadd [#allocation7], 0
          %s201 = sshll.u32 %s2, 4
          %s202 = int_to_ptr.hbm [resolvable:$true] %s201
          %s203 = sshll.u32 [#allocation8], 4
          %s204 = int_to_ptr.vmem [resolvable:$true] %s203
          %209 = dma.hbm_to_vmem [thread:$0]  %s202, 32, %s204, [#allocation7], 16, 16, 1
        $region20: #{tpu_custom_call.1} parent=11 // pred_fallthru
          _
        // Predicated region
        $region21: #{tpu_custom_call.1} parent=11 // pred_check
          %p210 = pneg %p120
        $region22: #{tpu_custom_call.1} parent=11 // pred_check_branch
          %212 = sbr.rel (%p210) target = $region24
        $region23: #{tpu_custom_call.1} parent=11 // pred_region
          %214 = vsyncadd [#allocation10], 0
          %s215 = sshll.u32 %s3, 4
          %s216 = int_to_ptr.hbm [resolvable:$true] %s215
          %s217 = sshll.u32 [#allocation9], 4
          %s218 = int_to_ptr.vmem [resolvable:$true] %s217
          %223 = dma.hbm_to_vmem [thread:$0]  %s216, 18432, %s218, [#allocation10], 64, 64, 4
        $region24: #{tpu_custom_call.1} parent=11 // pred_fallthru
          _
        // Predicated region
        $region25: #{tpu_custom_call.1} parent=11 // pred_check
          %p224 = pneg %p141
        $region26: #{tpu_custom_call.1} parent=11 // pred_check_branch
          %226 = sbr.rel (%p224) target = $region28
        $region27: #{tpu_custom_call.1} parent=11 // pred_region
          _
        $region28: #{tpu_custom_call.1} parent=11 // pred_fallthru
          _
      $region12: #{tpu_custom_call.1} parent=5 // pred_fallthru
        _
      %p227 = scmp.lt.s32.totalorder %s19, 4
      // Predicated region
      $region29: #{tpu_custom_call.1} parent=5 // pred_check
        %p228 = pneg %p227
      $region30: #{tpu_custom_call.1} parent=5 // pred_check_branch
        %230 = sbr.rel (%p228) target = $region32
      $region31: #{tpu_custom_call.1} parent=5 // pred_region
        // Predicated region
        $region33: #{tpu_custom_call.1} parent=31 // pred_check
          %p231 = pneg %p51
        $region34: #{tpu_custom_call.1} parent=31 // pred_check_branch
          %233 = sbr.rel (%p231) target = $region36
        $region35: #{tpu_custom_call.1} parent=31 // pred_region
          %s234 = sand.u32 %s41, 1
          %s235 = scalar_lea.sflag [#allocation4], %s234
          %s236 = sand.u32 %s41, 1
          %s237 = smul.addr %s236, 256
          %s238 = scalar_lea.vmem [#allocation3], %s237
          %240 = vsyncadd %s235, 0
          %s241 = smul.addr %s26, 32
          %s242 = smul.addr %s241, 8
          %s243 = scalar_lea.hbm %s0, %s242
          %s244 = sshll.u32 %s243, 4
          %s245 = int_to_ptr.hbm [resolvable:$true] %s244
          %s246 = sshll.u32 %s238, 4
          %s247 = int_to_ptr.vmem [resolvable:$true] %s246
          %252 = dma.hbm_to_vmem [thread:$0]  %s245, 4096, %s247, %s235, 128, 128, 8
        $region36: #{tpu_custom_call.1} parent=31 // pred_fallthru
          _
      $region32: #{tpu_custom_call.1} parent=5 // pred_fallthru
        _
      %p253 = scmp.le.s32.totalorder 1, %s19
      %p254 = scmp.lt.s32.totalorder %s19, 5
      %p255 = pnand %p253, %p254
      %p256 = pneg %p255
      // Predicated region
      $region37: #{tpu_custom_call.1} parent=5 // pred_check
        _
      $region38: #{tpu_custom_call.1} parent=5 // pred_check_branch
        %258 = sbr.rel (%p255) target = $region40
      $region39: #{tpu_custom_call.1} parent=5 // pred_region
        %s259 = ssub.s32 %s19, 1
        %s260 = sand.u32 %s44, 1
        %s261 = scalar_lea.sflag [#allocation4], %s260
        %s262 = sand.u32 %s44, 1
        %s263 = smul.addr %s262, 256
        %s264 = scalar_lea.vmem [#allocation3], %s263
        // Predicated region
        $region41: #{tpu_custom_call.1} parent=39 // pred_check
          %p265 = pneg %p57
        $region42: #{tpu_custom_call.1} parent=39 // pred_check_branch
          %267 = sbr.rel (%p265) target = $region44
        $region43: #{tpu_custom_call.1} parent=39 // pred_region
          %269 = dma.done %s261, 4096
        $region44: #{tpu_custom_call.1} parent=39 // pred_fallthru
          _
        // Predicated region
        $region45: #{tpu_custom_call.1} parent=39 // pred_check
          %p270 = pneg %p78
        $region46: #{tpu_custom_call.1} parent=39 // pred_check_branch
          %272 = sbr.rel (%p270) target = $region48
        $region47: #{tpu_custom_call.1} parent=39 // pred_region
          %274 = dma.done [#allocation7], 2048
        $region48: #{tpu_custom_call.1} parent=39 // pred_fallthru
          _
        // Predicated region
        $region49: #{tpu_custom_call.1} parent=39 // pred_check
          %p275 = pneg %p99
        $region50: #{tpu_custom_call.1} parent=39 // pred_check_branch
          %277 = sbr.rel (%p275) target = $region52
        $region51: #{tpu_custom_call.1} parent=39 // pred_region
          %279 = dma.done [#allocation7], 32
        $region52: #{tpu_custom_call.1} parent=39 // pred_fallthru
          _
        // Predicated region
        $region53: #{tpu_custom_call.1} parent=39 // pred_check
          %p280 = pneg %p120
        $region54: #{tpu_custom_call.1} parent=39 // pred_check_branch
          %282 = sbr.rel (%p280) target = $region56
        $region55: #{tpu_custom_call.1} parent=39 // pred_region
          %284 = dma.done [#allocation10], 18432
        $region56: #{tpu_custom_call.1} parent=39 // pred_fallthru
          _
        %s285 = sand.u32 %s44, 1
        %s286 = scalar_lea.sflag [#allocation4], %s285
        %s287 = sand.u32 %s44, 1
        %s288 = smul.addr %s287, 256
        %s289 = scalar_lea.vmem [#allocation3], %s288
        %p290 = pneg %p57
        %p291 = pneg %p54
        %p292 = pneg %p78
        %p293 = pneg %p75
        %p294 = pneg %p99
        %p295 = pneg %p96
        %p296 = pneg %p120
        %p297 = pneg %p117
        %p298 = pneg %p141
        %p299 = pneg %p138
        %p300 = pneg %p167
        %p301 = pneg %p164
        %s302 = sand.u32 %s154, 1
        %s303 = scalar_lea.sflag [#allocation5], %s302
        %s304 = sand.u32 %s154, 1
        %s305 = smul.addr %s304, 256
        %s306 = scalar_lea.vmem [#allocation11], %s305
        %p308 = scmp.eq.s32.totalorder %s29, 0
        // Predicated region
        $region57: #{tpu_custom_call.1} parent=39 // pred_check
          %p309 = pneg %p308
        $region58: #{tpu_custom_call.1} parent=39 // pred_check_branch
          %311 = sbr.rel (%p309) target = $region60
        $region59: #{tpu_custom_call.1} parent=39 // pred_region
          %v312 = vld [vmem:[%s264] sm:$0xff]
          %v313 = vld [vmem:[%s264 + $0x8] sm:$0xff]
          %v314 = vld [vmem:[%s264 + $0x10] sm:$0xff]
          %v315 = vld [vmem:[%s264 + $0x18] sm:$0xff]
          %v316 = vld [vmem:[%s264 + $0x20] sm:$0xff]
          %v317 = vld [vmem:[%s264 + $0x28] sm:$0xff]
          %v318 = vld [vmem:[%s264 + $0x30] sm:$0xff]
          %v319 = vld [vmem:[%s264 + $0x38] sm:$0xff]
          %v320 = vld [vmem:[%s264 + $0x40] sm:$0xff]
          %v321 = vld [vmem:[%s264 + $0x48] sm:$0xff]
          %v322 = vld [vmem:[%s264 + $0x50] sm:$0xff]
          %v323 = vld [vmem:[%s264 + $0x58] sm:$0xff]
          %v324 = vld [vmem:[%s264 + $0x60] sm:$0xff]
          %v325 = vld [vmem:[%s264 + $0x68] sm:$0xff]
          %v326 = vld [vmem:[%s264 + $0x70] sm:$0xff]
          %v327 = vld [vmem:[%s264 + $0x78] sm:$0xff]
          %v328 = vld [vmem:[%s264 + $0x80] sm:$0xff]
          %v329 = vld [vmem:[%s264 + $0x88] sm:$0xff]
          %v330 = vld [vmem:[%s264 + $0x90] sm:$0xff]
          %v331 = vld [vmem:[%s264 + $0x98] sm:$0xff]
          %v332 = vld [vmem:[%s264 + $0xa0] sm:$0xff]
          %v333 = vld [vmem:[%s264 + $0xa8] sm:$0xff]
          %v334 = vld [vmem:[%s264 + $0xb0] sm:$0xff]
          %v335 = vld [vmem:[%s264 + $0xb8] sm:$0xff]
          %v336 = vld [vmem:[%s264 + $0xc0] sm:$0xff]
          %v337 = vld [vmem:[%s264 + $0xc8] sm:$0xff]
          %v338 = vld [vmem:[%s264 + $0xd0] sm:$0xff]
          %v339 = vld [vmem:[%s264 + $0xd8] sm:$0xff]
          %v340 = vld [vmem:[%s264 + $0xe0] sm:$0xff]
          %v341 = vld [vmem:[%s264 + $0xe8] sm:$0xff]
          %v342 = vld [vmem:[%s264 + $0xf0] sm:$0xff]
          %v343 = vld [vmem:[%s264 + $0xf8] sm:$0xff]
          %344 = vst [vmem:[%s306] sm:$0xff] %v312
          %345 = vst [vmem:[%s306 + $0x8] sm:$0xff] %v313
          %346 = vst [vmem:[%s306 + $0x10] sm:$0xff] %v314
          %347 = vst [vmem:[%s306 + $0x18] sm:$0xff] %v315
          %348 = vst [vmem:[%s306 + $0x20] sm:$0xff] %v316
          %349 = vst [vmem:[%s306 + $0x28] sm:$0xff] %v317
          %350 = vst [vmem:[%s306 + $0x30] sm:$0xff] %v318
          %351 = vst [vmem:[%s306 + $0x38] sm:$0xff] %v319
          %352 = vst [vmem:[%s306 + $0x40] sm:$0xff] %v320
          %353 = vst [vmem:[%s306 + $0x48] sm:$0xff] %v321
          %354 = vst [vmem:[%s306 + $0x50] sm:$0xff] %v322
          %355 = vst [vmem:[%s306 + $0x58] sm:$0xff] %v323
          %356 = vst [vmem:[%s306 + $0x60] sm:$0xff] %v324
          %357 = vst [vmem:[%s306 + $0x68] sm:$0xff] %v325
          %358 = vst [vmem:[%s306 + $0x70] sm:$0xff] %v326
          %359 = vst [vmem:[%s306 + $0x78] sm:$0xff] %v327
          %360 = vst [vmem:[%s306 + $0x80] sm:$0xff] %v328
          %361 = vst [vmem:[%s306 + $0x88] sm:$0xff] %v329
          %362 = vst [vmem:[%s306 + $0x90] sm:$0xff] %v330
          %363 = vst [vmem:[%s306 + $0x98] sm:$0xff] %v331
          %364 = vst [vmem:[%s306 + $0xa0] sm:$0xff] %v332
          %365 = vst [vmem:[%s306 + $0xa8] sm:$0xff] %v333
          %366 = vst [vmem:[%s306 + $0xb0] sm:$0xff] %v334
          %367 = vst [vmem:[%s306 + $0xb8] sm:$0xff] %v335
          %368 = vst [vmem:[%s306 + $0xc0] sm:$0xff] %v336
          %369 = vst [vmem:[%s306 + $0xc8] sm:$0xff] %v337
          %370 = vst [vmem:[%s306 + $0xd0] sm:$0xff] %v338
          %371 = vst [vmem:[%s306 + $0xd8] sm:$0xff] %v339
          %372 = vst [vmem:[%s306 + $0xe0] sm:$0xff] %v340
          %373 = vst [vmem:[%s306 + $0xe8] sm:$0xff] %v341
          %374 = vst [vmem:[%s306 + $0xf0] sm:$0xff] %v342
          %375 = vst [vmem:[%s306 + $0xf8] sm:$0xff] %v343
          %376 = vst [vmem:[#allocation2] sm:$0xf] 0
          %377 = vst [vmem:[#allocation2 + $0x4] sm:$0xf] 0
          %378 = vst [vmem:[#allocation2 + $0x8] sm:$0x1] 0
          %379 = vst [vmem:[#allocation2 + $0xc] sm:$0xf] 0
          %380 = vst [vmem:[#allocation2 + $0x10] sm:$0xf] 0
          %381 = vst [vmem:[#allocation2 + $0x14] sm:$0x1] 0
          %382 = vst [vmem:[#allocation2 + $0x18] sm:$0xf] 0
          %383 = vst [vmem:[#allocation2 + $0x1c] sm:$0xf] 0
          %384 = vst [vmem:[#allocation2 + $0x20] sm:$0x1] 0
          %385 = vst [vmem:[#allocation2 + $0x24] sm:$0xf] 0
          %386 = vst [vmem:[#allocation2 + $0x28] sm:$0xf] 0
          %387 = vst [vmem:[#allocation2 + $0x2c] sm:$0x1] 0
          %388 = vst [vmem:[#allocation2 + $0x30] sm:$0xf] 0
          %389 = vst [vmem:[#allocation2 + $0x34] sm:$0xf] 0
          %390 = vst [vmem:[#allocation2 + $0x38] sm:$0x1] 0
          %391 = vst [vmem:[#allocation2 + $0x3c] sm:$0xf] 0
          %392 = vst [vmem:[#allocation2 + $0x40] sm:$0xf] 0
          %393 = vst [vmem:[#allocation2 + $0x44] sm:$0x1] 0
          %394 = vst [vmem:[#allocation2 + $0x48] sm:$0xf] 0
          %395 = vst [vmem:[#allocation2 + $0x4c] sm:$0xf] 0
          %396 = vst [vmem:[#allocation2 + $0x50] sm:$0x1] 0
          %397 = vst [vmem:[#allocation2 + $0x54] sm:$0xf] 0
          %398 = vst [vmem:[#allocation2 + $0x58] sm:$0xf] 0
          %399 = vst [vmem:[#allocation2 + $0x5c] sm:$0x1] 0
          %400 = vst [vmem:[#allocation2 + $0x60] sm:$0xf] 0
          %401 = vst [vmem:[#allocation2 + $0x64] sm:$0xf] 0
          %402 = vst [vmem:[#allocation2 + $0x68] sm:$0x1] 0
          %403 = vst [vmem:[#allocation2 + $0x6c] sm:$0xf] 0
          %404 = vst [vmem:[#allocation2 + $0x70] sm:$0xf] 0
          %405 = vst [vmem:[#allocation2 + $0x74] sm:$0x1] 0
          %406 = vst [vmem:[#allocation2 + $0x78] sm:$0xf] 0
          %407 = vst [vmem:[#allocation2 + $0x7c] sm:$0xf] 0
          %408 = vst [vmem:[#allocation2 + $0x80] sm:$0x1] 0
          %409 = vst [vmem:[#allocation2 + $0x84] sm:$0xf] 0
          %410 = vst [vmem:[#allocation2 + $0x88] sm:$0xf] 0
          %411 = vst [vmem:[#allocation2 + $0x8c] sm:$0x1] 0
          %412 = vst [vmem:[#allocation2 + $0x90] sm:$0xf] 0
          %413 = vst [vmem:[#allocation2 + $0x94] sm:$0xf] 0
          %414 = vst [vmem:[#allocation2 + $0x98] sm:$0x1] 0
          %415 = vst [vmem:[#allocation2 + $0x9c] sm:$0xf] 0
          %416 = vst [vmem:[#allocation2 + $0xa0] sm:$0xf] 0
          %417 = vst [vmem:[#allocation2 + $0xa4] sm:$0x1] 0
          %418 = vst [vmem:[#allocation2 + $0xa8] sm:$0xf] 0
          %419 = vst [vmem:[#allocation2 + $0xac] sm:$0xf] 0
          %420 = vst [vmem:[#allocation2 + $0xb0] sm:$0x1] 0
          %421 = vst [vmem:[#allocation2 + $0xb4] sm:$0xf] 0
          %422 = vst [vmem:[#allocation2 + $0xb8] sm:$0xf] 0
          %423 = vst [vmem:[#allocation2 + $0xbc] sm:$0x1] 0
          %424 = vst [vmem:[#allocation2 + $0xc0] sm:$0xf] 0
          %425 = vst [vmem:[#allocation2 + $0xc4] sm:$0xf] 0
          %426 = vst [vmem:[#allocation2 + $0xc8] sm:$0x1] 0
          %427 = vst [vmem:[#allocation2 + $0xcc] sm:$0xf] 0
          %428 = vst [vmem:[#allocation2 + $0xd0] sm:$0xf] 0
          %429 = vst [vmem:[#allocation2 + $0xd4] sm:$0x1] 0
        $region60: #{tpu_custom_call.1} parent=39 // pred_fallthru
          _
        %v430 = vld [vmem:[%s306] sm:$0xff]
        %v431 = vld [vmem:[%s306 + $0x8] sm:$0xff]
        %v432 = vld [vmem:[%s306 + $0x10] sm:$0xff]
        %v433 = vld [vmem:[%s306 + $0x18] sm:$0xff]
        %v434 = vld [vmem:[%s306 + $0x20] sm:$0xff]
        %v435 = vld [vmem:[%s306 + $0x28] sm:$0xff]
        %v436 = vld [vmem:[%s306 + $0x30] sm:$0xff]
        %v437 = vld [vmem:[%s306 + $0x38] sm:$0xff]
        %v438 = vld [vmem:[%s306 + $0x40] sm:$0xff]
        %v439 = vld [vmem:[%s306 + $0x48] sm:$0xff]
        %v440 = vld [vmem:[%s306 + $0x50] sm:$0xff]
        %v441 = vld [vmem:[%s306 + $0x58] sm:$0xff]
        %v442 = vld [vmem:[%s306 + $0x60] sm:$0xff]
        %v443 = vld [vmem:[%s306 + $0x68] sm:$0xff]
        %v444 = vld [vmem:[%s306 + $0x70] sm:$0xff]
        %v445 = vld [vmem:[%s306 + $0x78] sm:$0xff]
        %v446 = vld [vmem:[%s306 + $0x80] sm:$0xff]
        %v447 = vld [vmem:[%s306 + $0x88] sm:$0xff]
        %v448 = vld [vmem:[%s306 + $0x90] sm:$0xff]
        %v449 = vld [vmem:[%s306 + $0x98] sm:$0xff]
        %v450 = vld [vmem:[%s306 + $0xa0] sm:$0xff]
        %v451 = vld [vmem:[%s306 + $0xa8] sm:$0xff]
        %v452 = vld [vmem:[%s306 + $0xb0] sm:$0xff]
        %v453 = vld [vmem:[%s306 + $0xb8] sm:$0xff]
        %v454 = vld [vmem:[%s306 + $0xc0] sm:$0xff]
        %v455 = vld [vmem:[%s306 + $0xc8] sm:$0xff]
        %v456 = vld [vmem:[%s306 + $0xd0] sm:$0xff]
        %v457 = vld [vmem:[%s306 + $0xd8] sm:$0xff]
        %v458 = vld [vmem:[%s306 + $0xe0] sm:$0xff]
        %v459 = vld [vmem:[%s306 + $0xe8] sm:$0xff]
        %v460 = vld [vmem:[%s306 + $0xf0] sm:$0xff]
        %v461 = vld [vmem:[%s306 + $0xf8] sm:$0xff]
        %v462 = vpack.c.bf16 %v431, %v430
        %v463 = vpack.c.bf16 %v433, %v432
        %v464 = vpack.c.bf16 %v435, %v434
        %v465 = vpack.c.bf16 %v437, %v436
        %v466 = vpack.c.bf16 %v439, %v438
        %v467 = vpack.c.bf16 %v441, %v440
        %v468 = vpack.c.bf16 %v443, %v442
        %v469 = vpack.c.bf16 %v445, %v444
        %v470 = vpack.c.bf16 %v447, %v446
        %v471 = vpack.c.bf16 %v449, %v448
        %v472 = vpack.c.bf16 %v451, %v450
        %v473 = vpack.c.bf16 %v453, %v452
        %v474 = vpack.c.bf16 %v455, %v454
        %v475 = vpack.c.bf16 %v457, %v456
        %v476 = vpack.c.bf16 %v459, %v458
        %v477 = vpack.c.bf16 %v461, %v460
        %s478 = smul.u32 %s29, 16
        %s479 = smul.addr %s478, 4
        %s480 = scalar_lea.vmem [#allocation6], %s479
        %v481 = vld [vmem:[%s480] sm:$0xf]
        %v482 = vld [vmem:[%s480 + $0x4] sm:$0xf]
        %v483 = vld [vmem:[%s480 + $0x8] sm:$0xf]
        %v484 = vld [vmem:[%s480 + $0xc] sm:$0xf]
        %v485 = vld [vmem:[%s480 + $0x10] sm:$0xf]
        %v486 = vld [vmem:[%s480 + $0x14] sm:$0xf]
        %v487 = vld [vmem:[%s480 + $0x18] sm:$0xf]
        %v488 = vld [vmem:[%s480 + $0x1c] sm:$0xf]
        %v489 = vld [vmem:[%s480 + $0x20] sm:$0xf]
        %v490 = vld [vmem:[%s480 + $0x24] sm:$0xf]
        %v491 = vld [vmem:[%s480 + $0x28] sm:$0xf]
        %v492 = vld [vmem:[%s480 + $0x2c] sm:$0xf]
        %v493 = vld [vmem:[%s480 + $0x30] sm:$0xf]
        %v494 = vld [vmem:[%s480 + $0x34] sm:$0xf]
        %v495 = vld [vmem:[%s480 + $0x38] sm:$0xf]
        %v496 = vld [vmem:[%s480 + $0x3c] sm:$0xf]
        %s497 = scalar_lea.vmem [#allocation8], %s29
        %v498 = vld [vmem:[%s497] sm:$0x1]
        %v500 = vperm.slane %v498, 0
        %v518 = vunpack.c.l.b16 %v481
        %v519 = vunpack.c.l.b16 %v482
        %v520 = vunpack.c.l.b16 %v483
        %v521 = vunpack.c.l.b16 %v484
        %v522 = vunpack.c.l.b16 %v485
        %v523 = vunpack.c.l.b16 %v486
        %v524 = vunpack.c.l.b16 %v487
        %v525 = vunpack.c.l.b16 %v488
        %v526 = vunpack.c.l.b16 %v489
        %v527 = vunpack.c.l.b16 %v490
        %v528 = vunpack.c.l.b16 %v491
        %v529 = vunpack.c.l.b16 %v492
        %v530 = vunpack.c.l.b16 %v493
        %v531 = vunpack.c.l.b16 %v494
        %v532 = vunpack.c.l.b16 %v495
        %v533 = vunpack.c.l.b16 %v496
        %v534 = vpack.c.b16 %v519, %v518
        %v535 = vpack.c.b16 %v521, %v520
        %v536 = vpack.c.b16 %v523, %v522
        %v537 = vpack.c.b16 %v525, %v524
        %v538 = vpack.c.b16 %v527, %v526
        %v539 = vpack.c.b16 %v529, %v528
        %v540 = vpack.c.b16 %v531, %v530
        %v541 = vpack.c.b16 %v533, %v532
        %550 = vmatpush.bf16.msra.mxu0 %v541
        %551 = vmatpush.bf16.msra.mxu0 %v540
        %552 = vmatpush.bf16.msra.mxu0 %v539
        %553 = vmatpush.bf16.msra.mxu0 %v538
        %554 = vmatpush.bf16.msra.mxu0 %v537
        %555 = vmatpush.bf16.msra.mxu0 %v536
        %556 = vmatpush.bf16.msra.mxu0 %v535
        %557 = vmatpush.bf16.msra.mxu0 %v534
        %558 = vmatmul.bf16.gmra.mxu0 %v462
        %v559 = vpop.f32.mrf.mxu0
        %v560 = vadd.f32 %v500, %v559
        %v561 = vpop.f32.mrf.mxu0
        %v562 = vadd.f32 %v500, %v561
        %563 = vmatmul.bf16.gmra.mxu0 %v463
        %v564 = vpop.f32.mrf.mxu0
        %v565 = vadd.f32 %v500, %v564
        %v566 = vpop.f32.mrf.mxu0
        %v567 = vadd.f32 %v500, %v566
        %568 = vmatmul.bf16.gmra.mxu0 %v464
        %v569 = vpop.f32.mrf.mxu0
        %v570 = vadd.f32 %v500, %v569
        %v571 = vpop.f32.mrf.mxu0
        %v572 = vadd.f32 %v500, %v571
        %573 = vmatmul.bf16.gmra.mxu0 %v465
        %v574 = vpop.f32.mrf.mxu0
        %v575 = vadd.f32 %v500, %v574
        %v576 = vpop.f32.mrf.mxu0
        %v577 = vadd.f32 %v500, %v576
        %578 = vmatmul.bf16.gmra.mxu0 %v466
        %v579 = vpop.f32.mrf.mxu0
        %v580 = vadd.f32 %v500, %v579
        %v581 = vpop.f32.mrf.mxu0
        %v582 = vadd.f32 %v500, %v581
        %583 = vmatmul.bf16.gmra.mxu0 %v467
        %v584 = vpop.f32.mrf.mxu0
        %v585 = vadd.f32 %v500, %v584
        %v586 = vpop.f32.mrf.mxu0
        %v587 = vadd.f32 %v500, %v586
        %588 = vmatmul.bf16.gmra.mxu0 %v468
        %v589 = vpop.f32.mrf.mxu0
        %v590 = vadd.f32 %v500, %v589
        %v591 = vpop.f32.mrf.mxu0
        %v592 = vadd.f32 %v500, %v591
        %593 = vmatmul.bf16.gmra.mxu0 %v469
        %v594 = vpop.f32.mrf.mxu0
        %v595 = vadd.f32 %v500, %v594
        %v596 = vpop.f32.mrf.mxu0
        %v597 = vadd.f32 %v500, %v596
        %598 = vmatmul.bf16.gmra.mxu0 %v470
        %v599 = vpop.f32.mrf.mxu0
        %v600 = vadd.f32 %v500, %v599
        %v601 = vpop.f32.mrf.mxu0
        %v602 = vadd.f32 %v500, %v601
        %603 = vmatmul.bf16.gmra.mxu0 %v471
        %v604 = vpop.f32.mrf.mxu0
        %v605 = vadd.f32 %v500, %v604
        %v606 = vpop.f32.mrf.mxu0
        %v607 = vadd.f32 %v500, %v606
        %608 = vmatmul.bf16.gmra.mxu0 %v472
        %v609 = vpop.f32.mrf.mxu0
        %v610 = vadd.f32 %v500, %v609
        %v611 = vpop.f32.mrf.mxu0
        %v612 = vadd.f32 %v500, %v611
        %613 = vmatmul.bf16.gmra.mxu0 %v473
        %v614 = vpop.f32.mrf.mxu0
        %v615 = vadd.f32 %v500, %v614
        %v616 = vpop.f32.mrf.mxu0
        %v617 = vadd.f32 %v500, %v616
        %618 = vmatmul.bf16.gmra.mxu0 %v474
        %v619 = vpop.f32.mrf.mxu0
        %v620 = vadd.f32 %v500, %v619
        %v621 = vpop.f32.mrf.mxu0
        %v622 = vadd.f32 %v500, %v621
        %623 = vmatmul.bf16.gmra.mxu0 %v475
        %v624 = vpop.f32.mrf.mxu0
        %v625 = vadd.f32 %v500, %v624
        %v626 = vpop.f32.mrf.mxu0
        %v627 = vadd.f32 %v500, %v626
        %628 = vmatmul.bf16.gmra.mxu0 %v476
        %v629 = vpop.f32.mrf.mxu0
        %v630 = vadd.f32 %v500, %v629
        %v631 = vpop.f32.mrf.mxu0
        %v632 = vadd.f32 %v500, %v631
        %633 = vmatmul.bf16.gmra.mxu0 %v477
        %v634 = vpop.f32.mrf.mxu0
        %v635 = vadd.f32 %v500, %v634
        %v636 = vpop.f32.mrf.mxu0
        %v637 = vadd.f32 %v500, %v636
        %638 = vdwg.mxu0
        %vm639 = vcmp.gt.f32.partialorder %v560, 0.0
        %vm640 = vcmp.gt.f32.partialorder %v562, 0.0
        %vm641 = vcmp.gt.f32.partialorder %v565, 0.0
        %vm642 = vcmp.gt.f32.partialorder %v567, 0.0
        %vm643 = vcmp.gt.f32.partialorder %v570, 0.0
        %vm644 = vcmp.gt.f32.partialorder %v572, 0.0
        %vm645 = vcmp.gt.f32.partialorder %v575, 0.0
        %vm646 = vcmp.gt.f32.partialorder %v577, 0.0
        %vm647 = vcmp.gt.f32.partialorder %v580, 0.0
        %vm648 = vcmp.gt.f32.partialorder %v582, 0.0
        %vm649 = vcmp.gt.f32.partialorder %v585, 0.0
        %vm650 = vcmp.gt.f32.partialorder %v587, 0.0
        %vm651 = vcmp.gt.f32.partialorder %v590, 0.0
        %vm652 = vcmp.gt.f32.partialorder %v592, 0.0
        %vm653 = vcmp.gt.f32.partialorder %v595, 0.0
        %vm654 = vcmp.gt.f32.partialorder %v597, 0.0
        %vm655 = vcmp.gt.f32.partialorder %v600, 0.0
        %vm656 = vcmp.gt.f32.partialorder %v602, 0.0
        %vm657 = vcmp.gt.f32.partialorder %v605, 0.0
        %vm658 = vcmp.gt.f32.partialorder %v607, 0.0
        %vm659 = vcmp.gt.f32.partialorder %v610, 0.0
        %vm660 = vcmp.gt.f32.partialorder %v612, 0.0
        %vm661 = vcmp.gt.f32.partialorder %v615, 0.0
        %vm662 = vcmp.gt.f32.partialorder %v617, 0.0
        %vm663 = vcmp.gt.f32.partialorder %v620, 0.0
        %vm664 = vcmp.gt.f32.partialorder %v622, 0.0
        %vm665 = vcmp.gt.f32.partialorder %v625, 0.0
        %vm666 = vcmp.gt.f32.partialorder %v627, 0.0
        %vm667 = vcmp.gt.f32.partialorder %v630, 0.0
        %vm668 = vcmp.gt.f32.partialorder %v632, 0.0
        %vm669 = vcmp.gt.f32.partialorder %v635, 0.0
        %vm670 = vcmp.gt.f32.partialorder %v637, 0.0
        %v671 = vmul.f32 %v560, 0.1
        %v672 = vmul.f32 %v562, 0.1
        %v673 = vmul.f32 %v565, 0.1
        %v674 = vmul.f32 %v567, 0.1
        %v675 = vmul.f32 %v570, 0.1
        %v676 = vmul.f32 %v572, 0.1
        %v677 = vmul.f32 %v575, 0.1
        %v678 = vmul.f32 %v577, 0.1
        %v679 = vmul.f32 %v580, 0.1
        %v680 = vmul.f32 %v582, 0.1
        %v681 = vmul.f32 %v585, 0.1
        %v682 = vmul.f32 %v587, 0.1
        %v683 = vmul.f32 %v590, 0.1
        %v684 = vmul.f32 %v592, 0.1
        %v685 = vmul.f32 %v595, 0.1
        %v686 = vmul.f32 %v597, 0.1
        %v687 = vmul.f32 %v600, 0.1
        %v688 = vmul.f32 %v602, 0.1
        %v689 = vmul.f32 %v605, 0.1
        %v690 = vmul.f32 %v607, 0.1
        %v691 = vmul.f32 %v610, 0.1
        %v692 = vmul.f32 %v612, 0.1
        %v693 = vmul.f32 %v615, 0.1
        %v694 = vmul.f32 %v617, 0.1
        %v695 = vmul.f32 %v620, 0.1
        %v696 = vmul.f32 %v622, 0.1
        %v697 = vmul.f32 %v625, 0.1
        %v698 = vmul.f32 %v627, 0.1
        %v699 = vmul.f32 %v630, 0.1
        %v700 = vmul.f32 %v632, 0.1
        %v701 = vmul.f32 %v635, 0.1
        %v702 = vmul.f32 %v637, 0.1
        %v703 = vsel %vm639, %v560, %v671
        %v704 = vsel %vm640, %v562, %v672
        %v705 = vsel %vm641, %v565, %v673
        %v706 = vsel %vm642, %v567, %v674
        %v707 = vsel %vm643, %v570, %v675
        %v708 = vsel %vm644, %v572, %v676
        %v709 = vsel %vm645, %v575, %v677
        %v710 = vsel %vm646, %v577, %v678
        %v711 = vsel %vm647, %v580, %v679
        %v712 = vsel %vm648, %v582, %v680
        %v713 = vsel %vm649, %v585, %v681
        %v714 = vsel %vm650, %v587, %v682
        %v715 = vsel %vm651, %v590, %v683
        %v716 = vsel %vm652, %v592, %v684
        %v717 = vsel %vm653, %v595, %v685
        %v718 = vsel %vm654, %v597, %v686
        %v719 = vsel %vm655, %v600, %v687
        %v720 = vsel %vm656, %v602, %v688
        %v721 = vsel %vm657, %v605, %v689
        %v722 = vsel %vm658, %v607, %v690
        %v723 = vsel %vm659, %v610, %v691
        %v724 = vsel %vm660, %v612, %v692
        %v725 = vsel %vm661, %v615, %v693
        %v726 = vsel %vm662, %v617, %v694
        %v727 = vsel %vm663, %v620, %v695
        %v728 = vsel %vm664, %v622, %v696
        %v729 = vsel %vm665, %v625, %v697
        %v730 = vsel %vm666, %v627, %v698
        %v731 = vsel %vm667, %v630, %v699
        %v732 = vsel %vm668, %v632, %v700
        %v733 = vsel %vm669, %v635, %v701
        %v734 = vsel %vm670, %v637, %v702
        %v735 = vpack.c.bf16 %v703, %v703
        %v736 = vpack.c.bf16 %v704, %v704
        %v737 = vpack.c.bf16 %v705, %v705
        %v738 = vpack.c.bf16 %v706, %v706
        %v739 = vpack.c.bf16 %v707, %v707
        %v740 = vpack.c.bf16 %v708, %v708
        %v741 = vpack.c.bf16 %v709, %v709
        %v742 = vpack.c.bf16 %v710, %v710
        %v743 = vpack.c.bf16 %v711, %v711
        %v744 = vpack.c.bf16 %v712, %v712
        %v745 = vpack.c.bf16 %v713, %v713
        %v746 = vpack.c.bf16 %v714, %v714
        %v747 = vpack.c.bf16 %v715, %v715
        %v748 = vpack.c.bf16 %v716, %v716
        %v749 = vpack.c.bf16 %v717, %v717
        %v750 = vpack.c.bf16 %v718, %v718
        %v751 = vpack.c.bf16 %v719, %v719
        %v752 = vpack.c.bf16 %v720, %v720
        %v753 = vpack.c.bf16 %v721, %v721
        %v754 = vpack.c.bf16 %v722, %v722
        %v755 = vpack.c.bf16 %v723, %v723
        %v756 = vpack.c.bf16 %v724, %v724
        %v757 = vpack.c.bf16 %v725, %v725
        %v758 = vpack.c.bf16 %v726, %v726
        %v759 = vpack.c.bf16 %v727, %v727
        %v760 = vpack.c.bf16 %v728, %v728
        %v761 = vpack.c.bf16 %v729, %v729
        %v762 = vpack.c.bf16 %v730, %v730
        %v763 = vpack.c.bf16 %v731, %v731
        %v764 = vpack.c.bf16 %v732, %v732
        %v765 = vpack.c.bf16 %v733, %v733
        %v766 = vpack.c.bf16 %v734, %v734
        %vm767 = vsmask.f32 256
        %vm768 = vsmask.f32 4368
        %vm769 = vmor %vm767, %vm768
        %v771 = vshrl.u32 %v735, 16
        %v773 = vrot.slane %v771, 7
        %v774 = vshll.u32 %v735, 16
        %v776 = vor.u32 %v773, %v774
        %v777 = vrot.slane %v773, 4
        %v779 = vshrl.u32 %v736, 16
        %v781 = vrot.slane %v779, 7
        %v782 = vshll.u32 %v736, 16
        %v784 = vor.u32 %v781, %v782
        %v785 = vsel %vm769, %v777, %v784
        %v786 = vrot.slane %v781, 4
        %v788 = vshrl.u32 %v737, 16
        %v790 = vrot.slane %v788, 7
        %v791 = vshll.u32 %v737, 16
        %v793 = vor.u32 %v790, %v791
        %v794 = vrot.slane %v790, 4
        %v796 = vshrl.u32 %v738, 16
        %v798 = vrot.slane %v796, 7
        %v799 = vshll.u32 %v738, 16
        %v801 = vor.u32 %v798, %v799
        %v802 = vsel %vm769, %v794, %v801
        %v803 = vrot.slane %v798, 4
        %v805 = vshrl.u32 %v739, 16
        %v807 = vrot.slane %v805, 7
        %v808 = vshll.u32 %v739, 16
        %v810 = vor.u32 %v807, %v808
        %v811 = vrot.slane %v807, 4
        %v813 = vshrl.u32 %v740, 16
        %v815 = vrot.slane %v813, 7
        %v816 = vshll.u32 %v740, 16
        %v818 = vor.u32 %v815, %v816
        %v819 = vsel %vm769, %v811, %v818
        %v820 = vrot.slane %v815, 4
        %v822 = vshrl.u32 %v741, 16
        %v824 = vrot.slane %v822, 7
        %v825 = vshll.u32 %v741, 16
        %v827 = vor.u32 %v824, %v825
        %v828 = vrot.slane %v824, 4
        %v830 = vshrl.u32 %v742, 16
        %v832 = vrot.slane %v830, 7
        %v833 = vshll.u32 %v742, 16
        %v835 = vor.u32 %v832, %v833
        %v836 = vsel %vm769, %v828, %v835
        %v837 = vrot.slane %v832, 4
        %v839 = vshrl.u32 %v743, 16
        %v841 = vrot.slane %v839, 7
        %v842 = vshll.u32 %v743, 16
        %v844 = vor.u32 %v841, %v842
        %v845 = vrot.slane %v841, 4
        %v847 = vshrl.u32 %v744, 16
        %v849 = vrot.slane %v847, 7
        %v850 = vshll.u32 %v744, 16
        %v852 = vor.u32 %v849, %v850
        %v853 = vsel %vm769, %v845, %v852
        %v854 = vrot.slane %v849, 4
        %v856 = vshrl.u32 %v745, 16
        %v858 = vrot.slane %v856, 7
        %v859 = vshll.u32 %v745, 16
        %v861 = vor.u32 %v858, %v859
        %v862 = vrot.slane %v858, 4
        %v864 = vshrl.u32 %v746, 16
        %v866 = vrot.slane %v864, 7
        %v867 = vshll.u32 %v746, 16
        %v869 = vor.u32 %v866, %v867
        %v870 = vsel %vm769, %v862, %v869
        %v871 = vrot.slane %v866, 4
        %v873 = vshrl.u32 %v747, 16
        %v875 = vrot.slane %v873, 7
        %v876 = vshll.u32 %v747, 16
        %v878 = vor.u32 %v875, %v876
        %v879 = vrot.slane %v875, 4
        %v881 = vshrl.u32 %v748, 16
        %v883 = vrot.slane %v881, 7
        %v884 = vshll.u32 %v748, 16
        %v886 = vor.u32 %v883, %v884
        %v887 = vsel %vm769, %v879, %v886
        %v888 = vrot.slane %v883, 4
        %v890 = vshrl.u32 %v749, 16
        %v892 = vrot.slane %v890, 7
        %v893 = vshll.u32 %v749, 16
        %v895 = vor.u32 %v892, %v893
        %v896 = vrot.slane %v892, 4
        %v898 = vshrl.u32 %v750, 16
        %v900 = vrot.slane %v898, 7
        %v901 = vshll.u32 %v750, 16
        %v903 = vor.u32 %v900, %v901
        %v904 = vsel %vm769, %v896, %v903
        %v905 = vrot.slane %v900, 4
        %v907 = vshrl.u32 %v751, 16
        %v909 = vrot.slane %v907, 7
        %v910 = vshll.u32 %v751, 16
        %v912 = vor.u32 %v909, %v910
        %v913 = vrot.slane %v909, 4
        %v915 = vshrl.u32 %v752, 16
        %v917 = vrot.slane %v915, 7
        %v918 = vshll.u32 %v752, 16
        %v920 = vor.u32 %v917, %v918
        %v921 = vsel %vm769, %v913, %v920
        %v922 = vrot.slane %v917, 4
        %v924 = vshrl.u32 %v753, 16
        %v926 = vrot.slane %v924, 7
        %v927 = vshll.u32 %v753, 16
        %v929 = vor.u32 %v926, %v927
        %v930 = vrot.slane %v926, 4
        %v932 = vshrl.u32 %v754, 16
        %v934 = vrot.slane %v932, 7
        %v935 = vshll.u32 %v754, 16
        %v937 = vor.u32 %v934, %v935
        %v938 = vsel %vm769, %v930, %v937
        %v939 = vrot.slane %v934, 4
        %v941 = vshrl.u32 %v755, 16
        %v943 = vrot.slane %v941, 7
        %v944 = vshll.u32 %v755, 16
        %v946 = vor.u32 %v943, %v944
        %v947 = vrot.slane %v943, 4
        %v949 = vshrl.u32 %v756, 16
        %v951 = vrot.slane %v949, 7
        %v952 = vshll.u32 %v756, 16
        %v954 = vor.u32 %v951, %v952
        %v955 = vsel %vm769, %v947, %v954
        %v956 = vrot.slane %v951, 4
        %v958 = vshrl.u32 %v757, 16
        %v960 = vrot.slane %v958, 7
        %v961 = vshll.u32 %v757, 16
        %v963 = vor.u32 %v960, %v961
        %v964 = vrot.slane %v960, 4
        %v966 = vshrl.u32 %v758, 16
        %v968 = vrot.slane %v966, 7
        %v969 = vshll.u32 %v758, 16
        %v971 = vor.u32 %v968, %v969
        %v972 = vsel %vm769, %v964, %v971
        %v973 = vrot.slane %v968, 4
        %v975 = vshrl.u32 %v759, 16
        %v977 = vrot.slane %v975, 7
        %v978 = vshll.u32 %v759, 16
        %v980 = vor.u32 %v977, %v978
        %v981 = vrot.slane %v977, 4
        %v983 = vshrl.u32 %v760, 16
        %v985 = vrot.slane %v983, 7
        %v986 = vshll.u32 %v760, 16
        %v988 = vor.u32 %v985, %v986
        %v989 = vsel %vm769, %v981, %v988
        %v990 = vrot.slane %v985, 4
        %v992 = vshrl.u32 %v761, 16
        %v994 = vrot.slane %v992, 7
        %v995 = vshll.u32 %v761, 16
        %v997 = vor.u32 %v994, %v995
        %v998 = vrot.slane %v994, 4
        %v1000 = vshrl.u32 %v762, 16
        %v1002 = vrot.slane %v1000, 7
        %v1003 = vshll.u32 %v762, 16
        %v1005 = vor.u32 %v1002, %v1003
        %v1006 = vsel %vm769, %v998, %v1005
        %v1007 = vrot.slane %v1002, 4
        %v1009 = vshrl.u32 %v763, 16
        %v1011 = vrot.slane %v1009, 7
        %v1012 = vshll.u32 %v763, 16
        %v1014 = vor.u32 %v1011, %v1012
        %v1015 = vrot.slane %v1011, 4
        %v1017 = vshrl.u32 %v764, 16
        %v1019 = vrot.slane %v1017, 7
        %v1020 = vshll.u32 %v764, 16
        %v1022 = vor.u32 %v1019, %v1020
        %v1023 = vsel %vm769, %v1015, %v1022
        %v1024 = vrot.slane %v1019, 4
        %v1026 = vshrl.u32 %v765, 16
        %v1028 = vrot.slane %v1026, 7
        %v1029 = vshll.u32 %v765, 16
        %v1031 = vor.u32 %v1028, %v1029
        %v1032 = vrot.slane %v1028, 4
        %v1034 = vshrl.u32 %v766, 16
        %v1036 = vrot.slane %v1034, 7
        %v1037 = vshll.u32 %v766, 16
        %v1039 = vor.u32 %v1036, %v1037
        %v1040 = vsel %vm769, %v1032, %v1039
        %v1041 = vrot.slane %v1036, 4
        %s1090 = scalar_lea.vmem [#allocation2], 12
        %vm1091 = vcmask 1043456
        %vm1092 = vsmask.f32 7938
        %vm1093 = vmand %vm1091, %vm1092
        %v1094 = vld [vmem:[%s1090] sm:$0xf]
        %v1095 = vsel %vm1093, %v776, %v1094
        %1096 = vst [vmem:[%s1090] sm:$0xf] %v1095
        %1097 = vst [vmem:[%s1090 + $0x4] sm:$0xf] %v785
        %vm1098 = vcmask 1040384
        %vm1099 = vmand %vm1098, %vm767
        %v1100 = vld [vmem:[%s1090 + $0x8] sm:$0x1]
        %v1101 = vsel %vm1099, %v786, %v1100
        %1102 = vst [vmem:[%s1090 + $0x8] sm:$0x1] %v1101
        %v1103 = vld [vmem:[%s1090 + $0xc] sm:$0xf]
        %v1104 = vsel %vm1093, %v793, %v1103
        %1105 = vst [vmem:[%s1090 + $0xc] sm:$0xf] %v1104
        %1106 = vst [vmem:[%s1090 + $0x10] sm:$0xf] %v802
        %v1107 = vld [vmem:[%s1090 + $0x14] sm:$0x1]
        %v1108 = vsel %vm1099, %v803, %v1107
        %1109 = vst [vmem:[%s1090 + $0x14] sm:$0x1] %v1108
        %v1110 = vld [vmem:[%s1090 + $0x18] sm:$0xf]
        %v1111 = vsel %vm1093, %v810, %v1110
        %1112 = vst [vmem:[%s1090 + $0x18] sm:$0xf] %v1111
        %1113 = vst [vmem:[%s1090 + $0x1c] sm:$0xf] %v819
        %v1114 = vld [vmem:[%s1090 + $0x20] sm:$0x1]
        %v1115 = vsel %vm1099, %v820, %v1114
        %1116 = vst [vmem:[%s1090 + $0x20] sm:$0x1] %v1115
        %v1117 = vld [vmem:[%s1090 + $0x24] sm:$0xf]
        %v1118 = vsel %vm1093, %v827, %v1117
        %1119 = vst [vmem:[%s1090 + $0x24] sm:$0xf] %v1118
        %1120 = vst [vmem:[%s1090 + $0x28] sm:$0xf] %v836
        %v1121 = vld [vmem:[%s1090 + $0x2c] sm:$0x1]
        %v1122 = vsel %vm1099, %v837, %v1121
        %1123 = vst [vmem:[%s1090 + $0x2c] sm:$0x1] %v1122
        %v1124 = vld [vmem:[%s1090 + $0x30] sm:$0xf]
        %v1125 = vsel %vm1093, %v844, %v1124
        %1126 = vst [vmem:[%s1090 + $0x30] sm:$0xf] %v1125
        %1127 = vst [vmem:[%s1090 + $0x34] sm:$0xf] %v853
        %v1128 = vld [vmem:[%s1090 + $0x38] sm:$0x1]
        %v1129 = vsel %vm1099, %v854, %v1128
        %1130 = vst [vmem:[%s1090 + $0x38] sm:$0x1] %v1129
        %v1131 = vld [vmem:[%s1090 + $0x3c] sm:$0xf]
        %v1132 = vsel %vm1093, %v861, %v1131
        %1133 = vst [vmem:[%s1090 + $0x3c] sm:$0xf] %v1132
        %1134 = vst [vmem:[%s1090 + $0x40] sm:$0xf] %v870
        %v1135 = vld [vmem:[%s1090 + $0x44] sm:$0x1]
        %v1136 = vsel %vm1099, %v871, %v1135
        %1137 = vst [vmem:[%s1090 + $0x44] sm:$0x1] %v1136
        %v1138 = vld [vmem:[%s1090 + $0x48] sm:$0xf]
        %v1139 = vsel %vm1093, %v878, %v1138
        %1140 = vst [vmem:[%s1090 + $0x48] sm:$0xf] %v1139
        %1141 = vst [vmem:[%s1090 + $0x4c] sm:$0xf] %v887
        %v1142 = vld [vmem:[%s1090 + $0x50] sm:$0x1]
        %v1143 = vsel %vm1099, %v888, %v1142
        %1144 = vst [vmem:[%s1090 + $0x50] sm:$0x1] %v1143
        %v1145 = vld [vmem:[%s1090 + $0x54] sm:$0xf]
        %v1146 = vsel %vm1093, %v895, %v1145
        %1147 = vst [vmem:[%s1090 + $0x54] sm:$0xf] %v1146
        %1148 = vst [vmem:[%s1090 + $0x58] sm:$0xf] %v904
        %v1149 = vld [vmem:[%s1090 + $0x5c] sm:$0x1]
        %v1150 = vsel %vm1099, %v905, %v1149
        %1151 = vst [vmem:[%s1090 + $0x5c] sm:$0x1] %v1150
        %v1152 = vld [vmem:[%s1090 + $0x60] sm:$0xf]
        %v1153 = vsel %vm1093, %v912, %v1152
        %1154 = vst [vmem:[%s1090 + $0x60] sm:$0xf] %v1153
        %1155 = vst [vmem:[%s1090 + $0x64] sm:$0xf] %v921
        %v1156 = vld [vmem:[%s1090 + $0x68] sm:$0x1]
        %v1157 = vsel %vm1099, %v922, %v1156
        %1158 = vst [vmem:[%s1090 + $0x68] sm:$0x1] %v1157
        %v1159 = vld [vmem:[%s1090 + $0x6c] sm:$0xf]
        %v1160 = vsel %vm1093, %v929, %v1159
        %1161 = vst [vmem:[%s1090 + $0x6c] sm:$0xf] %v1160
        %1162 = vst [vmem:[%s1090 + $0x70] sm:$0xf] %v938
        %v1163 = vld [vmem:[%s1090 + $0x74] sm:$0x1]
        %v1164 = vsel %vm1099, %v939, %v1163
        %1165 = vst [vmem:[%s1090 + $0x74] sm:$0x1] %v1164
        %v1166 = vld [vmem:[%s1090 + $0x78] sm:$0xf]
        %v1167 = vsel %vm1093, %v946, %v1166
        %1168 = vst [vmem:[%s1090 + $0x78] sm:$0xf] %v1167
        %1169 = vst [vmem:[%s1090 + $0x7c] sm:$0xf] %v955
        %v1170 = vld [vmem:[%s1090 + $0x80] sm:$0x1]
        %v1171 = vsel %vm1099, %v956, %v1170
        %1172 = vst [vmem:[%s1090 + $0x80] sm:$0x1] %v1171
        %v1173 = vld [vmem:[%s1090 + $0x84] sm:$0xf]
        %v1174 = vsel %vm1093, %v963, %v1173
        %1175 = vst [vmem:[%s1090 + $0x84] sm:$0xf] %v1174
        %1176 = vst [vmem:[%s1090 + $0x88] sm:$0xf] %v972
        %v1177 = vld [vmem:[%s1090 + $0x8c] sm:$0x1]
        %v1178 = vsel %vm1099, %v973, %v1177
        %1179 = vst [vmem:[%s1090 + $0x8c] sm:$0x1] %v1178
        %v1180 = vld [vmem:[%s1090 + $0x90] sm:$0xf]
        %v1181 = vsel %vm1093, %v980, %v1180
        %1182 = vst [vmem:[%s1090 + $0x90] sm:$0xf] %v1181
        %1183 = vst [vmem:[%s1090 + $0x94] sm:$0xf] %v989
        %v1184 = vld [vmem:[%s1090 + $0x98] sm:$0x1]
        %v1185 = vsel %vm1099, %v990, %v1184
        %1186 = vst [vmem:[%s1090 + $0x98] sm:$0x1] %v1185
        %v1187 = vld [vmem:[%s1090 + $0x9c] sm:$0xf]
        %v1188 = vsel %vm1093, %v997, %v1187
        %1189 = vst [vmem:[%s1090 + $0x9c] sm:$0xf] %v1188
        %1190 = vst [vmem:[%s1090 + $0xa0] sm:$0xf] %v1006
        %v1191 = vld [vmem:[%s1090 + $0xa4] sm:$0x1]
        %v1192 = vsel %vm1099, %v1007, %v1191
        %1193 = vst [vmem:[%s1090 + $0xa4] sm:$0x1] %v1192
        %v1194 = vld [vmem:[%s1090 + $0xa8] sm:$0xf]
        %v1195 = vsel %vm1093, %v1014, %v1194
        %1196 = vst [vmem:[%s1090 + $0xa8] sm:$0xf] %v1195
        %1197 = vst [vmem:[%s1090 + $0xac] sm:$0xf] %v1023
        %v1198 = vld [vmem:[%s1090 + $0xb0] sm:$0x1]
        %v1199 = vsel %vm1099, %v1024, %v1198
        %1200 = vst [vmem:[%s1090 + $0xb0] sm:$0x1] %v1199
        %v1201 = vld [vmem:[%s1090 + $0xb4] sm:$0xf]
        %v1202 = vsel %vm1093, %v1031, %v1201
        %1203 = vst [vmem:[%s1090 + $0xb4] sm:$0xf] %v1202
        %1204 = vst [vmem:[%s1090 + $0xb8] sm:$0xf] %v1040
        %v1205 = vld [vmem:[%s1090 + $0xbc] sm:$0x1]
        %v1206 = vsel %vm1099, %v1041, %v1205
        %1207 = vst [vmem:[%s1090 + $0xbc] sm:$0x1] %v1206
        %v1208 = vld [vmem:[#allocation2] sm:$0xf]
        %v1209 = vld [vmem:[#allocation2 + $0x4] sm:$0xf]
        %v1210 = vld [vmem:[#allocation2 + $0xc] sm:$0xf]
        %v1211 = vld [vmem:[#allocation2 + $0x10] sm:$0xf]
        %v1212 = vld [vmem:[#allocation2 + $0x18] sm:$0xf]
        %v1213 = vld [vmem:[#allocation2 + $0x1c] sm:$0xf]
        %v1214 = vld [vmem:[#allocation2 + $0x24] sm:$0xf]
        %v1215 = vld [vmem:[#allocation2 + $0x28] sm:$0xf]
        %v1216 = vld [vmem:[#allocation2 + $0x30] sm:$0xf]
        %v1217 = vld [vmem:[#allocation2 + $0x34] sm:$0xf]
        %v1218 = vld [vmem:[#allocation2 + $0x3c] sm:$0xf]
        %v1219 = vld [vmem:[#allocation2 + $0x40] sm:$0xf]
        %v1220 = vld [vmem:[#allocation2 + $0x48] sm:$0xf]
        %v1221 = vld [vmem:[#allocation2 + $0x4c] sm:$0xf]
        %v1222 = vld [vmem:[#allocation2 + $0x54] sm:$0xf]
        %v1223 = vld [vmem:[#allocation2 + $0x58] sm:$0xf]
        %v1224 = vld [vmem:[#allocation2 + $0x60] sm:$0xf]
        %v1225 = vld [vmem:[#allocation2 + $0x64] sm:$0xf]
        %v1226 = vld [vmem:[#allocation2 + $0x6c] sm:$0xf]
        %v1227 = vld [vmem:[#allocation2 + $0x70] sm:$0xf]
        %v1228 = vld [vmem:[#allocation2 + $0x78] sm:$0xf]
        %v1229 = vld [vmem:[#allocation2 + $0x7c] sm:$0xf]
        %v1230 = vld [vmem:[#allocation2 + $0x84] sm:$0xf]
        %v1231 = vld [vmem:[#allocation2 + $0x88] sm:$0xf]
        %v1232 = vld [vmem:[#allocation2 + $0x90] sm:$0xf]
        %v1233 = vld [vmem:[#allocation2 + $0x94] sm:$0xf]
        %v1234 = vld [vmem:[#allocation2 + $0x9c] sm:$0xf]
        %v1235 = vld [vmem:[#allocation2 + $0xa0] sm:$0xf]
        %v1236 = vld [vmem:[#allocation2 + $0xa8] sm:$0xf]
        %v1237 = vld [vmem:[#allocation2 + $0xac] sm:$0xf]
        %v1238 = vld [vmem:[#allocation2 + $0xb4] sm:$0xf]
        %v1239 = vld [vmem:[#allocation2 + $0xb8] sm:$0xf]
        %s1240 = smul.u32 %s29, 9
        %s1241 = smul.u32 %s1240, 16
        %s1242 = smul.addr %s1241, 4
        %s1243 = scalar_lea.vmem [#allocation9], %s1242
        %v1244 = vld [vmem:[%s1243] sm:$0xf]
        %v1245 = vld [vmem:[%s1243 + $0x4] sm:$0xf]
        %v1246 = vld [vmem:[%s1243 + $0x8] sm:$0xf]
        %v1247 = vld [vmem:[%s1243 + $0xc] sm:$0xf]
        %v1248 = vld [vmem:[%s1243 + $0x10] sm:$0xf]
        %v1249 = vld [vmem:[%s1243 + $0x14] sm:$0xf]
        %v1250 = vld [vmem:[%s1243 + $0x18] sm:$0xf]
        %v1251 = vld [vmem:[%s1243 + $0x1c] sm:$0xf]
        %v1252 = vld [vmem:[%s1243 + $0x20] sm:$0xf]
        %v1253 = vld [vmem:[%s1243 + $0x24] sm:$0xf]
        %v1254 = vld [vmem:[%s1243 + $0x28] sm:$0xf]
        %v1255 = vld [vmem:[%s1243 + $0x2c] sm:$0xf]
        %v1256 = vld [vmem:[%s1243 + $0x30] sm:$0xf]
        %v1257 = vld [vmem:[%s1243 + $0x34] sm:$0xf]
        %v1258 = vld [vmem:[%s1243 + $0x38] sm:$0xf]
        %v1259 = vld [vmem:[%s1243 + $0x3c] sm:$0xf]
        %v1260 = vld [vmem:[#allocation2 + $0x8] sm:$0x1]
        %v1261 = vld [vmem:[#allocation2 + $0x14] sm:$0x1]
        %v1262 = vld [vmem:[#allocation2 + $0x20] sm:$0x1]
        %v1263 = vld [vmem:[#allocation2 + $0x2c] sm:$0x1]
        %v1264 = vld [vmem:[#allocation2 + $0x38] sm:$0x1]
        %v1265 = vld [vmem:[#allocation2 + $0x44] sm:$0x1]
        %v1266 = vld [vmem:[#allocation2 + $0x50] sm:$0x1]
        %v1267 = vld [vmem:[#allocation2 + $0x5c] sm:$0x1]
        %v1268 = vld [vmem:[#allocation2 + $0x68] sm:$0x1]
        %v1269 = vld [vmem:[#allocation2 + $0x74] sm:$0x1]
        %v1270 = vld [vmem:[#allocation2 + $0x80] sm:$0x1]
        %v1271 = vld [vmem:[#allocation2 + $0x8c] sm:$0x1]
        %v1272 = vld [vmem:[#allocation2 + $0x98] sm:$0x1]
        %v1273 = vld [vmem:[#allocation2 + $0xa4] sm:$0x1]
        %v1274 = vld [vmem:[#allocation2 + $0xb0] sm:$0x1]
        %v1275 = vld [vmem:[#allocation2 + $0xbc] sm:$0x1]
        %vm1276 = vsmask.f32 3328
        %vm1277 = vsmask.f32 7440
        %vm1278 = vmor %vm1276, %vm1277
        %v1280 = vshrl.u32 %v1208, 16
        %v1282 = vrot.slane %v1280, 4
        %v1283 = vshll.u32 %v1208, 16
        %v1285 = vrot.slane %v1283, 5
        %v1286 = vor.u32 %v1282, %v1285
        %v1287 = vrot.slane %v1286, 4
        %v1289 = vshll.u32 %v1209, 16
        %v1291 = vrot.slane %v1289, 5
        %v1292 = vsel %vm1278, %v1287, %v1291
        %v1293 = vshrl.u32 %v1209, 16
        %v1295 = vrot.slane %v1293, 4
        %v1296 = vor.u32 %v1295, %v1291
        %v1297 = vrot.slane %v1296, 4
        %v1299 = vshll.u32 %v1260, 16
        %v1301 = vrot.slane %v1299, 5
        %v1302 = vsel %vm1278, %v1297, %v1301
        %v1304 = vshrl.u32 %v1210, 16
        %v1306 = vrot.slane %v1304, 4
        %v1307 = vshll.u32 %v1210, 16
        %v1309 = vrot.slane %v1307, 5
        %v1310 = vor.u32 %v1306, %v1309
        %v1311 = vrot.slane %v1310, 4
        %v1313 = vshll.u32 %v1211, 16
        %v1315 = vrot.slane %v1313, 5
        %v1316 = vsel %vm1278, %v1311, %v1315
        %v1317 = vshrl.u32 %v1211, 16
        %v1319 = vrot.slane %v1317, 4
        %v1320 = vor.u32 %v1319, %v1315
        %v1321 = vrot.slane %v1320, 4
        %v1323 = vshll.u32 %v1261, 16
        %v1325 = vrot.slane %v1323, 5
        %v1326 = vsel %vm1278, %v1321, %v1325
        %v1328 = vshrl.u32 %v1212, 16
        %v1330 = vrot.slane %v1328, 4
        %v1331 = vshll.u32 %v1212, 16
        %v1333 = vrot.slane %v1331, 5
        %v1334 = vor.u32 %v1330, %v1333
        %v1335 = vrot.slane %v1334, 4
        %v1337 = vshll.u32 %v1213, 16
        %v1339 = vrot.slane %v1337, 5
        %v1340 = vsel %vm1278, %v1335, %v1339
        %v1341 = vshrl.u32 %v1213, 16
        %v1343 = vrot.slane %v1341, 4
        %v1344 = vor.u32 %v1343, %v1339
        %v1345 = vrot.slane %v1344, 4
        %v1347 = vshll.u32 %v1262, 16
        %v1349 = vrot.slane %v1347, 5
        %v1350 = vsel %vm1278, %v1345, %v1349
        %v1352 = vshrl.u32 %v1214, 16
        %v1354 = vrot.slane %v1352, 4
        %v1355 = vshll.u32 %v1214, 16
        %v1357 = vrot.slane %v1355, 5
        %v1358 = vor.u32 %v1354, %v1357
        %v1359 = vrot.slane %v1358, 4
        %v1361 = vshll.u32 %v1215, 16
        %v1363 = vrot.slane %v1361, 5
        %v1364 = vsel %vm1278, %v1359, %v1363
        %v1365 = vshrl.u32 %v1215, 16
        %v1367 = vrot.slane %v1365, 4
        %v1368 = vor.u32 %v1367, %v1363
        %v1369 = vrot.slane %v1368, 4
        %v1371 = vshll.u32 %v1263, 16
        %v1373 = vrot.slane %v1371, 5
        %v1374 = vsel %vm1278, %v1369, %v1373
        %v1376 = vshrl.u32 %v1216, 16
        %v1378 = vrot.slane %v1376, 4
        %v1379 = vshll.u32 %v1216, 16
        %v1381 = vrot.slane %v1379, 5
        %v1382 = vor.u32 %v1378, %v1381
        %v1383 = vrot.slane %v1382, 4
        %v1385 = vshll.u32 %v1217, 16
        %v1387 = vrot.slane %v1385, 5
        %v1388 = vsel %vm1278, %v1383, %v1387
        %v1389 = vshrl.u32 %v1217, 16
        %v1391 = vrot.slane %v1389, 4
        %v1392 = vor.u32 %v1391, %v1387
        %v1393 = vrot.slane %v1392, 4
        %v1395 = vshll.u32 %v1264, 16
        %v1397 = vrot.slane %v1395, 5
        %v1398 = vsel %vm1278, %v1393, %v1397
        %v1400 = vshrl.u32 %v1218, 16
        %v1402 = vrot.slane %v1400, 4
        %v1403 = vshll.u32 %v1218, 16
        %v1405 = vrot.slane %v1403, 5
        %v1406 = vor.u32 %v1402, %v1405
        %v1407 = vrot.slane %v1406, 4
        %v1409 = vshll.u32 %v1219, 16
        %v1411 = vrot.slane %v1409, 5
        %v1412 = vsel %vm1278, %v1407, %v1411
        %v1413 = vshrl.u32 %v1219, 16
        %v1415 = vrot.slane %v1413, 4
        %v1416 = vor.u32 %v1415, %v1411
        %v1417 = vrot.slane %v1416, 4
        %v1419 = vshll.u32 %v1265, 16
        %v1421 = vrot.slane %v1419, 5
        %v1422 = vsel %vm1278, %v1417, %v1421
        %v1424 = vshrl.u32 %v1220, 16
        %v1426 = vrot.slane %v1424, 4
        %v1427 = vshll.u32 %v1220, 16
        %v1429 = vrot.slane %v1427, 5
        %v1430 = vor.u32 %v1426, %v1429
        %v1431 = vrot.slane %v1430, 4
        %v1433 = vshll.u32 %v1221, 16
        %v1435 = vrot.slane %v1433, 5
        %v1436 = vsel %vm1278, %v1431, %v1435
        %v1437 = vshrl.u32 %v1221, 16
        %v1439 = vrot.slane %v1437, 4
        %v1440 = vor.u32 %v1439, %v1435
        %v1441 = vrot.slane %v1440, 4
        %v1443 = vshll.u32 %v1266, 16
        %v1445 = vrot.slane %v1443, 5
        %v1446 = vsel %vm1278, %v1441, %v1445
        %v1448 = vshrl.u32 %v1222, 16
        %v1450 = vrot.slane %v1448, 4
        %v1451 = vshll.u32 %v1222, 16
        %v1453 = vrot.slane %v1451, 5
        %v1454 = vor.u32 %v1450, %v1453
        %v1455 = vrot.slane %v1454, 4
        %v1457 = vshll.u32 %v1223, 16
        %v1459 = vrot.slane %v1457, 5
        %v1460 = vsel %vm1278, %v1455, %v1459
        %v1461 = vshrl.u32 %v1223, 16
        %v1463 = vrot.slane %v1461, 4
        %v1464 = vor.u32 %v1463, %v1459
        %v1465 = vrot.slane %v1464, 4
        %v1467 = vshll.u32 %v1267, 16
        %v1469 = vrot.slane %v1467, 5
        %v1470 = vsel %vm1278, %v1465, %v1469
        %v1472 = vshrl.u32 %v1224, 16
        %v1474 = vrot.slane %v1472, 4
        %v1475 = vshll.u32 %v1224, 16
        %v1477 = vrot.slane %v1475, 5
        %v1478 = vor.u32 %v1474, %v1477
        %v1479 = vrot.slane %v1478, 4
        %v1481 = vshll.u32 %v1225, 16
        %v1483 = vrot.slane %v1481, 5
        %v1484 = vsel %vm1278, %v1479, %v1483
        %v1485 = vshrl.u32 %v1225, 16
        %v1487 = vrot.slane %v1485, 4
        %v1488 = vor.u32 %v1487, %v1483
        %v1489 = vrot.slane %v1488, 4
        %v1491 = vshll.u32 %v1268, 16
        %v1493 = vrot.slane %v1491, 5
        %v1494 = vsel %vm1278, %v1489, %v1493
        %v1496 = vshrl.u32 %v1226, 16
        %v1498 = vrot.slane %v1496, 4
        %v1499 = vshll.u32 %v1226, 16
        %v1501 = vrot.slane %v1499, 5
        %v1502 = vor.u32 %v1498, %v1501
        %v1503 = vrot.slane %v1502, 4
        %v1505 = vshll.u32 %v1227, 16
        %v1507 = vrot.slane %v1505, 5
        %v1508 = vsel %vm1278, %v1503, %v1507
        %v1509 = vshrl.u32 %v1227, 16
        %v1511 = vrot.slane %v1509, 4
        %v1512 = vor.u32 %v1511, %v1507
        %v1513 = vrot.slane %v1512, 4
        %v1515 = vshll.u32 %v1269, 16
        %v1517 = vrot.slane %v1515, 5
        %v1518 = vsel %vm1278, %v1513, %v1517
        %v1520 = vshrl.u32 %v1228, 16
        %v1522 = vrot.slane %v1520, 4
        %v1523 = vshll.u32 %v1228, 16
        %v1525 = vrot.slane %v1523, 5
        %v1526 = vor.u32 %v1522, %v1525
        %v1527 = vrot.slane %v1526, 4
        %v1529 = vshll.u32 %v1229, 16
        %v1531 = vrot.slane %v1529, 5
        %v1532 = vsel %vm1278, %v1527, %v1531
        %v1533 = vshrl.u32 %v1229, 16
        %v1535 = vrot.slane %v1533, 4
        %v1536 = vor.u32 %v1535, %v1531
        %v1537 = vrot.slane %v1536, 4
        %v1539 = vshll.u32 %v1270, 16
        %v1541 = vrot.slane %v1539, 5
        %v1542 = vsel %vm1278, %v1537, %v1541
        %v1544 = vshrl.u32 %v1230, 16
        %v1546 = vrot.slane %v1544, 4
        %v1547 = vshll.u32 %v1230, 16
        %v1549 = vrot.slane %v1547, 5
        %v1550 = vor.u32 %v1546, %v1549
        %v1551 = vrot.slane %v1550, 4
        %v1553 = vshll.u32 %v1231, 16
        %v1555 = vrot.slane %v1553, 5
        %v1556 = vsel %vm1278, %v1551, %v1555
        %v1557 = vshrl.u32 %v1231, 16
        %v1559 = vrot.slane %v1557, 4
        %v1560 = vor.u32 %v1559, %v1555
        %v1561 = vrot.slane %v1560, 4
        %v1563 = vshll.u32 %v1271, 16
        %v1565 = vrot.slane %v1563, 5
        %v1566 = vsel %vm1278, %v1561, %v1565
        %v1568 = vshrl.u32 %v1232, 16
        %v1570 = vrot.slane %v1568, 4
        %v1571 = vshll.u32 %v1232, 16
        %v1573 = vrot.slane %v1571, 5
        %v1574 = vor.u32 %v1570, %v1573
        %v1575 = vrot.slane %v1574, 4
        %v1577 = vshll.u32 %v1233, 16
        %v1579 = vrot.slane %v1577, 5
        %v1580 = vsel %vm1278, %v1575, %v1579
        %v1581 = vshrl.u32 %v1233, 16
        %v1583 = vrot.slane %v1581, 4
        %v1584 = vor.u32 %v1583, %v1579
        %v1585 = vrot.slane %v1584, 4
        %v1587 = vshll.u32 %v1272, 16
        %v1589 = vrot.slane %v1587, 5
        %v1590 = vsel %vm1278, %v1585, %v1589
        %v1592 = vshrl.u32 %v1234, 16
        %v1594 = vrot.slane %v1592, 4
        %v1595 = vshll.u32 %v1234, 16
        %v1597 = vrot.slane %v1595, 5
        %v1598 = vor.u32 %v1594, %v1597
        %v1599 = vrot.slane %v1598, 4
        %v1601 = vshll.u32 %v1235, 16
        %v1603 = vrot.slane %v1601, 5
        %v1604 = vsel %vm1278, %v1599, %v1603
        %v1605 = vshrl.u32 %v1235, 16
        %v1607 = vrot.slane %v1605, 4
        %v1608 = vor.u32 %v1607, %v1603
        %v1609 = vrot.slane %v1608, 4
        %v1611 = vshll.u32 %v1273, 16
        %v1613 = vrot.slane %v1611, 5
        %v1614 = vsel %vm1278, %v1609, %v1613
        %v1616 = vshrl.u32 %v1236, 16
        %v1618 = vrot.slane %v1616, 4
        %v1619 = vshll.u32 %v1236, 16
        %v1621 = vrot.slane %v1619, 5
        %v1622 = vor.u32 %v1618, %v1621
        %v1623 = vrot.slane %v1622, 4
        %v1625 = vshll.u32 %v1237, 16
        %v1627 = vrot.slane %v1625, 5
        %v1628 = vsel %vm1278, %v1623, %v1627
        %v1629 = vshrl.u32 %v1237, 16
        %v1631 = vrot.slane %v1629, 4
        %v1632 = vor.u32 %v1631, %v1627
        %v1633 = vrot.slane %v1632, 4
        %v1635 = vshll.u32 %v1274, 16
        %v1637 = vrot.slane %v1635, 5
        %v1638 = vsel %vm1278, %v1633, %v1637
        %v1640 = vshrl.u32 %v1238, 16
        %v1642 = vrot.slane %v1640, 4
        %v1643 = vshll.u32 %v1238, 16
        %v1645 = vrot.slane %v1643, 5
        %v1646 = vor.u32 %v1642, %v1645
        %v1647 = vrot.slane %v1646, 4
        %v1649 = vshll.u32 %v1239, 16
        %v1651 = vrot.slane %v1649, 5
        %v1652 = vsel %vm1278, %v1647, %v1651
        %v1653 = vshrl.u32 %v1239, 16
        %v1655 = vrot.slane %v1653, 4
        %v1656 = vor.u32 %v1655, %v1651
        %v1657 = vrot.slane %v1656, 4
        %v1659 = vshll.u32 %v1275, 16
        %v1661 = vrot.slane %v1659, 5
        %v1662 = vsel %vm1278, %v1657, %v1661
        %s1663 = sadd.s32 %s1240, 1
        %s1664 = smul.u32 %s1663, 16
        %s1665 = smul.addr %s1664, 4
        %s1666 = scalar_lea.vmem [#allocation9], %s1665
        %v1667 = vld [vmem:[%s1666] sm:$0xf]
        %v1668 = vld [vmem:[%s1666 + $0x4] sm:$0xf]
        %v1669 = vld [vmem:[%s1666 + $0x8] sm:$0xf]
        %v1670 = vld [vmem:[%s1666 + $0xc] sm:$0xf]
        %v1671 = vld [vmem:[%s1666 + $0x10] sm:$0xf]
        %v1672 = vld [vmem:[%s1666 + $0x14] sm:$0xf]
        %v1673 = vld [vmem:[%s1666 + $0x18] sm:$0xf]
        %v1674 = vld [vmem:[%s1666 + $0x1c] sm:$0xf]
        %v1675 = vld [vmem:[%s1666 + $0x20] sm:$0xf]
        %v1676 = vld [vmem:[%s1666 + $0x24] sm:$0xf]
        %v1677 = vld [vmem:[%s1666 + $0x28] sm:$0xf]
        %v1678 = vld [vmem:[%s1666 + $0x2c] sm:$0xf]
        %v1679 = vld [vmem:[%s1666 + $0x30] sm:$0xf]
        %v1680 = vld [vmem:[%s1666 + $0x34] sm:$0xf]
        %v1681 = vld [vmem:[%s1666 + $0x38] sm:$0xf]
        %v1682 = vld [vmem:[%s1666 + $0x3c] sm:$0xf]
        %v1683 = vunpack.c.l.b16 %v1292
        %v1684 = vunpack.c.l.b16 %v1302
        %v1685 = vunpack.c.l.b16 %v1316
        %v1686 = vunpack.c.l.b16 %v1326
        %v1687 = vunpack.c.l.b16 %v1340
        %v1688 = vunpack.c.l.b16 %v1350
        %v1689 = vunpack.c.l.b16 %v1364
        %v1690 = vunpack.c.l.b16 %v1374
        %v1691 = vunpack.c.l.b16 %v1388
        %v1692 = vunpack.c.l.b16 %v1398
        %v1693 = vunpack.c.l.b16 %v1412
        %v1694 = vunpack.c.l.b16 %v1422
        %v1695 = vunpack.c.l.b16 %v1436
        %v1696 = vunpack.c.l.b16 %v1446
        %v1697 = vunpack.c.l.b16 %v1460
        %v1698 = vunpack.c.l.b16 %v1470
        %v1699 = vunpack.c.l.b16 %v1484
        %v1700 = vunpack.c.l.b16 %v1494
        %v1701 = vunpack.c.l.b16 %v1508
        %v1702 = vunpack.c.l.b16 %v1518
        %v1703 = vunpack.c.l.b16 %v1532
        %v1704 = vunpack.c.l.b16 %v1542
        %v1705 = vunpack.c.l.b16 %v1556
        %v1706 = vunpack.c.l.b16 %v1566
        %v1707 = vunpack.c.l.b16 %v1580
        %v1708 = vunpack.c.l.b16 %v1590
        %v1709 = vunpack.c.l.b16 %v1604
        %v1710 = vunpack.c.l.b16 %v1614
        %v1711 = vunpack.c.l.b16 %v1628
        %v1712 = vunpack.c.l.b16 %v1638
        %v1713 = vunpack.c.l.b16 %v1652
        %v1714 = vunpack.c.l.b16 %v1662
        %v1715 = vpack.c.b16 %v1684, %v1683
        %v1716 = vpack.c.b16 %v1686, %v1685
        %v1717 = vpack.c.b16 %v1688, %v1687
        %v1718 = vpack.c.b16 %v1690, %v1689
        %v1719 = vpack.c.b16 %v1692, %v1691
        %v1720 = vpack.c.b16 %v1694, %v1693
        %v1721 = vpack.c.b16 %v1696, %v1695
        %v1722 = vpack.c.b16 %v1698, %v1697
        %v1723 = vpack.c.b16 %v1700, %v1699
        %v1724 = vpack.c.b16 %v1702, %v1701
        %v1725 = vpack.c.b16 %v1704, %v1703
        %v1726 = vpack.c.b16 %v1706, %v1705
        %v1727 = vpack.c.b16 %v1708, %v1707
        %v1728 = vpack.c.b16 %v1710, %v1709
        %v1729 = vpack.c.b16 %v1712, %v1711
        %v1730 = vpack.c.b16 %v1714, %v1713
        %v1763 = vunpack.c.l.b16 %v1667
        %v1764 = vunpack.c.l.b16 %v1668
        %v1765 = vunpack.c.l.b16 %v1669
        %v1766 = vunpack.c.l.b16 %v1670
        %v1767 = vunpack.c.l.b16 %v1671
        %v1768 = vunpack.c.l.b16 %v1672
        %v1769 = vunpack.c.l.b16 %v1673
        %v1770 = vunpack.c.l.b16 %v1674
        %v1771 = vunpack.c.l.b16 %v1675
        %v1772 = vunpack.c.l.b16 %v1676
        %v1773 = vunpack.c.l.b16 %v1677
        %v1774 = vunpack.c.l.b16 %v1678
        %v1775 = vunpack.c.l.b16 %v1679
        %v1776 = vunpack.c.l.b16 %v1680
        %v1777 = vunpack.c.l.b16 %v1681
        %v1778 = vunpack.c.l.b16 %v1682
        %v1779 = vpack.c.b16 %v1764, %v1763
        %v1780 = vpack.c.b16 %v1766, %v1765
        %v1781 = vpack.c.b16 %v1768, %v1767
        %v1782 = vpack.c.b16 %v1770, %v1769
        %v1783 = vpack.c.b16 %v1772, %v1771
        %v1784 = vpack.c.b16 %v1774, %v1773
        %v1785 = vpack.c.b16 %v1776, %v1775
        %v1786 = vpack.c.b16 %v1778, %v1777
        %1795 = vmatpush.bf16.msra.mxu0 %v1786
        %1796 = vmatpush.bf16.msra.mxu0 %v1785
        %1797 = vmatpush.bf16.msra.mxu0 %v1784
        %1798 = vmatpush.bf16.msra.mxu0 %v1783
        %1799 = vmatpush.bf16.msra.mxu0 %v1782
        %1800 = vmatpush.bf16.msra.mxu0 %v1781
        %1801 = vmatpush.bf16.msra.mxu0 %v1780
        %1802 = vmatpush.bf16.msra.mxu0 %v1779
        %1803 = vmatmul.bf16.gmra.mxu0 %v1715
        %v1804 = vpop.f32.mrf.mxu0
        %v1805 = vadd.f32 0.0, %v1804
        %v1806 = vpop.f32.mrf.mxu0
        %v1807 = vadd.f32 0.0, %v1806
        %1808 = vmatmul.bf16.gmra.mxu0 %v1716
        %v1809 = vpop.f32.mrf.mxu0
        %v1810 = vadd.f32 0.0, %v1809
        %v1811 = vpop.f32.mrf.mxu0
        %v1812 = vadd.f32 0.0, %v1811
        %1813 = vmatmul.bf16.gmra.mxu0 %v1717
        %v1814 = vpop.f32.mrf.mxu0
        %v1815 = vadd.f32 0.0, %v1814
        %v1816 = vpop.f32.mrf.mxu0
        %v1817 = vadd.f32 0.0, %v1816
        %1818 = vmatmul.bf16.gmra.mxu0 %v1718
        %v1819 = vpop.f32.mrf.mxu0
        %v1820 = vadd.f32 0.0, %v1819
        %v1821 = vpop.f32.mrf.mxu0
        %v1822 = vadd.f32 0.0, %v1821
        %1823 = vmatmul.bf16.gmra.mxu0 %v1719
        %v1824 = vpop.f32.mrf.mxu0
        %v1825 = vadd.f32 0.0, %v1824
        %v1826 = vpop.f32.mrf.mxu0
        %v1827 = vadd.f32 0.0, %v1826
        %1828 = vmatmul.bf16.gmra.mxu0 %v1720
        %v1829 = vpop.f32.mrf.mxu0
        %v1830 = vadd.f32 0.0, %v1829
        %v1831 = vpop.f32.mrf.mxu0
        %v1832 = vadd.f32 0.0, %v1831
        %1833 = vmatmul.bf16.gmra.mxu0 %v1721
        %v1834 = vpop.f32.mrf.mxu0
        %v1835 = vadd.f32 0.0, %v1834
        %v1836 = vpop.f32.mrf.mxu0
        %v1837 = vadd.f32 0.0, %v1836
        %1838 = vmatmul.bf16.gmra.mxu0 %v1722
        %v1839 = vpop.f32.mrf.mxu0
        %v1840 = vadd.f32 0.0, %v1839
        %v1841 = vpop.f32.mrf.mxu0
        %v1842 = vadd.f32 0.0, %v1841
        %1843 = vmatmul.bf16.gmra.mxu0 %v1723
        %v1844 = vpop.f32.mrf.mxu0
        %v1845 = vadd.f32 0.0, %v1844
        %v1846 = vpop.f32.mrf.mxu0
        %v1847 = vadd.f32 0.0, %v1846
        %1848 = vmatmul.bf16.gmra.mxu0 %v1724
        %v1849 = vpop.f32.mrf.mxu0
        %v1850 = vadd.f32 0.0, %v1849
        %v1851 = vpop.f32.mrf.mxu0
        %v1852 = vadd.f32 0.0, %v1851
        %1853 = vmatmul.bf16.gmra.mxu0 %v1725
        %v1854 = vpop.f32.mrf.mxu0
        %v1855 = vadd.f32 0.0, %v1854
        %v1856 = vpop.f32.mrf.mxu0
        %v1857 = vadd.f32 0.0, %v1856
        %1858 = vmatmul.bf16.gmra.mxu0 %v1726
        %v1859 = vpop.f32.mrf.mxu0
        %v1860 = vadd.f32 0.0, %v1859
        %v1861 = vpop.f32.mrf.mxu0
        %v1862 = vadd.f32 0.0, %v1861
        %1863 = vmatmul.bf16.gmra.mxu0 %v1727
        %v1864 = vpop.f32.mrf.mxu0
        %v1865 = vadd.f32 0.0, %v1864
        %v1866 = vpop.f32.mrf.mxu0
        %v1867 = vadd.f32 0.0, %v1866
        %1868 = vmatmul.bf16.gmra.mxu0 %v1728
        %v1869 = vpop.f32.mrf.mxu0
        %v1870 = vadd.f32 0.0, %v1869
        %v1871 = vpop.f32.mrf.mxu0
        %v1872 = vadd.f32 0.0, %v1871
        %1873 = vmatmul.bf16.gmra.mxu0 %v1729
        %v1874 = vpop.f32.mrf.mxu0
        %v1875 = vadd.f32 0.0, %v1874
        %v1876 = vpop.f32.mrf.mxu0
        %v1877 = vadd.f32 0.0, %v1876
        %1878 = vmatmul.bf16.gmra.mxu0 %v1730
        %v1879 = vpop.f32.mrf.mxu0
        %v1880 = vadd.f32 0.0, %v1879
        %v1881 = vpop.f32.mrf.mxu0
        %v1882 = vadd.f32 0.0, %v1881
        %1883 = vdwg.mxu0
        %v1916 = vunpack.c.l.b16 %v1208
        %v1917 = vunpack.c.l.b16 %v1209
        %v1918 = vunpack.c.l.b16 %v1210
        %v1919 = vunpack.c.l.b16 %v1211
        %v1920 = vunpack.c.l.b16 %v1212
        %v1921 = vunpack.c.l.b16 %v1213
        %v1922 = vunpack.c.l.b16 %v1214
        %v1923 = vunpack.c.l.b16 %v1215
        %v1924 = vunpack.c.l.b16 %v1216
        %v1925 = vunpack.c.l.b16 %v1217
        %v1926 = vunpack.c.l.b16 %v1218
        %v1927 = vunpack.c.l.b16 %v1219
        %v1928 = vunpack.c.l.b16 %v1220
        %v1929 = vunpack.c.l.b16 %v1221
        %v1930 = vunpack.c.l.b16 %v1222
        %v1931 = vunpack.c.l.b16 %v1223
        %v1932 = vunpack.c.l.b16 %v1224
        %v1933 = vunpack.c.l.b16 %v1225
        %v1934 = vunpack.c.l.b16 %v1226
        %v1935 = vunpack.c.l.b16 %v1227
        %v1936 = vunpack.c.l.b16 %v1228
        %v1937 = vunpack.c.l.b16 %v1229
        %v1938 = vunpack.c.l.b16 %v1230
        %v1939 = vunpack.c.l.b16 %v1231
        %v1940 = vunpack.c.l.b16 %v1232
        %v1941 = vunpack.c.l.b16 %v1233
        %v1942 = vunpack.c.l.b16 %v1234
        %v1943 = vunpack.c.l.b16 %v1235
        %v1944 = vunpack.c.l.b16 %v1236
        %v1945 = vunpack.c.l.b16 %v1237
        %v1946 = vunpack.c.l.b16 %v1238
        %v1947 = vunpack.c.l.b16 %v1239
        %v1948 = vpack.c.b16 %v1917, %v1916
        %v1949 = vpack.c.b16 %v1919, %v1918
        %v1950 = vpack.c.b16 %v1921, %v1920
        %v1951 = vpack.c.b16 %v1923, %v1922
        %v1952 = vpack.c.b16 %v1925, %v1924
        %v1953 = vpack.c.b16 %v1927, %v1926
        %v1954 = vpack.c.b16 %v1929, %v1928
        %v1955 = vpack.c.b16 %v1931, %v1930
        %v1956 = vpack.c.b16 %v1933, %v1932
        %v1957 = vpack.c.b16 %v1935, %v1934
        %v1958 = vpack.c.b16 %v1937, %v1936
        %v1959 = vpack.c.b16 %v1939, %v1938
        %v1960 = vpack.c.b16 %v1941, %v1940
        %v1961 = vpack.c.b16 %v1943, %v1942
        %v1962 = vpack.c.b16 %v1945, %v1944
        %v1963 = vpack.c.b16 %v1947, %v1946
        %v1996 = vunpack.c.l.b16 %v1244
        %v1997 = vunpack.c.l.b16 %v1245
        %v1998 = vunpack.c.l.b16 %v1246
        %v1999 = vunpack.c.l.b16 %v1247
        %v2000 = vunpack.c.l.b16 %v1248
        %v2001 = vunpack.c.l.b16 %v1249
        %v2002 = vunpack.c.l.b16 %v1250
        %v2003 = vunpack.c.l.b16 %v1251
        %v2004 = vunpack.c.l.b16 %v1252
        %v2005 = vunpack.c.l.b16 %v1253
        %v2006 = vunpack.c.l.b16 %v1254
        %v2007 = vunpack.c.l.b16 %v1255
        %v2008 = vunpack.c.l.b16 %v1256
        %v2009 = vunpack.c.l.b16 %v1257
        %v2010 = vunpack.c.l.b16 %v1258
        %v2011 = vunpack.c.l.b16 %v1259
        %v2012 = vpack.c.b16 %v1997, %v1996
        %v2013 = vpack.c.b16 %v1999, %v1998
        %v2014 = vpack.c.b16 %v2001, %v2000
        %v2015 = vpack.c.b16 %v2003, %v2002
        %v2016 = vpack.c.b16 %v2005, %v2004
        %v2017 = vpack.c.b16 %v2007, %v2006
        %v2018 = vpack.c.b16 %v2009, %v2008
        %v2019 = vpack.c.b16 %v2011, %v2010
        %2028 = vmatpush.bf16.msra.mxu0 %v2019
        %2029 = vmatpush.bf16.msra.mxu0 %v2018
        %2030 = vmatpush.bf16.msra.mxu0 %v2017
        %2031 = vmatpush.bf16.msra.mxu0 %v2016
        %2032 = vmatpush.bf16.msra.mxu0 %v2015
        %2033 = vmatpush.bf16.msra.mxu0 %v2014
        %2034 = vmatpush.bf16.msra.mxu0 %v2013
        %2035 = vmatpush.bf16.msra.mxu0 %v2012
        %2036 = vmatmul.bf16.gmra.mxu0 %v1948
        %v2037 = vpop.f32.mrf.mxu0
        %v2038 = vadd.f32 %v1805, %v2037
        %v2039 = vpop.f32.mrf.mxu0
        %v2040 = vadd.f32 %v1807, %v2039
        %2041 = vmatmul.bf16.gmra.mxu0 %v1949
        %v2042 = vpop.f32.mrf.mxu0
        %v2043 = vadd.f32 %v1810, %v2042
        %v2044 = vpop.f32.mrf.mxu0
        %v2045 = vadd.f32 %v1812, %v2044
        %2046 = vmatmul.bf16.gmra.mxu0 %v1950
        %v2047 = vpop.f32.mrf.mxu0
        %v2048 = vadd.f32 %v1815, %v2047
        %v2049 = vpop.f32.mrf.mxu0
        %v2050 = vadd.f32 %v1817, %v2049
        %2051 = vmatmul.bf16.gmra.mxu0 %v1951
        %v2052 = vpop.f32.mrf.mxu0
        %v2053 = vadd.f32 %v1820, %v2052
        %v2054 = vpop.f32.mrf.mxu0
        %v2055 = vadd.f32 %v1822, %v2054
        %2056 = vmatmul.bf16.gmra.mxu0 %v1952
        %v2057 = vpop.f32.mrf.mxu0
        %v2058 = vadd.f32 %v1825, %v2057
        %v2059 = vpop.f32.mrf.mxu0
        %v2060 = vadd.f32 %v1827, %v2059
        %2061 = vmatmul.bf16.gmra.mxu0 %v1953
        %v2062 = vpop.f32.mrf.mxu0
        %v2063 = vadd.f32 %v1830, %v2062
        %v2064 = vpop.f32.mrf.mxu0
        %v2065 = vadd.f32 %v1832, %v2064
        %2066 = vmatmul.bf16.gmra.mxu0 %v1954
        %v2067 = vpop.f32.mrf.mxu0
        %v2068 = vadd.f32 %v1835, %v2067
        %v2069 = vpop.f32.mrf.mxu0
        %v2070 = vadd.f32 %v1837, %v2069
        %2071 = vmatmul.bf16.gmra.mxu0 %v1955
        %v2072 = vpop.f32.mrf.mxu0
        %v2073 = vadd.f32 %v1840, %v2072
        %v2074 = vpop.f32.mrf.mxu0
        %v2075 = vadd.f32 %v1842, %v2074
        %2076 = vmatmul.bf16.gmra.mxu0 %v1956
        %v2077 = vpop.f32.mrf.mxu0
        %v2078 = vadd.f32 %v1845, %v2077
        %v2079 = vpop.f32.mrf.mxu0
        %v2080 = vadd.f32 %v1847, %v2079
        %2081 = vmatmul.bf16.gmra.mxu0 %v1957
        %v2082 = vpop.f32.mrf.mxu0
        %v2083 = vadd.f32 %v1850, %v2082
        %v2084 = vpop.f32.mrf.mxu0
        %v2085 = vadd.f32 %v1852, %v2084
        %2086 = vmatmul.bf16.gmra.mxu0 %v1958
        %v2087 = vpop.f32.mrf.mxu0
        %v2088 = vadd.f32 %v1855, %v2087
        %v2089 = vpop.f32.mrf.mxu0
        %v2090 = vadd.f32 %v1857, %v2089
        %2091 = vmatmul.bf16.gmra.mxu0 %v1959
        %v2092 = vpop.f32.mrf.mxu0
        %v2093 = vadd.f32 %v1860, %v2092
        %v2094 = vpop.f32.mrf.mxu0
        %v2095 = vadd.f32 %v1862, %v2094
        %2096 = vmatmul.bf16.gmra.mxu0 %v1960
        %v2097 = vpop.f32.mrf.mxu0
        %v2098 = vadd.f32 %v1865, %v2097
        %v2099 = vpop.f32.mrf.mxu0
        %v2100 = vadd.f32 %v1867, %v2099
        %2101 = vmatmul.bf16.gmra.mxu0 %v1961
        %v2102 = vpop.f32.mrf.mxu0
        %v2103 = vadd.f32 %v1870, %v2102
        %v2104 = vpop.f32.mrf.mxu0
        %v2105 = vadd.f32 %v1872, %v2104
        %2106 = vmatmul.bf16.gmra.mxu0 %v1962
        %v2107 = vpop.f32.mrf.mxu0
        %v2108 = vadd.f32 %v1875, %v2107
        %v2109 = vpop.f32.mrf.mxu0
        %v2110 = vadd.f32 %v1877, %v2109
        %2111 = vmatmul.bf16.gmra.mxu0 %v1963
        %v2112 = vpop.f32.mrf.mxu0
        %v2113 = vadd.f32 %v1880, %v2112
        %v2114 = vpop.f32.mrf.mxu0
        %v2115 = vadd.f32 %v1882, %v2114
        %2116 = vdwg.mxu0
        %v2117 = vld [vmem:[#allocation2] sm:$0xe]
        %v2118 = vld [vmem:[#allocation2 + $0xc] sm:$0xe]
        %v2119 = vld [vmem:[#allocation2 + $0x18] sm:$0xe]
        %v2120 = vld [vmem:[#allocation2 + $0x24] sm:$0xe]
        %v2121 = vld [vmem:[#allocation2 + $0x30] sm:$0xe]
        %v2122 = vld [vmem:[#allocation2 + $0x3c] sm:$0xe]
        %v2123 = vld [vmem:[#allocation2 + $0x48] sm:$0xe]
        %v2124 = vld [vmem:[#allocation2 + $0x54] sm:$0xe]
        %v2125 = vld [vmem:[#allocation2 + $0x60] sm:$0xe]
        %v2126 = vld [vmem:[#allocation2 + $0x6c] sm:$0xe]
        %v2127 = vld [vmem:[#allocation2 + $0x78] sm:$0xe]
        %v2128 = vld [vmem:[#allocation2 + $0x84] sm:$0xe]
        %v2129 = vld [vmem:[#allocation2 + $0x90] sm:$0xe]
        %v2130 = vld [vmem:[#allocation2 + $0x9c] sm:$0xe]
        %v2131 = vld [vmem:[#allocation2 + $0xa8] sm:$0xe]
        %v2132 = vld [vmem:[#allocation2 + $0xb4] sm:$0xe]
        %vm2165 = vcmask 1042432
        %vm2166 = vcmask 1046532
        %vm2167 = vmor %vm2165, %vm2166
        %v2168 = vrot.slane %v2117, 5
        %v2169 = vrot.slane %v2168, 4
        %v2170 = vrot.slane %v1209, 5
        %v2171 = vsel %vm2167, %v2169, %v2170
        %v2172 = vrot.slane %v2170, 4
        %v2173 = vrot.slane %v1260, 5
        %v2174 = vsel %vm2167, %v2172, %v2173
        %v2175 = vrot.slane %v2118, 5
        %v2176 = vrot.slane %v2175, 4
        %v2177 = vrot.slane %v1211, 5
        %v2178 = vsel %vm2167, %v2176, %v2177
        %v2179 = vrot.slane %v2177, 4
        %v2180 = vrot.slane %v1261, 5
        %v2181 = vsel %vm2167, %v2179, %v2180
        %v2182 = vrot.slane %v2119, 5
        %v2183 = vrot.slane %v2182, 4
        %v2184 = vrot.slane %v1213, 5
        %v2185 = vsel %vm2167, %v2183, %v2184
        %v2186 = vrot.slane %v2184, 4
        %v2187 = vrot.slane %v1262, 5
        %v2188 = vsel %vm2167, %v2186, %v2187
        %v2189 = vrot.slane %v2120, 5
        %v2190 = vrot.slane %v2189, 4
        %v2191 = vrot.slane %v1215, 5
        %v2192 = vsel %vm2167, %v2190, %v2191
        %v2193 = vrot.slane %v2191, 4
        %v2194 = vrot.slane %v1263, 5
        %v2195 = vsel %vm2167, %v2193, %v2194
        %v2196 = vrot.slane %v2121, 5
        %v2197 = vrot.slane %v2196, 4
        %v2198 = vrot.slane %v1217, 5
        %v2199 = vsel %vm2167, %v2197, %v2198
        %v2200 = vrot.slane %v2198, 4
        %v2201 = vrot.slane %v1264, 5
        %v2202 = vsel %vm2167, %v2200, %v2201
        %v2203 = vrot.slane %v2122, 5
        %v2204 = vrot.slane %v2203, 4
        %v2205 = vrot.slane %v1219, 5
        %v2206 = vsel %vm2167, %v2204, %v2205
        %v2207 = vrot.slane %v2205, 4
        %v2208 = vrot.slane %v1265, 5
        %v2209 = vsel %vm2167, %v2207, %v2208
        %v2210 = vrot.slane %v2123, 5
        %v2211 = vrot.slane %v2210, 4
        %v2212 = vrot.slane %v1221, 5
        %v2213 = vsel %vm2167, %v2211, %v2212
        %v2214 = vrot.slane %v2212, 4
        %v2215 = vrot.slane %v1266, 5
        %v2216 = vsel %vm2167, %v2214, %v2215
        %v2217 = vrot.slane %v2124, 5
        %v2218 = vrot.slane %v2217, 4
        %v2219 = vrot.slane %v1223, 5
        %v2220 = vsel %vm2167, %v2218, %v2219
        %v2221 = vrot.slane %v2219, 4
        %v2222 = vrot.slane %v1267, 5
        %v2223 = vsel %vm2167, %v2221, %v2222
        %v2224 = vrot.slane %v2125, 5
        %v2225 = vrot.slane %v2224, 4
        %v2226 = vrot.slane %v1225, 5
        %v2227 = vsel %vm2167, %v2225, %v2226
        %v2228 = vrot.slane %v2226, 4
        %v2229 = vrot.slane %v1268, 5
        %v2230 = vsel %vm2167, %v2228, %v2229
        %v2231 = vrot.slane %v2126, 5
        %v2232 = vrot.slane %v2231, 4
        %v2233 = vrot.slane %v1227, 5
        %v2234 = vsel %vm2167, %v2232, %v2233
        %v2235 = vrot.slane %v2233, 4
        %v2236 = vrot.slane %v1269, 5
        %v2237 = vsel %vm2167, %v2235, %v2236
        %v2238 = vrot.slane %v2127, 5
        %v2239 = vrot.slane %v2238, 4
        %v2240 = vrot.slane %v1229, 5
        %v2241 = vsel %vm2167, %v2239, %v2240
        %v2242 = vrot.slane %v2240, 4
        %v2243 = vrot.slane %v1270, 5
        %v2244 = vsel %vm2167, %v2242, %v2243
        %v2245 = vrot.slane %v2128, 5
        %v2246 = vrot.slane %v2245, 4
        %v2247 = vrot.slane %v1231, 5
        %v2248 = vsel %vm2167, %v2246, %v2247
        %v2249 = vrot.slane %v2247, 4
        %v2250 = vrot.slane %v1271, 5
        %v2251 = vsel %vm2167, %v2249, %v2250
        %v2252 = vrot.slane %v2129, 5
        %v2253 = vrot.slane %v2252, 4
        %v2254 = vrot.slane %v1233, 5
        %v2255 = vsel %vm2167, %v2253, %v2254
        %v2256 = vrot.slane %v2254, 4
        %v2257 = vrot.slane %v1272, 5
        %v2258 = vsel %vm2167, %v2256, %v2257
        %v2259 = vrot.slane %v2130, 5
        %v2260 = vrot.slane %v2259, 4
        %v2261 = vrot.slane %v1235, 5
        %v2262 = vsel %vm2167, %v2260, %v2261
        %v2263 = vrot.slane %v2261, 4
        %v2264 = vrot.slane %v1273, 5
        %v2265 = vsel %vm2167, %v2263, %v2264
        %v2266 = vrot.slane %v2131, 5
        %v2267 = vrot.slane %v2266, 4
        %v2268 = vrot.slane %v1237, 5
        %v2269 = vsel %vm2167, %v2267, %v2268
        %v2270 = vrot.slane %v2268, 4
        %v2271 = vrot.slane %v1274, 5
        %v2272 = vsel %vm2167, %v2270, %v2271
        %v2273 = vrot.slane %v2132, 5
        %v2274 = vrot.slane %v2273, 4
        %v2275 = vrot.slane %v1239, 5
        %v2276 = vsel %vm2167, %v2274, %v2275
        %v2277 = vrot.slane %v2275, 4
        %v2278 = vrot.slane %v1275, 5
        %v2279 = vsel %vm2167, %v2277, %v2278
        %s2280 = sadd.s32 %s1240, 2
        %s2281 = smul.u32 %s2280, 16
        %s2282 = smul.addr %s2281, 4
        %s2283 = scalar_lea.vmem [#allocation9], %s2282
        %v2284 = vld [vmem:[%s2283] sm:$0xf]
        %v2285 = vld [vmem:[%s2283 + $0x4] sm:$0xf]
        %v2286 = vld [vmem:[%s2283 + $0x8] sm:$0xf]
        %v2287 = vld [vmem:[%s2283 + $0xc] sm:$0xf]
        %v2288 = vld [vmem:[%s2283 + $0x10] sm:$0xf]
        %v2289 = vld [vmem:[%s2283 + $0x14] sm:$0xf]
        %v2290 = vld [vmem:[%s2283 + $0x18] sm:$0xf]
        %v2291 = vld [vmem:[%s2283 + $0x1c] sm:$0xf]
        %v2292 = vld [vmem:[%s2283 + $0x20] sm:$0xf]
        %v2293 = vld [vmem:[%s2283 + $0x24] sm:$0xf]
        %v2294 = vld [vmem:[%s2283 + $0x28] sm:$0xf]
        %v2295 = vld [vmem:[%s2283 + $0x2c] sm:$0xf]
        %v2296 = vld [vmem:[%s2283 + $0x30] sm:$0xf]
        %v2297 = vld [vmem:[%s2283 + $0x34] sm:$0xf]
        %v2298 = vld [vmem:[%s2283 + $0x38] sm:$0xf]
        %v2299 = vld [vmem:[%s2283 + $0x3c] sm:$0xf]
        %v2300 = vunpack.c.l.b16 %v2171
        %v2301 = vunpack.c.l.b16 %v2174
        %v2302 = vunpack.c.l.b16 %v2178
        %v2303 = vunpack.c.l.b16 %v2181
        %v2304 = vunpack.c.l.b16 %v2185
        %v2305 = vunpack.c.l.b16 %v2188
        %v2306 = vunpack.c.l.b16 %v2192
        %v2307 = vunpack.c.l.b16 %v2195
        %v2308 = vunpack.c.l.b16 %v2199
        %v2309 = vunpack.c.l.b16 %v2202
        %v2310 = vunpack.c.l.b16 %v2206
        %v2311 = vunpack.c.l.b16 %v2209
        %v2312 = vunpack.c.l.b16 %v2213
        %v2313 = vunpack.c.l.b16 %v2216
        %v2314 = vunpack.c.l.b16 %v2220
        %v2315 = vunpack.c.l.b16 %v2223
        %v2316 = vunpack.c.l.b16 %v2227
        %v2317 = vunpack.c.l.b16 %v2230
        %v2318 = vunpack.c.l.b16 %v2234
        %v2319 = vunpack.c.l.b16 %v2237
        %v2320 = vunpack.c.l.b16 %v2241
        %v2321 = vunpack.c.l.b16 %v2244
        %v2322 = vunpack.c.l.b16 %v2248
        %v2323 = vunpack.c.l.b16 %v2251
        %v2324 = vunpack.c.l.b16 %v2255
        %v2325 = vunpack.c.l.b16 %v2258
        %v2326 = vunpack.c.l.b16 %v2262
        %v2327 = vunpack.c.l.b16 %v2265
        %v2328 = vunpack.c.l.b16 %v2269
        %v2329 = vunpack.c.l.b16 %v2272
        %v2330 = vunpack.c.l.b16 %v2276
        %v2331 = vunpack.c.l.b16 %v2279
        %v2332 = vpack.c.b16 %v2301, %v2300
        %v2333 = vpack.c.b16 %v2303, %v2302
        %v2334 = vpack.c.b16 %v2305, %v2304
        %v2335 = vpack.c.b16 %v2307, %v2306
        %v2336 = vpack.c.b16 %v2309, %v2308
        %v2337 = vpack.c.b16 %v2311, %v2310
        %v2338 = vpack.c.b16 %v2313, %v2312
        %v2339 = vpack.c.b16 %v2315, %v2314
        %v2340 = vpack.c.b16 %v2317, %v2316
        %v2341 = vpack.c.b16 %v2319, %v2318
        %v2342 = vpack.c.b16 %v2321, %v2320
        %v2343 = vpack.c.b16 %v2323, %v2322
        %v2344 = vpack.c.b16 %v2325, %v2324
        %v2345 = vpack.c.b16 %v2327, %v2326
        %v2346 = vpack.c.b16 %v2329, %v2328
        %v2347 = vpack.c.b16 %v2331, %v2330
        %v2380 = vunpack.c.l.b16 %v2284
        %v2381 = vunpack.c.l.b16 %v2285
        %v2382 = vunpack.c.l.b16 %v2286
        %v2383 = vunpack.c.l.b16 %v2287
        %v2384 = vunpack.c.l.b16 %v2288
        %v2385 = vunpack.c.l.b16 %v2289
        %v2386 = vunpack.c.l.b16 %v2290
        %v2387 = vunpack.c.l.b16 %v2291
        %v2388 = vunpack.c.l.b16 %v2292
        %v2389 = vunpack.c.l.b16 %v2293
        %v2390 = vunpack.c.l.b16 %v2294
        %v2391 = vunpack.c.l.b16 %v2295
        %v2392 = vunpack.c.l.b16 %v2296
        %v2393 = vunpack.c.l.b16 %v2297
        %v2394 = vunpack.c.l.b16 %v2298
        %v2395 = vunpack.c.l.b16 %v2299
        %v2396 = vpack.c.b16 %v2381, %v2380
        %v2397 = vpack.c.b16 %v2383, %v2382
        %v2398 = vpack.c.b16 %v2385, %v2384
        %v2399 = vpack.c.b16 %v2387, %v2386
        %v2400 = vpack.c.b16 %v2389, %v2388
        %v2401 = vpack.c.b16 %v2391, %v2390
        %v2402 = vpack.c.b16 %v2393, %v2392
        %v2403 = vpack.c.b16 %v2395, %v2394
        %2412 = vmatpush.bf16.msra.mxu0 %v2403
        %2413 = vmatpush.bf16.msra.mxu0 %v2402
        %2414 = vmatpush.bf16.msra.mxu0 %v2401
        %2415 = vmatpush.bf16.msra.mxu0 %v2400
        %2416 = vmatpush.bf16.msra.mxu0 %v2399
        %2417 = vmatpush.bf16.msra.mxu0 %v2398
        %2418 = vmatpush.bf16.msra.mxu0 %v2397
        %2419 = vmatpush.bf16.msra.mxu0 %v2396
        %2420 = vmatmul.bf16.gmra.mxu0 %v2332
        %v2421 = vpop.f32.mrf.mxu0
        %v2422 = vadd.f32 0.0, %v2421
        %v2423 = vpop.f32.mrf.mxu0
        %v2424 = vadd.f32 0.0, %v2423
        %2425 = vmatmul.bf16.gmra.mxu0 %v2333
        %v2426 = vpop.f32.mrf.mxu0
        %v2427 = vadd.f32 0.0, %v2426
        %v2428 = vpop.f32.mrf.mxu0
        %v2429 = vadd.f32 0.0, %v2428
        %2430 = vmatmul.bf16.gmra.mxu0 %v2334
        %v2431 = vpop.f32.mrf.mxu0
        %v2432 = vadd.f32 0.0, %v2431
        %v2433 = vpop.f32.mrf.mxu0
        %v2434 = vadd.f32 0.0, %v2433
        %2435 = vmatmul.bf16.gmra.mxu0 %v2335
        %v2436 = vpop.f32.mrf.mxu0
        %v2437 = vadd.f32 0.0, %v2436
        %v2438 = vpop.f32.mrf.mxu0
        %v2439 = vadd.f32 0.0, %v2438
        %2440 = vmatmul.bf16.gmra.mxu0 %v2336
        %v2441 = vpop.f32.mrf.mxu0
        %v2442 = vadd.f32 0.0, %v2441
        %v2443 = vpop.f32.mrf.mxu0
        %v2444 = vadd.f32 0.0, %v2443
        %2445 = vmatmul.bf16.gmra.mxu0 %v2337
        %v2446 = vpop.f32.mrf.mxu0
        %v2447 = vadd.f32 0.0, %v2446
        %v2448 = vpop.f32.mrf.mxu0
        %v2449 = vadd.f32 0.0, %v2448
        %2450 = vmatmul.bf16.gmra.mxu0 %v2338
        %v2451 = vpop.f32.mrf.mxu0
        %v2452 = vadd.f32 0.0, %v2451
        %v2453 = vpop.f32.mrf.mxu0
        %v2454 = vadd.f32 0.0, %v2453
        %2455 = vmatmul.bf16.gmra.mxu0 %v2339
        %v2456 = vpop.f32.mrf.mxu0
        %v2457 = vadd.f32 0.0, %v2456
        %v2458 = vpop.f32.mrf.mxu0
        %v2459 = vadd.f32 0.0, %v2458
        %2460 = vmatmul.bf16.gmra.mxu0 %v2340
        %v2461 = vpop.f32.mrf.mxu0
        %v2462 = vadd.f32 0.0, %v2461
        %v2463 = vpop.f32.mrf.mxu0
        %v2464 = vadd.f32 0.0, %v2463
        %2465 = vmatmul.bf16.gmra.mxu0 %v2341
        %v2466 = vpop.f32.mrf.mxu0
        %v2467 = vadd.f32 0.0, %v2466
        %v2468 = vpop.f32.mrf.mxu0
        %v2469 = vadd.f32 0.0, %v2468
        %2470 = vmatmul.bf16.gmra.mxu0 %v2342
        %v2471 = vpop.f32.mrf.mxu0
        %v2472 = vadd.f32 0.0, %v2471
        %v2473 = vpop.f32.mrf.mxu0
        %v2474 = vadd.f32 0.0, %v2473
        %2475 = vmatmul.bf16.gmra.mxu0 %v2343
        %v2476 = vpop.f32.mrf.mxu0
        %v2477 = vadd.f32 0.0, %v2476
        %v2478 = vpop.f32.mrf.mxu0
        %v2479 = vadd.f32 0.0, %v2478
        %2480 = vmatmul.bf16.gmra.mxu0 %v2344
        %v2481 = vpop.f32.mrf.mxu0
        %v2482 = vadd.f32 0.0, %v2481
        %v2483 = vpop.f32.mrf.mxu0
        %v2484 = vadd.f32 0.0, %v2483
        %2485 = vmatmul.bf16.gmra.mxu0 %v2345
        %v2486 = vpop.f32.mrf.mxu0
        %v2487 = vadd.f32 0.0, %v2486
        %v2488 = vpop.f32.mrf.mxu0
        %v2489 = vadd.f32 0.0, %v2488
        %2490 = vmatmul.bf16.gmra.mxu0 %v2346
        %v2491 = vpop.f32.mrf.mxu0
        %v2492 = vadd.f32 0.0, %v2491
        %v2493 = vpop.f32.mrf.mxu0
        %v2494 = vadd.f32 0.0, %v2493
        %2495 = vmatmul.bf16.gmra.mxu0 %v2347
        %v2496 = vpop.f32.mrf.mxu0
        %v2497 = vadd.f32 0.0, %v2496
        %v2498 = vpop.f32.mrf.mxu0
        %v2499 = vadd.f32 0.0, %v2498
        %2500 = vdwg.mxu0
        %v2501 = vadd.f32 %v2038, %v2422
        %v2502 = vadd.f32 %v2040, %v2424
        %v2503 = vadd.f32 %v2043, %v2427
        %v2504 = vadd.f32 %v2045, %v2429
        %v2505 = vadd.f32 %v2048, %v2432
        %v2506 = vadd.f32 %v2050, %v2434
        %v2507 = vadd.f32 %v2053, %v2437
        %v2508 = vadd.f32 %v2055, %v2439
        %v2509 = vadd.f32 %v2058, %v2442
        %v2510 = vadd.f32 %v2060, %v2444
        %v2511 = vadd.f32 %v2063, %v2447
        %v2512 = vadd.f32 %v2065, %v2449
        %v2513 = vadd.f32 %v2068, %v2452
        %v2514 = vadd.f32 %v2070, %v2454
        %v2515 = vadd.f32 %v2073, %v2457
        %v2516 = vadd.f32 %v2075, %v2459
        %v2517 = vadd.f32 %v2078, %v2462
        %v2518 = vadd.f32 %v2080, %v2464
        %v2519 = vadd.f32 %v2083, %v2467
        %v2520 = vadd.f32 %v2085, %v2469
        %v2521 = vadd.f32 %v2088, %v2472
        %v2522 = vadd.f32 %v2090, %v2474
        %v2523 = vadd.f32 %v2093, %v2477
        %v2524 = vadd.f32 %v2095, %v2479
        %v2525 = vadd.f32 %v2098, %v2482
        %v2526 = vadd.f32 %v2100, %v2484
        %v2527 = vadd.f32 %v2103, %v2487
        %v2528 = vadd.f32 %v2105, %v2489
        %v2529 = vadd.f32 %v2108, %v2492
        %v2530 = vadd.f32 %v2110, %v2494
        %v2531 = vadd.f32 %v2113, %v2497
        %v2532 = vadd.f32 %v2115, %v2499
        %v2533 = vld [vmem:[%s1090] sm:$0xf]
        %v2534 = vld [vmem:[%s1090 + $0x4] sm:$0xf]
        %v2535 = vld [vmem:[%s1090 + $0xc] sm:$0xf]
        %v2536 = vld [vmem:[%s1090 + $0x10] sm:$0xf]
        %v2537 = vld [vmem:[%s1090 + $0x18] sm:$0xf]
        %v2538 = vld [vmem:[%s1090 + $0x1c] sm:$0xf]
        %v2539 = vld [vmem:[%s1090 + $0x24] sm:$0xf]
        %v2540 = vld [vmem:[%s1090 + $0x28] sm:$0xf]
        %v2541 = vld [vmem:[%s1090 + $0x30] sm:$0xf]
        %v2542 = vld [vmem:[%s1090 + $0x34] sm:$0xf]
        %v2543 = vld [vmem:[%s1090 + $0x3c] sm:$0xf]
        %v2544 = vld [vmem:[%s1090 + $0x40] sm:$0xf]
        %v2545 = vld [vmem:[%s1090 + $0x48] sm:$0xf]
        %v2546 = vld [vmem:[%s1090 + $0x4c] sm:$0xf]
        %v2547 = vld [vmem:[%s1090 + $0x54] sm:$0xf]
        %v2548 = vld [vmem:[%s1090 + $0x58] sm:$0xf]
        %v2549 = vld [vmem:[%s1090 + $0x60] sm:$0xf]
        %v2550 = vld [vmem:[%s1090 + $0x64] sm:$0xf]
        %v2551 = vld [vmem:[%s1090 + $0x6c] sm:$0xf]
        %v2552 = vld [vmem:[%s1090 + $0x70] sm:$0xf]
        %v2553 = vld [vmem:[%s1090 + $0x78] sm:$0xf]
        %v2554 = vld [vmem:[%s1090 + $0x7c] sm:$0xf]
        %v2555 = vld [vmem:[%s1090 + $0x84] sm:$0xf]
        %v2556 = vld [vmem:[%s1090 + $0x88] sm:$0xf]
        %v2557 = vld [vmem:[%s1090 + $0x90] sm:$0xf]
        %v2558 = vld [vmem:[%s1090 + $0x94] sm:$0xf]
        %v2559 = vld [vmem:[%s1090 + $0x9c] sm:$0xf]
        %v2560 = vld [vmem:[%s1090 + $0xa0] sm:$0xf]
        %v2561 = vld [vmem:[%s1090 + $0xa8] sm:$0xf]
        %v2562 = vld [vmem:[%s1090 + $0xac] sm:$0xf]
        %v2563 = vld [vmem:[%s1090 + $0xb4] sm:$0xf]
        %v2564 = vld [vmem:[%s1090 + $0xb8] sm:$0xf]
        %s2565 = sadd.s32 %s1240, 3
        %s2566 = smul.u32 %s2565, 16
        %s2567 = smul.addr %s2566, 4
        %s2568 = scalar_lea.vmem [#allocation9], %s2567
        %v2569 = vld [vmem:[%s2568] sm:$0xf]
        %v2570 = vld [vmem:[%s2568 + $0x4] sm:$0xf]
        %v2571 = vld [vmem:[%s2568 + $0x8] sm:$0xf]
        %v2572 = vld [vmem:[%s2568 + $0xc] sm:$0xf]
        %v2573 = vld [vmem:[%s2568 + $0x10] sm:$0xf]
        %v2574 = vld [vmem:[%s2568 + $0x14] sm:$0xf]
        %v2575 = vld [vmem:[%s2568 + $0x18] sm:$0xf]
        %v2576 = vld [vmem:[%s2568 + $0x1c] sm:$0xf]
        %v2577 = vld [vmem:[%s2568 + $0x20] sm:$0xf]
        %v2578 = vld [vmem:[%s2568 + $0x24] sm:$0xf]
        %v2579 = vld [vmem:[%s2568 + $0x28] sm:$0xf]
        %v2580 = vld [vmem:[%s2568 + $0x2c] sm:$0xf]
        %v2581 = vld [vmem:[%s2568 + $0x30] sm:$0xf]
        %v2582 = vld [vmem:[%s2568 + $0x34] sm:$0xf]
        %v2583 = vld [vmem:[%s2568 + $0x38] sm:$0xf]
        %v2584 = vld [vmem:[%s2568 + $0x3c] sm:$0xf]
        %v2617 = vunpack.c.l.b16 %v2533
        %v2618 = vunpack.c.l.b16 %v2534
        %v2619 = vunpack.c.l.b16 %v2535
        %v2620 = vunpack.c.l.b16 %v2536
        %v2621 = vunpack.c.l.b16 %v2537
        %v2622 = vunpack.c.l.b16 %v2538
        %v2623 = vunpack.c.l.b16 %v2539
        %v2624 = vunpack.c.l.b16 %v2540
        %v2625 = vunpack.c.l.b16 %v2541
        %v2626 = vunpack.c.l.b16 %v2542
        %v2627 = vunpack.c.l.b16 %v2543
        %v2628 = vunpack.c.l.b16 %v2544
        %v2629 = vunpack.c.l.b16 %v2545
        %v2630 = vunpack.c.l.b16 %v2546
        %v2631 = vunpack.c.l.b16 %v2547
        %v2632 = vunpack.c.l.b16 %v2548
        %v2633 = vunpack.c.l.b16 %v2549
        %v2634 = vunpack.c.l.b16 %v2550
        %v2635 = vunpack.c.l.b16 %v2551
        %v2636 = vunpack.c.l.b16 %v2552
        %v2637 = vunpack.c.l.b16 %v2553
        %v2638 = vunpack.c.l.b16 %v2554
        %v2639 = vunpack.c.l.b16 %v2555
        %v2640 = vunpack.c.l.b16 %v2556
        %v2641 = vunpack.c.l.b16 %v2557
        %v2642 = vunpack.c.l.b16 %v2558
        %v2643 = vunpack.c.l.b16 %v2559
        %v2644 = vunpack.c.l.b16 %v2560
        %v2645 = vunpack.c.l.b16 %v2561
        %v2646 = vunpack.c.l.b16 %v2562
        %v2647 = vunpack.c.l.b16 %v2563
        %v2648 = vunpack.c.l.b16 %v2564
        %v2649 = vpack.c.b16 %v2618, %v2617
        %v2650 = vpack.c.b16 %v2620, %v2619
        %v2651 = vpack.c.b16 %v2622, %v2621
        %v2652 = vpack.c.b16 %v2624, %v2623
        %v2653 = vpack.c.b16 %v2626, %v2625
        %v2654 = vpack.c.b16 %v2628, %v2627
        %v2655 = vpack.c.b16 %v2630, %v2629
        %v2656 = vpack.c.b16 %v2632, %v2631
        %v2657 = vpack.c.b16 %v2634, %v2633
        %v2658 = vpack.c.b16 %v2636, %v2635
        %v2659 = vpack.c.b16 %v2638, %v2637
        %v2660 = vpack.c.b16 %v2640, %v2639
        %v2661 = vpack.c.b16 %v2642, %v2641
        %v2662 = vpack.c.b16 %v2644, %v2643
        %v2663 = vpack.c.b16 %v2646, %v2645
        %v2664 = vpack.c.b16 %v2648, %v2647
        %v2697 = vunpack.c.l.b16 %v2569
        %v2698 = vunpack.c.l.b16 %v2570
        %v2699 = vunpack.c.l.b16 %v2571
        %v2700 = vunpack.c.l.b16 %v2572
        %v2701 = vunpack.c.l.b16 %v2573
        %v2702 = vunpack.c.l.b16 %v2574
        %v2703 = vunpack.c.l.b16 %v2575
        %v2704 = vunpack.c.l.b16 %v2576
        %v2705 = vunpack.c.l.b16 %v2577
        %v2706 = vunpack.c.l.b16 %v2578
        %v2707 = vunpack.c.l.b16 %v2579
        %v2708 = vunpack.c.l.b16 %v2580
        %v2709 = vunpack.c.l.b16 %v2581
        %v2710 = vunpack.c.l.b16 %v2582
        %v2711 = vunpack.c.l.b16 %v2583
        %v2712 = vunpack.c.l.b16 %v2584
        %v2713 = vpack.c.b16 %v2698, %v2697
        %v2714 = vpack.c.b16 %v2700, %v2699
        %v2715 = vpack.c.b16 %v2702, %v2701
        %v2716 = vpack.c.b16 %v2704, %v2703
        %v2717 = vpack.c.b16 %v2706, %v2705
        %v2718 = vpack.c.b16 %v2708, %v2707
        %v2719 = vpack.c.b16 %v2710, %v2709
        %v2720 = vpack.c.b16 %v2712, %v2711
        %2729 = vmatpush.bf16.msra.mxu0 %v2720
        %2730 = vmatpush.bf16.msra.mxu0 %v2719
        %2731 = vmatpush.bf16.msra.mxu0 %v2718
        %2732 = vmatpush.bf16.msra.mxu0 %v2717
        %2733 = vmatpush.bf16.msra.mxu0 %v2716
        %2734 = vmatpush.bf16.msra.mxu0 %v2715
        %2735 = vmatpush.bf16.msra.mxu0 %v2714
        %2736 = vmatpush.bf16.msra.mxu0 %v2713
        %2737 = vmatmul.bf16.gmra.mxu0 %v2649
        %v2738 = vpop.f32.mrf.mxu0
        %v2739 = vadd.f32 0.0, %v2738
        %v2740 = vpop.f32.mrf.mxu0
        %v2741 = vadd.f32 0.0, %v2740
        %2742 = vmatmul.bf16.gmra.mxu0 %v2650
        %v2743 = vpop.f32.mrf.mxu0
        %v2744 = vadd.f32 0.0, %v2743
        %v2745 = vpop.f32.mrf.mxu0
        %v2746 = vadd.f32 0.0, %v2745
        %2747 = vmatmul.bf16.gmra.mxu0 %v2651
        %v2748 = vpop.f32.mrf.mxu0
        %v2749 = vadd.f32 0.0, %v2748
        %v2750 = vpop.f32.mrf.mxu0
        %v2751 = vadd.f32 0.0, %v2750
        %2752 = vmatmul.bf16.gmra.mxu0 %v2652
        %v2753 = vpop.f32.mrf.mxu0
        %v2754 = vadd.f32 0.0, %v2753
        %v2755 = vpop.f32.mrf.mxu0
        %v2756 = vadd.f32 0.0, %v2755
        %2757 = vmatmul.bf16.gmra.mxu0 %v2653
        %v2758 = vpop.f32.mrf.mxu0
        %v2759 = vadd.f32 0.0, %v2758
        %v2760 = vpop.f32.mrf.mxu0
        %v2761 = vadd.f32 0.0, %v2760
        %2762 = vmatmul.bf16.gmra.mxu0 %v2654
        %v2763 = vpop.f32.mrf.mxu0
        %v2764 = vadd.f32 0.0, %v2763
        %v2765 = vpop.f32.mrf.mxu0
        %v2766 = vadd.f32 0.0, %v2765
        %2767 = vmatmul.bf16.gmra.mxu0 %v2655
        %v2768 = vpop.f32.mrf.mxu0
        %v2769 = vadd.f32 0.0, %v2768
        %v2770 = vpop.f32.mrf.mxu0
        %v2771 = vadd.f32 0.0, %v2770
        %2772 = vmatmul.bf16.gmra.mxu0 %v2656
        %v2773 = vpop.f32.mrf.mxu0
        %v2774 = vadd.f32 0.0, %v2773
        %v2775 = vpop.f32.mrf.mxu0
        %v2776 = vadd.f32 0.0, %v2775
        %2777 = vmatmul.bf16.gmra.mxu0 %v2657
        %v2778 = vpop.f32.mrf.mxu0
        %v2779 = vadd.f32 0.0, %v2778
        %v2780 = vpop.f32.mrf.mxu0
        %v2781 = vadd.f32 0.0, %v2780
        %2782 = vmatmul.bf16.gmra.mxu0 %v2658
        %v2783 = vpop.f32.mrf.mxu0
        %v2784 = vadd.f32 0.0, %v2783
        %v2785 = vpop.f32.mrf.mxu0
        %v2786 = vadd.f32 0.0, %v2785
        %2787 = vmatmul.bf16.gmra.mxu0 %v2659
        %v2788 = vpop.f32.mrf.mxu0
        %v2789 = vadd.f32 0.0, %v2788
        %v2790 = vpop.f32.mrf.mxu0
        %v2791 = vadd.f32 0.0, %v2790
        %2792 = vmatmul.bf16.gmra.mxu0 %v2660
        %v2793 = vpop.f32.mrf.mxu0
        %v2794 = vadd.f32 0.0, %v2793
        %v2795 = vpop.f32.mrf.mxu0
        %v2796 = vadd.f32 0.0, %v2795
        %2797 = vmatmul.bf16.gmra.mxu0 %v2661
        %v2798 = vpop.f32.mrf.mxu0
        %v2799 = vadd.f32 0.0, %v2798
        %v2800 = vpop.f32.mrf.mxu0
        %v2801 = vadd.f32 0.0, %v2800
        %2802 = vmatmul.bf16.gmra.mxu0 %v2662
        %v2803 = vpop.f32.mrf.mxu0
        %v2804 = vadd.f32 0.0, %v2803
        %v2805 = vpop.f32.mrf.mxu0
        %v2806 = vadd.f32 0.0, %v2805
        %2807 = vmatmul.bf16.gmra.mxu0 %v2663
        %v2808 = vpop.f32.mrf.mxu0
        %v2809 = vadd.f32 0.0, %v2808
        %v2810 = vpop.f32.mrf.mxu0
        %v2811 = vadd.f32 0.0, %v2810
        %2812 = vmatmul.bf16.gmra.mxu0 %v2664
        %v2813 = vpop.f32.mrf.mxu0
        %v2814 = vadd.f32 0.0, %v2813
        %v2815 = vpop.f32.mrf.mxu0
        %v2816 = vadd.f32 0.0, %v2815
        %2817 = vdwg.mxu0
        %v2818 = vadd.f32 %v2501, %v2739
        %v2819 = vadd.f32 %v2502, %v2741
        %v2820 = vadd.f32 %v2503, %v2744
        %v2821 = vadd.f32 %v2504, %v2746
        %v2822 = vadd.f32 %v2505, %v2749
        %v2823 = vadd.f32 %v2506, %v2751
        %v2824 = vadd.f32 %v2507, %v2754
        %v2825 = vadd.f32 %v2508, %v2756
        %v2826 = vadd.f32 %v2509, %v2759
        %v2827 = vadd.f32 %v2510, %v2761
        %v2828 = vadd.f32 %v2511, %v2764
        %v2829 = vadd.f32 %v2512, %v2766
        %v2830 = vadd.f32 %v2513, %v2769
        %v2831 = vadd.f32 %v2514, %v2771
        %v2832 = vadd.f32 %v2515, %v2774
        %v2833 = vadd.f32 %v2516, %v2776
        %v2834 = vadd.f32 %v2517, %v2779
        %v2835 = vadd.f32 %v2518, %v2781
        %v2836 = vadd.f32 %v2519, %v2784
        %v2837 = vadd.f32 %v2520, %v2786
        %v2838 = vadd.f32 %v2521, %v2789
        %v2839 = vadd.f32 %v2522, %v2791
        %v2840 = vadd.f32 %v2523, %v2794
        %v2841 = vadd.f32 %v2524, %v2796
        %v2842 = vadd.f32 %v2525, %v2799
        %v2843 = vadd.f32 %v2526, %v2801
        %v2844 = vadd.f32 %v2527, %v2804
        %v2845 = vadd.f32 %v2528, %v2806
        %v2846 = vadd.f32 %v2529, %v2809
        %v2847 = vadd.f32 %v2530, %v2811
        %v2848 = vadd.f32 %v2531, %v2814
        %v2849 = vadd.f32 %v2532, %v2816
        %v2850 = vld [vmem:[%s1090] sm:$0xf]
        %v2851 = vld [vmem:[%s1090 + $0x4] sm:$0xf]
        %v2852 = vld [vmem:[%s1090 + $0x8] sm:$0x1]
        %v2853 = vld [vmem:[%s1090 + $0xc] sm:$0xf]
        %v2854 = vld [vmem:[%s1090 + $0x10] sm:$0xf]
        %v2855 = vld [vmem:[%s1090 + $0x14] sm:$0x1]
        %v2856 = vld [vmem:[%s1090 + $0x18] sm:$0xf]
        %v2857 = vld [vmem:[%s1090 + $0x1c] sm:$0xf]
        %v2858 = vld [vmem:[%s1090 + $0x20] sm:$0x1]
        %v2859 = vld [vmem:[%s1090 + $0x24] sm:$0xf]
        %v2860 = vld [vmem:[%s1090 + $0x28] sm:$0xf]
        %v2861 = vld [vmem:[%s1090 + $0x2c] sm:$0x1]
        %v2862 = vld [vmem:[%s1090 + $0x30] sm:$0xf]
        %v2863 = vld [vmem:[%s1090 + $0x34] sm:$0xf]
        %v2864 = vld [vmem:[%s1090 + $0x38] sm:$0x1]
        %v2865 = vld [vmem:[%s1090 + $0x3c] sm:$0xf]
        %v2866 = vld [vmem:[%s1090 + $0x40] sm:$0xf]
        %v2867 = vld [vmem:[%s1090 + $0x44] sm:$0x1]
        %v2868 = vld [vmem:[%s1090 + $0x48] sm:$0xf]
        %v2869 = vld [vmem:[%s1090 + $0x4c] sm:$0xf]
        %v2870 = vld [vmem:[%s1090 + $0x50] sm:$0x1]
        %v2871 = vld [vmem:[%s1090 + $0x54] sm:$0xf]
        %v2872 = vld [vmem:[%s1090 + $0x58] sm:$0xf]
        %v2873 = vld [vmem:[%s1090 + $0x5c] sm:$0x1]
        %v2874 = vld [vmem:[%s1090 + $0x60] sm:$0xf]
        %v2875 = vld [vmem:[%s1090 + $0x64] sm:$0xf]
        %v2876 = vld [vmem:[%s1090 + $0x68] sm:$0x1]
        %v2877 = vld [vmem:[%s1090 + $0x6c] sm:$0xf]
        %v2878 = vld [vmem:[%s1090 + $0x70] sm:$0xf]
        %v2879 = vld [vmem:[%s1090 + $0x74] sm:$0x1]
        %v2880 = vld [vmem:[%s1090 + $0x78] sm:$0xf]
        %v2881 = vld [vmem:[%s1090 + $0x7c] sm:$0xf]
        %v2882 = vld [vmem:[%s1090 + $0x80] sm:$0x1]
        %v2883 = vld [vmem:[%s1090 + $0x84] sm:$0xf]
        %v2884 = vld [vmem:[%s1090 + $0x88] sm:$0xf]
        %v2885 = vld [vmem:[%s1090 + $0x8c] sm:$0x1]
        %v2886 = vld [vmem:[%s1090 + $0x90] sm:$0xf]
        %v2887 = vld [vmem:[%s1090 + $0x94] sm:$0xf]
        %v2888 = vld [vmem:[%s1090 + $0x98] sm:$0x1]
        %v2889 = vld [vmem:[%s1090 + $0x9c] sm:$0xf]
        %v2890 = vld [vmem:[%s1090 + $0xa0] sm:$0xf]
        %v2891 = vld [vmem:[%s1090 + $0xa4] sm:$0x1]
        %v2892 = vld [vmem:[%s1090 + $0xa8] sm:$0xf]
        %v2893 = vld [vmem:[%s1090 + $0xac] sm:$0xf]
        %v2894 = vld [vmem:[%s1090 + $0xb0] sm:$0x1]
        %v2895 = vld [vmem:[%s1090 + $0xb4] sm:$0xf]
        %v2896 = vld [vmem:[%s1090 + $0xb8] sm:$0xf]
        %v2897 = vld [vmem:[%s1090 + $0xbc] sm:$0x1]
        %v2899 = vshrl.u32 %v2850, 16
        %v2901 = vrot.slane %v2899, 4
        %v2902 = vshll.u32 %v2850, 16
        %v2904 = vrot.slane %v2902, 5
        %v2905 = vor.u32 %v2901, %v2904
        %v2906 = vrot.slane %v2905, 4
        %v2908 = vshll.u32 %v2851, 16
        %v2910 = vrot.slane %v2908, 5
        %v2911 = vsel %vm1278, %v2906, %v2910
        %v2912 = vshrl.u32 %v2851, 16
        %v2914 = vrot.slane %v2912, 4
        %v2915 = vor.u32 %v2914, %v2910
        %v2916 = vrot.slane %v2915, 4
        %v2918 = vshll.u32 %v2852, 16
        %v2920 = vrot.slane %v2918, 5
        %v2921 = vsel %vm1278, %v2916, %v2920
        %v2923 = vshrl.u32 %v2853, 16
        %v2925 = vrot.slane %v2923, 4
        %v2926 = vshll.u32 %v2853, 16
        %v2928 = vrot.slane %v2926, 5
        %v2929 = vor.u32 %v2925, %v2928
        %v2930 = vrot.slane %v2929, 4
        %v2932 = vshll.u32 %v2854, 16
        %v2934 = vrot.slane %v2932, 5
        %v2935 = vsel %vm1278, %v2930, %v2934
        %v2936 = vshrl.u32 %v2854, 16
        %v2938 = vrot.slane %v2936, 4
        %v2939 = vor.u32 %v2938, %v2934
        %v2940 = vrot.slane %v2939, 4
        %v2942 = vshll.u32 %v2855, 16
        %v2944 = vrot.slane %v2942, 5
        %v2945 = vsel %vm1278, %v2940, %v2944
        %v2947 = vshrl.u32 %v2856, 16
        %v2949 = vrot.slane %v2947, 4
        %v2950 = vshll.u32 %v2856, 16
        %v2952 = vrot.slane %v2950, 5
        %v2953 = vor.u32 %v2949, %v2952
        %v2954 = vrot.slane %v2953, 4
        %v2956 = vshll.u32 %v2857, 16
        %v2958 = vrot.slane %v2956, 5
        %v2959 = vsel %vm1278, %v2954, %v2958
        %v2960 = vshrl.u32 %v2857, 16
        %v2962 = vrot.slane %v2960, 4
        %v2963 = vor.u32 %v2962, %v2958
        %v2964 = vrot.slane %v2963, 4
        %v2966 = vshll.u32 %v2858, 16
        %v2968 = vrot.slane %v2966, 5
        %v2969 = vsel %vm1278, %v2964, %v2968
        %v2971 = vshrl.u32 %v2859, 16
        %v2973 = vrot.slane %v2971, 4
        %v2974 = vshll.u32 %v2859, 16
        %v2976 = vrot.slane %v2974, 5
        %v2977 = vor.u32 %v2973, %v2976
        %v2978 = vrot.slane %v2977, 4
        %v2980 = vshll.u32 %v2860, 16
        %v2982 = vrot.slane %v2980, 5
        %v2983 = vsel %vm1278, %v2978, %v2982
        %v2984 = vshrl.u32 %v2860, 16
        %v2986 = vrot.slane %v2984, 4
        %v2987 = vor.u32 %v2986, %v2982
        %v2988 = vrot.slane %v2987, 4
        %v2990 = vshll.u32 %v2861, 16
        %v2992 = vrot.slane %v2990, 5
        %v2993 = vsel %vm1278, %v2988, %v2992
        %v2995 = vshrl.u32 %v2862, 16
        %v2997 = vrot.slane %v2995, 4
        %v2998 = vshll.u32 %v2862, 16
        %v3000 = vrot.slane %v2998, 5
        %v3001 = vor.u32 %v2997, %v3000
        %v3002 = vrot.slane %v3001, 4
        %v3004 = vshll.u32 %v2863, 16
        %v3006 = vrot.slane %v3004, 5
        %v3007 = vsel %vm1278, %v3002, %v3006
        %v3008 = vshrl.u32 %v2863, 16
        %v3010 = vrot.slane %v3008, 4
        %v3011 = vor.u32 %v3010, %v3006
        %v3012 = vrot.slane %v3011, 4
        %v3014 = vshll.u32 %v2864, 16
        %v3016 = vrot.slane %v3014, 5
        %v3017 = vsel %vm1278, %v3012, %v3016
        %v3019 = vshrl.u32 %v2865, 16
        %v3021 = vrot.slane %v3019, 4
        %v3022 = vshll.u32 %v2865, 16
        %v3024 = vrot.slane %v3022, 5
        %v3025 = vor.u32 %v3021, %v3024
        %v3026 = vrot.slane %v3025, 4
        %v3028 = vshll.u32 %v2866, 16
        %v3030 = vrot.slane %v3028, 5
        %v3031 = vsel %vm1278, %v3026, %v3030
        %v3032 = vshrl.u32 %v2866, 16
        %v3034 = vrot.slane %v3032, 4
        %v3035 = vor.u32 %v3034, %v3030
        %v3036 = vrot.slane %v3035, 4
        %v3038 = vshll.u32 %v2867, 16
        %v3040 = vrot.slane %v3038, 5
        %v3041 = vsel %vm1278, %v3036, %v3040
        %v3043 = vshrl.u32 %v2868, 16
        %v3045 = vrot.slane %v3043, 4
        %v3046 = vshll.u32 %v2868, 16
        %v3048 = vrot.slane %v3046, 5
        %v3049 = vor.u32 %v3045, %v3048
        %v3050 = vrot.slane %v3049, 4
        %v3052 = vshll.u32 %v2869, 16
        %v3054 = vrot.slane %v3052, 5
        %v3055 = vsel %vm1278, %v3050, %v3054
        %v3056 = vshrl.u32 %v2869, 16
        %v3058 = vrot.slane %v3056, 4
        %v3059 = vor.u32 %v3058, %v3054
        %v3060 = vrot.slane %v3059, 4
        %v3062 = vshll.u32 %v2870, 16
        %v3064 = vrot.slane %v3062, 5
        %v3065 = vsel %vm1278, %v3060, %v3064
        %v3067 = vshrl.u32 %v2871, 16
        %v3069 = vrot.slane %v3067, 4
        %v3070 = vshll.u32 %v2871, 16
        %v3072 = vrot.slane %v3070, 5
        %v3073 = vor.u32 %v3069, %v3072
        %v3074 = vrot.slane %v3073, 4
        %v3076 = vshll.u32 %v2872, 16
        %v3078 = vrot.slane %v3076, 5
        %v3079 = vsel %vm1278, %v3074, %v3078
        %v3080 = vshrl.u32 %v2872, 16
        %v3082 = vrot.slane %v3080, 4
        %v3083 = vor.u32 %v3082, %v3078
        %v3084 = vrot.slane %v3083, 4
        %v3086 = vshll.u32 %v2873, 16
        %v3088 = vrot.slane %v3086, 5
        %v3089 = vsel %vm1278, %v3084, %v3088
        %v3091 = vshrl.u32 %v2874, 16
        %v3093 = vrot.slane %v3091, 4
        %v3094 = vshll.u32 %v2874, 16
        %v3096 = vrot.slane %v3094, 5
        %v3097 = vor.u32 %v3093, %v3096
        %v3098 = vrot.slane %v3097, 4
        %v3100 = vshll.u32 %v2875, 16
        %v3102 = vrot.slane %v3100, 5
        %v3103 = vsel %vm1278, %v3098, %v3102
        %v3104 = vshrl.u32 %v2875, 16
        %v3106 = vrot.slane %v3104, 4
        %v3107 = vor.u32 %v3106, %v3102
        %v3108 = vrot.slane %v3107, 4
        %v3110 = vshll.u32 %v2876, 16
        %v3112 = vrot.slane %v3110, 5
        %v3113 = vsel %vm1278, %v3108, %v3112
        %v3115 = vshrl.u32 %v2877, 16
        %v3117 = vrot.slane %v3115, 4
        %v3118 = vshll.u32 %v2877, 16
        %v3120 = vrot.slane %v3118, 5
        %v3121 = vor.u32 %v3117, %v3120
        %v3122 = vrot.slane %v3121, 4
        %v3124 = vshll.u32 %v2878, 16
        %v3126 = vrot.slane %v3124, 5
        %v3127 = vsel %vm1278, %v3122, %v3126
        %v3128 = vshrl.u32 %v2878, 16
        %v3130 = vrot.slane %v3128, 4
        %v3131 = vor.u32 %v3130, %v3126
        %v3132 = vrot.slane %v3131, 4
        %v3134 = vshll.u32 %v2879, 16
        %v3136 = vrot.slane %v3134, 5
        %v3137 = vsel %vm1278, %v3132, %v3136
        %v3139 = vshrl.u32 %v2880, 16
        %v3141 = vrot.slane %v3139, 4
        %v3142 = vshll.u32 %v2880, 16
        %v3144 = vrot.slane %v3142, 5
        %v3145 = vor.u32 %v3141, %v3144
        %v3146 = vrot.slane %v3145, 4
        %v3148 = vshll.u32 %v2881, 16
        %v3150 = vrot.slane %v3148, 5
        %v3151 = vsel %vm1278, %v3146, %v3150
        %v3152 = vshrl.u32 %v2881, 16
        %v3154 = vrot.slane %v3152, 4
        %v3155 = vor.u32 %v3154, %v3150
        %v3156 = vrot.slane %v3155, 4
        %v3158 = vshll.u32 %v2882, 16
        %v3160 = vrot.slane %v3158, 5
        %v3161 = vsel %vm1278, %v3156, %v3160
        %v3163 = vshrl.u32 %v2883, 16
        %v3165 = vrot.slane %v3163, 4
        %v3166 = vshll.u32 %v2883, 16
        %v3168 = vrot.slane %v3166, 5
        %v3169 = vor.u32 %v3165, %v3168
        %v3170 = vrot.slane %v3169, 4
        %v3172 = vshll.u32 %v2884, 16
        %v3174 = vrot.slane %v3172, 5
        %v3175 = vsel %vm1278, %v3170, %v3174
        %v3176 = vshrl.u32 %v2884, 16
        %v3178 = vrot.slane %v3176, 4
        %v3179 = vor.u32 %v3178, %v3174
        %v3180 = vrot.slane %v3179, 4
        %v3182 = vshll.u32 %v2885, 16
        %v3184 = vrot.slane %v3182, 5
        %v3185 = vsel %vm1278, %v3180, %v3184
        %v3187 = vshrl.u32 %v2886, 16
        %v3189 = vrot.slane %v3187, 4
        %v3190 = vshll.u32 %v2886, 16
        %v3192 = vrot.slane %v3190, 5
        %v3193 = vor.u32 %v3189, %v3192
        %v3194 = vrot.slane %v3193, 4
        %v3196 = vshll.u32 %v2887, 16
        %v3198 = vrot.slane %v3196, 5
        %v3199 = vsel %vm1278, %v3194, %v3198
        %v3200 = vshrl.u32 %v2887, 16
        %v3202 = vrot.slane %v3200, 4
        %v3203 = vor.u32 %v3202, %v3198
        %v3204 = vrot.slane %v3203, 4
        %v3206 = vshll.u32 %v2888, 16
        %v3208 = vrot.slane %v3206, 5
        %v3209 = vsel %vm1278, %v3204, %v3208
        %v3211 = vshrl.u32 %v2889, 16
        %v3213 = vrot.slane %v3211, 4
        %v3214 = vshll.u32 %v2889, 16
        %v3216 = vrot.slane %v3214, 5
        %v3217 = vor.u32 %v3213, %v3216
        %v3218 = vrot.slane %v3217, 4
        %v3220 = vshll.u32 %v2890, 16
        %v3222 = vrot.slane %v3220, 5
        %v3223 = vsel %vm1278, %v3218, %v3222
        %v3224 = vshrl.u32 %v2890, 16
        %v3226 = vrot.slane %v3224, 4
        %v3227 = vor.u32 %v3226, %v3222
        %v3228 = vrot.slane %v3227, 4
        %v3230 = vshll.u32 %v2891, 16
        %v3232 = vrot.slane %v3230, 5
        %v3233 = vsel %vm1278, %v3228, %v3232
        %v3235 = vshrl.u32 %v2892, 16
        %v3237 = vrot.slane %v3235, 4
        %v3238 = vshll.u32 %v2892, 16
        %v3240 = vrot.slane %v3238, 5
        %v3241 = vor.u32 %v3237, %v3240
        %v3242 = vrot.slane %v3241, 4
        %v3244 = vshll.u32 %v2893, 16
        %v3246 = vrot.slane %v3244, 5
        %v3247 = vsel %vm1278, %v3242, %v3246
        %v3248 = vshrl.u32 %v2893, 16
        %v3250 = vrot.slane %v3248, 4
        %v3251 = vor.u32 %v3250, %v3246
        %v3252 = vrot.slane %v3251, 4
        %v3254 = vshll.u32 %v2894, 16
        %v3256 = vrot.slane %v3254, 5
        %v3257 = vsel %vm1278, %v3252, %v3256
        %v3259 = vshrl.u32 %v2895, 16
        %v3261 = vrot.slane %v3259, 4
        %v3262 = vshll.u32 %v2895, 16
        %v3264 = vrot.slane %v3262, 5
        %v3265 = vor.u32 %v3261, %v3264
        %v3266 = vrot.slane %v3265, 4
        %v3268 = vshll.u32 %v2896, 16
        %v3270 = vrot.slane %v3268, 5
        %v3271 = vsel %vm1278, %v3266, %v3270
        %v3272 = vshrl.u32 %v2896, 16
        %v3274 = vrot.slane %v3272, 4
        %v3275 = vor.u32 %v3274, %v3270
        %v3276 = vrot.slane %v3275, 4
        %v3278 = vshll.u32 %v2897, 16
        %v3280 = vrot.slane %v3278, 5
        %v3281 = vsel %vm1278, %v3276, %v3280
        %s3282 = sadd.s32 %s1240, 4
        %s3283 = smul.u32 %s3282, 16
        %s3284 = smul.addr %s3283, 4
        %s3285 = scalar_lea.vmem [#allocation9], %s3284
        %v3286 = vld [vmem:[%s3285] sm:$0xf]
        %v3287 = vld [vmem:[%s3285 + $0x4] sm:$0xf]
        %v3288 = vld [vmem:[%s3285 + $0x8] sm:$0xf]
        %v3289 = vld [vmem:[%s3285 + $0xc] sm:$0xf]
        %v3290 = vld [vmem:[%s3285 + $0x10] sm:$0xf]
        %v3291 = vld [vmem:[%s3285 + $0x14] sm:$0xf]
        %v3292 = vld [vmem:[%s3285 + $0x18] sm:$0xf]
        %v3293 = vld [vmem:[%s3285 + $0x1c] sm:$0xf]
        %v3294 = vld [vmem:[%s3285 + $0x20] sm:$0xf]
        %v3295 = vld [vmem:[%s3285 + $0x24] sm:$0xf]
        %v3296 = vld [vmem:[%s3285 + $0x28] sm:$0xf]
        %v3297 = vld [vmem:[%s3285 + $0x2c] sm:$0xf]
        %v3298 = vld [vmem:[%s3285 + $0x30] sm:$0xf]
        %v3299 = vld [vmem:[%s3285 + $0x34] sm:$0xf]
        %v3300 = vld [vmem:[%s3285 + $0x38] sm:$0xf]
        %v3301 = vld [vmem:[%s3285 + $0x3c] sm:$0xf]
        %v3302 = vunpack.c.l.b16 %v2911
        %v3303 = vunpack.c.l.b16 %v2921
        %v3304 = vunpack.c.l.b16 %v2935
        %v3305 = vunpack.c.l.b16 %v2945
        %v3306 = vunpack.c.l.b16 %v2959
        %v3307 = vunpack.c.l.b16 %v2969
        %v3308 = vunpack.c.l.b16 %v2983
        %v3309 = vunpack.c.l.b16 %v2993
        %v3310 = vunpack.c.l.b16 %v3007
        %v3311 = vunpack.c.l.b16 %v3017
        %v3312 = vunpack.c.l.b16 %v3031
        %v3313 = vunpack.c.l.b16 %v3041
        %v3314 = vunpack.c.l.b16 %v3055
        %v3315 = vunpack.c.l.b16 %v3065
        %v3316 = vunpack.c.l.b16 %v3079
        %v3317 = vunpack.c.l.b16 %v3089
        %v3318 = vunpack.c.l.b16 %v3103
        %v3319 = vunpack.c.l.b16 %v3113
        %v3320 = vunpack.c.l.b16 %v3127
        %v3321 = vunpack.c.l.b16 %v3137
        %v3322 = vunpack.c.l.b16 %v3151
        %v3323 = vunpack.c.l.b16 %v3161
        %v3324 = vunpack.c.l.b16 %v3175
        %v3325 = vunpack.c.l.b16 %v3185
        %v3326 = vunpack.c.l.b16 %v3199
        %v3327 = vunpack.c.l.b16 %v3209
        %v3328 = vunpack.c.l.b16 %v3223
        %v3329 = vunpack.c.l.b16 %v3233
        %v3330 = vunpack.c.l.b16 %v3247
        %v3331 = vunpack.c.l.b16 %v3257
        %v3332 = vunpack.c.l.b16 %v3271
        %v3333 = vunpack.c.l.b16 %v3281
        %v3334 = vpack.c.b16 %v3303, %v3302
        %v3335 = vpack.c.b16 %v3305, %v3304
        %v3336 = vpack.c.b16 %v3307, %v3306
        %v3337 = vpack.c.b16 %v3309, %v3308
        %v3338 = vpack.c.b16 %v3311, %v3310
        %v3339 = vpack.c.b16 %v3313, %v3312
        %v3340 = vpack.c.b16 %v3315, %v3314
        %v3341 = vpack.c.b16 %v3317, %v3316
        %v3342 = vpack.c.b16 %v3319, %v3318
        %v3343 = vpack.c.b16 %v3321, %v3320
        %v3344 = vpack.c.b16 %v3323, %v3322
        %v3345 = vpack.c.b16 %v3325, %v3324
        %v3346 = vpack.c.b16 %v3327, %v3326
        %v3347 = vpack.c.b16 %v3329, %v3328
        %v3348 = vpack.c.b16 %v3331, %v3330
        %v3349 = vpack.c.b16 %v3333, %v3332
        %v3382 = vunpack.c.l.b16 %v3286
        %v3383 = vunpack.c.l.b16 %v3287
        %v3384 = vunpack.c.l.b16 %v3288
        %v3385 = vunpack.c.l.b16 %v3289
        %v3386 = vunpack.c.l.b16 %v3290
        %v3387 = vunpack.c.l.b16 %v3291
        %v3388 = vunpack.c.l.b16 %v3292
        %v3389 = vunpack.c.l.b16 %v3293
        %v3390 = vunpack.c.l.b16 %v3294
        %v3391 = vunpack.c.l.b16 %v3295
        %v3392 = vunpack.c.l.b16 %v3296
        %v3393 = vunpack.c.l.b16 %v3297
        %v3394 = vunpack.c.l.b16 %v3298
        %v3395 = vunpack.c.l.b16 %v3299
        %v3396 = vunpack.c.l.b16 %v3300
        %v3397 = vunpack.c.l.b16 %v3301
        %v3398 = vpack.c.b16 %v3383, %v3382
        %v3399 = vpack.c.b16 %v3385, %v3384
        %v3400 = vpack.c.b16 %v3387, %v3386
        %v3401 = vpack.c.b16 %v3389, %v3388
        %v3402 = vpack.c.b16 %v3391, %v3390
        %v3403 = vpack.c.b16 %v3393, %v3392
        %v3404 = vpack.c.b16 %v3395, %v3394
        %v3405 = vpack.c.b16 %v3397, %v3396
        %3414 = vmatpush.bf16.msra.mxu0 %v3405
        %3415 = vmatpush.bf16.msra.mxu0 %v3404
        %3416 = vmatpush.bf16.msra.mxu0 %v3403
        %3417 = vmatpush.bf16.msra.mxu0 %v3402
        %3418 = vmatpush.bf16.msra.mxu0 %v3401
        %3419 = vmatpush.bf16.msra.mxu0 %v3400
        %3420 = vmatpush.bf16.msra.mxu0 %v3399
        %3421 = vmatpush.bf16.msra.mxu0 %v3398
        %3422 = vmatmul.bf16.gmra.mxu0 %v3334
        %v3423 = vpop.f32.mrf.mxu0
        %v3424 = vadd.f32 0.0, %v3423
        %v3425 = vpop.f32.mrf.mxu0
        %v3426 = vadd.f32 0.0, %v3425
        %3427 = vmatmul.bf16.gmra.mxu0 %v3335
        %v3428 = vpop.f32.mrf.mxu0
        %v3429 = vadd.f32 0.0, %v3428
        %v3430 = vpop.f32.mrf.mxu0
        %v3431 = vadd.f32 0.0, %v3430
        %3432 = vmatmul.bf16.gmra.mxu0 %v3336
        %v3433 = vpop.f32.mrf.mxu0
        %v3434 = vadd.f32 0.0, %v3433
        %v3435 = vpop.f32.mrf.mxu0
        %v3436 = vadd.f32 0.0, %v3435
        %3437 = vmatmul.bf16.gmra.mxu0 %v3337
        %v3438 = vpop.f32.mrf.mxu0
        %v3439 = vadd.f32 0.0, %v3438
        %v3440 = vpop.f32.mrf.mxu0
        %v3441 = vadd.f32 0.0, %v3440
        %3442 = vmatmul.bf16.gmra.mxu0 %v3338
        %v3443 = vpop.f32.mrf.mxu0
        %v3444 = vadd.f32 0.0, %v3443
        %v3445 = vpop.f32.mrf.mxu0
        %v3446 = vadd.f32 0.0, %v3445
        %3447 = vmatmul.bf16.gmra.mxu0 %v3339
        %v3448 = vpop.f32.mrf.mxu0
        %v3449 = vadd.f32 0.0, %v3448
        %v3450 = vpop.f32.mrf.mxu0
        %v3451 = vadd.f32 0.0, %v3450
        %3452 = vmatmul.bf16.gmra.mxu0 %v3340
        %v3453 = vpop.f32.mrf.mxu0
        %v3454 = vadd.f32 0.0, %v3453
        %v3455 = vpop.f32.mrf.mxu0
        %v3456 = vadd.f32 0.0, %v3455
        %3457 = vmatmul.bf16.gmra.mxu0 %v3341
        %v3458 = vpop.f32.mrf.mxu0
        %v3459 = vadd.f32 0.0, %v3458
        %v3460 = vpop.f32.mrf.mxu0
        %v3461 = vadd.f32 0.0, %v3460
        %3462 = vmatmul.bf16.gmra.mxu0 %v3342
        %v3463 = vpop.f32.mrf.mxu0
        %v3464 = vadd.f32 0.0, %v3463
        %v3465 = vpop.f32.mrf.mxu0
        %v3466 = vadd.f32 0.0, %v3465
        %3467 = vmatmul.bf16.gmra.mxu0 %v3343
        %v3468 = vpop.f32.mrf.mxu0
        %v3469 = vadd.f32 0.0, %v3468
        %v3470 = vpop.f32.mrf.mxu0
        %v3471 = vadd.f32 0.0, %v3470
        %3472 = vmatmul.bf16.gmra.mxu0 %v3344
        %v3473 = vpop.f32.mrf.mxu0
        %v3474 = vadd.f32 0.0, %v3473
        %v3475 = vpop.f32.mrf.mxu0
        %v3476 = vadd.f32 0.0, %v3475
        %3477 = vmatmul.bf16.gmra.mxu0 %v3345
        %v3478 = vpop.f32.mrf.mxu0
        %v3479 = vadd.f32 0.0, %v3478
        %v3480 = vpop.f32.mrf.mxu0
        %v3481 = vadd.f32 0.0, %v3480
        %3482 = vmatmul.bf16.gmra.mxu0 %v3346
        %v3483 = vpop.f32.mrf.mxu0
        %v3484 = vadd.f32 0.0, %v3483
        %v3485 = vpop.f32.mrf.mxu0
        %v3486 = vadd.f32 0.0, %v3485
        %3487 = vmatmul.bf16.gmra.mxu0 %v3347
        %v3488 = vpop.f32.mrf.mxu0
        %v3489 = vadd.f32 0.0, %v3488
        %v3490 = vpop.f32.mrf.mxu0
        %v3491 = vadd.f32 0.0, %v3490
        %3492 = vmatmul.bf16.gmra.mxu0 %v3348
        %v3493 = vpop.f32.mrf.mxu0
        %v3494 = vadd.f32 0.0, %v3493
        %v3495 = vpop.f32.mrf.mxu0
        %v3496 = vadd.f32 0.0, %v3495
        %3497 = vmatmul.bf16.gmra.mxu0 %v3349
        %v3498 = vpop.f32.mrf.mxu0
        %v3499 = vadd.f32 0.0, %v3498
        %v3500 = vpop.f32.mrf.mxu0
        %v3501 = vadd.f32 0.0, %v3500
        %3502 = vdwg.mxu0
        %v3503 = vadd.f32 %v2818, %v3424
        %v3504 = vadd.f32 %v2819, %v3426
        %v3505 = vadd.f32 %v2820, %v3429
        %v3506 = vadd.f32 %v2821, %v3431
        %v3507 = vadd.f32 %v2822, %v3434
        %v3508 = vadd.f32 %v2823, %v3436
        %v3509 = vadd.f32 %v2824, %v3439
        %v3510 = vadd.f32 %v2825, %v3441
        %v3511 = vadd.f32 %v2826, %v3444
        %v3512 = vadd.f32 %v2827, %v3446
        %v3513 = vadd.f32 %v2828, %v3449
        %v3514 = vadd.f32 %v2829, %v3451
        %v3515 = vadd.f32 %v2830, %v3454
        %v3516 = vadd.f32 %v2831, %v3456
        %v3517 = vadd.f32 %v2832, %v3459
        %v3518 = vadd.f32 %v2833, %v3461
        %v3519 = vadd.f32 %v2834, %v3464
        %v3520 = vadd.f32 %v2835, %v3466
        %v3521 = vadd.f32 %v2836, %v3469
        %v3522 = vadd.f32 %v2837, %v3471
        %v3523 = vadd.f32 %v2838, %v3474
        %v3524 = vadd.f32 %v2839, %v3476
        %v3525 = vadd.f32 %v2840, %v3479
        %v3526 = vadd.f32 %v2841, %v3481
        %v3527 = vadd.f32 %v2842, %v3484
        %v3528 = vadd.f32 %v2843, %v3486
        %v3529 = vadd.f32 %v2844, %v3489
        %v3530 = vadd.f32 %v2845, %v3491
        %v3531 = vadd.f32 %v2846, %v3494
        %v3532 = vadd.f32 %v2847, %v3496
        %v3533 = vadd.f32 %v2848, %v3499
        %v3534 = vadd.f32 %v2849, %v3501
        %v3535 = vld [vmem:[%s1090] sm:$0xe]
        %v3536 = vld [vmem:[%s1090 + $0xc] sm:$0xe]
        %v3537 = vld [vmem:[%s1090 + $0x18] sm:$0xe]
        %v3538 = vld [vmem:[%s1090 + $0x24] sm:$0xe]
        %v3539 = vld [vmem:[%s1090 + $0x30] sm:$0xe]
        %v3540 = vld [vmem:[%s1090 + $0x3c] sm:$0xe]
        %v3541 = vld [vmem:[%s1090 + $0x48] sm:$0xe]
        %v3542 = vld [vmem:[%s1090 + $0x54] sm:$0xe]
        %v3543 = vld [vmem:[%s1090 + $0x60] sm:$0xe]
        %v3544 = vld [vmem:[%s1090 + $0x6c] sm:$0xe]
        %v3545 = vld [vmem:[%s1090 + $0x78] sm:$0xe]
        %v3546 = vld [vmem:[%s1090 + $0x84] sm:$0xe]
        %v3547 = vld [vmem:[%s1090 + $0x90] sm:$0xe]
        %v3548 = vld [vmem:[%s1090 + $0x9c] sm:$0xe]
        %v3549 = vld [vmem:[%s1090 + $0xa8] sm:$0xe]
        %v3550 = vld [vmem:[%s1090 + $0xb4] sm:$0xe]
        %v3599 = vrot.slane %v3535, 5
        %v3600 = vrot.slane %v3599, 4
        %v3601 = vrot.slane %v2851, 5
        %v3602 = vsel %vm2167, %v3600, %v3601
        %v3603 = vrot.slane %v3601, 4
        %v3604 = vrot.slane %v2852, 5
        %v3605 = vsel %vm2167, %v3603, %v3604
        %v3606 = vrot.slane %v3536, 5
        %v3607 = vrot.slane %v3606, 4
        %v3608 = vrot.slane %v2854, 5
        %v3609 = vsel %vm2167, %v3607, %v3608
        %v3610 = vrot.slane %v3608, 4
        %v3611 = vrot.slane %v2855, 5
        %v3612 = vsel %vm2167, %v3610, %v3611
        %v3613 = vrot.slane %v3537, 5
        %v3614 = vrot.slane %v3613, 4
        %v3615 = vrot.slane %v2857, 5
        %v3616 = vsel %vm2167, %v3614, %v3615
        %v3617 = vrot.slane %v3615, 4
        %v3618 = vrot.slane %v2858, 5
        %v3619 = vsel %vm2167, %v3617, %v3618
        %v3620 = vrot.slane %v3538, 5
        %v3621 = vrot.slane %v3620, 4
        %v3622 = vrot.slane %v2860, 5
        %v3623 = vsel %vm2167, %v3621, %v3622
        %v3624 = vrot.slane %v3622, 4
        %v3625 = vrot.slane %v2861, 5
        %v3626 = vsel %vm2167, %v3624, %v3625
        %v3627 = vrot.slane %v3539, 5
        %v3628 = vrot.slane %v3627, 4
        %v3629 = vrot.slane %v2863, 5
        %v3630 = vsel %vm2167, %v3628, %v3629
        %v3631 = vrot.slane %v3629, 4
        %v3632 = vrot.slane %v2864, 5
        %v3633 = vsel %vm2167, %v3631, %v3632
        %v3634 = vrot.slane %v3540, 5
        %v3635 = vrot.slane %v3634, 4
        %v3636 = vrot.slane %v2866, 5
        %v3637 = vsel %vm2167, %v3635, %v3636
        %v3638 = vrot.slane %v3636, 4
        %v3639 = vrot.slane %v2867, 5
        %v3640 = vsel %vm2167, %v3638, %v3639
        %v3641 = vrot.slane %v3541, 5
        %v3642 = vrot.slane %v3641, 4
        %v3643 = vrot.slane %v2869, 5
        %v3644 = vsel %vm2167, %v3642, %v3643
        %v3645 = vrot.slane %v3643, 4
        %v3646 = vrot.slane %v2870, 5
        %v3647 = vsel %vm2167, %v3645, %v3646
        %v3648 = vrot.slane %v3542, 5
        %v3649 = vrot.slane %v3648, 4
        %v3650 = vrot.slane %v2872, 5
        %v3651 = vsel %vm2167, %v3649, %v3650
        %v3652 = vrot.slane %v3650, 4
        %v3653 = vrot.slane %v2873, 5
        %v3654 = vsel %vm2167, %v3652, %v3653
        %v3655 = vrot.slane %v3543, 5
        %v3656 = vrot.slane %v3655, 4
        %v3657 = vrot.slane %v2875, 5
        %v3658 = vsel %vm2167, %v3656, %v3657
        %v3659 = vrot.slane %v3657, 4
        %v3660 = vrot.slane %v2876, 5
        %v3661 = vsel %vm2167, %v3659, %v3660
        %v3662 = vrot.slane %v3544, 5
        %v3663 = vrot.slane %v3662, 4
        %v3664 = vrot.slane %v2878, 5
        %v3665 = vsel %vm2167, %v3663, %v3664
        %v3666 = vrot.slane %v3664, 4
        %v3667 = vrot.slane %v2879, 5
        %v3668 = vsel %vm2167, %v3666, %v3667
        %v3669 = vrot.slane %v3545, 5
        %v3670 = vrot.slane %v3669, 4
        %v3671 = vrot.slane %v2881, 5
        %v3672 = vsel %vm2167, %v3670, %v3671
        %v3673 = vrot.slane %v3671, 4
        %v3674 = vrot.slane %v2882, 5
        %v3675 = vsel %vm2167, %v3673, %v3674
        %v3676 = vrot.slane %v3546, 5
        %v3677 = vrot.slane %v3676, 4
        %v3678 = vrot.slane %v2884, 5
        %v3679 = vsel %vm2167, %v3677, %v3678
        %v3680 = vrot.slane %v3678, 4
        %v3681 = vrot.slane %v2885, 5
        %v3682 = vsel %vm2167, %v3680, %v3681
        %v3683 = vrot.slane %v3547, 5
        %v3684 = vrot.slane %v3683, 4
        %v3685 = vrot.slane %v2887, 5
        %v3686 = vsel %vm2167, %v3684, %v3685
        %v3687 = vrot.slane %v3685, 4
        %v3688 = vrot.slane %v2888, 5
        %v3689 = vsel %vm2167, %v3687, %v3688
        %v3690 = vrot.slane %v3548, 5
        %v3691 = vrot.slane %v3690, 4
        %v3692 = vrot.slane %v2890, 5
        %v3693 = vsel %vm2167, %v3691, %v3692
        %v3694 = vrot.slane %v3692, 4
        %v3695 = vrot.slane %v2891, 5
        %v3696 = vsel %vm2167, %v3694, %v3695
        %v3697 = vrot.slane %v3549, 5
        %v3698 = vrot.slane %v3697, 4
        %v3699 = vrot.slane %v2893, 5
        %v3700 = vsel %vm2167, %v3698, %v3699
        %v3701 = vrot.slane %v3699, 4
        %v3702 = vrot.slane %v2894, 5
        %v3703 = vsel %vm2167, %v3701, %v3702
        %v3704 = vrot.slane %v3550, 5
        %v3705 = vrot.slane %v3704, 4
        %v3706 = vrot.slane %v2896, 5
        %v3707 = vsel %vm2167, %v3705, %v3706
        %v3708 = vrot.slane %v3706, 4
        %v3709 = vrot.slane %v2897, 5
        %v3710 = vsel %vm2167, %v3708, %v3709
        %s3711 = sadd.s32 %s1240, 5
        %s3712 = smul.u32 %s3711, 16
        %s3713 = smul.addr %s3712, 4
        %s3714 = scalar_lea.vmem [#allocation9], %s3713
        %v3715 = vld [vmem:[%s3714] sm:$0xf]
        %v3716 = vld [vmem:[%s3714 + $0x4] sm:$0xf]
        %v3717 = vld [vmem:[%s3714 + $0x8] sm:$0xf]
        %v3718 = vld [vmem:[%s3714 + $0xc] sm:$0xf]
        %v3719 = vld [vmem:[%s3714 + $0x10] sm:$0xf]
        %v3720 = vld [vmem:[%s3714 + $0x14] sm:$0xf]
        %v3721 = vld [vmem:[%s3714 + $0x18] sm:$0xf]
        %v3722 = vld [vmem:[%s3714 + $0x1c] sm:$0xf]
        %v3723 = vld [vmem:[%s3714 + $0x20] sm:$0xf]
        %v3724 = vld [vmem:[%s3714 + $0x24] sm:$0xf]
        %v3725 = vld [vmem:[%s3714 + $0x28] sm:$0xf]
        %v3726 = vld [vmem:[%s3714 + $0x2c] sm:$0xf]
        %v3727 = vld [vmem:[%s3714 + $0x30] sm:$0xf]
        %v3728 = vld [vmem:[%s3714 + $0x34] sm:$0xf]
        %v3729 = vld [vmem:[%s3714 + $0x38] sm:$0xf]
        %v3730 = vld [vmem:[%s3714 + $0x3c] sm:$0xf]
        %v3731 = vunpack.c.l.b16 %v3602
        %v3732 = vunpack.c.l.b16 %v3605
        %v3733 = vunpack.c.l.b16 %v3609
        %v3734 = vunpack.c.l.b16 %v3612
        %v3735 = vunpack.c.l.b16 %v3616
        %v3736 = vunpack.c.l.b16 %v3619
        %v3737 = vunpack.c.l.b16 %v3623
        %v3738 = vunpack.c.l.b16 %v3626
        %v3739 = vunpack.c.l.b16 %v3630
        %v3740 = vunpack.c.l.b16 %v3633
        %v3741 = vunpack.c.l.b16 %v3637
        %v3742 = vunpack.c.l.b16 %v3640
        %v3743 = vunpack.c.l.b16 %v3644
        %v3744 = vunpack.c.l.b16 %v3647
        %v3745 = vunpack.c.l.b16 %v3651
        %v3746 = vunpack.c.l.b16 %v3654
        %v3747 = vunpack.c.l.b16 %v3658
        %v3748 = vunpack.c.l.b16 %v3661
        %v3749 = vunpack.c.l.b16 %v3665
        %v3750 = vunpack.c.l.b16 %v3668
        %v3751 = vunpack.c.l.b16 %v3672
        %v3752 = vunpack.c.l.b16 %v3675
        %v3753 = vunpack.c.l.b16 %v3679
        %v3754 = vunpack.c.l.b16 %v3682
        %v3755 = vunpack.c.l.b16 %v3686
        %v3756 = vunpack.c.l.b16 %v3689
        %v3757 = vunpack.c.l.b16 %v3693
        %v3758 = vunpack.c.l.b16 %v3696
        %v3759 = vunpack.c.l.b16 %v3700
        %v3760 = vunpack.c.l.b16 %v3703
        %v3761 = vunpack.c.l.b16 %v3707
        %v3762 = vunpack.c.l.b16 %v3710
        %v3763 = vpack.c.b16 %v3732, %v3731
        %v3764 = vpack.c.b16 %v3734, %v3733
        %v3765 = vpack.c.b16 %v3736, %v3735
        %v3766 = vpack.c.b16 %v3738, %v3737
        %v3767 = vpack.c.b16 %v3740, %v3739
        %v3768 = vpack.c.b16 %v3742, %v3741
        %v3769 = vpack.c.b16 %v3744, %v3743
        %v3770 = vpack.c.b16 %v3746, %v3745
        %v3771 = vpack.c.b16 %v3748, %v3747
        %v3772 = vpack.c.b16 %v3750, %v3749
        %v3773 = vpack.c.b16 %v3752, %v3751
        %v3774 = vpack.c.b16 %v3754, %v3753
        %v3775 = vpack.c.b16 %v3756, %v3755
        %v3776 = vpack.c.b16 %v3758, %v3757
        %v3777 = vpack.c.b16 %v3760, %v3759
        %v3778 = vpack.c.b16 %v3762, %v3761
        %v3811 = vunpack.c.l.b16 %v3715
        %v3812 = vunpack.c.l.b16 %v3716
        %v3813 = vunpack.c.l.b16 %v3717
        %v3814 = vunpack.c.l.b16 %v3718
        %v3815 = vunpack.c.l.b16 %v3719
        %v3816 = vunpack.c.l.b16 %v3720
        %v3817 = vunpack.c.l.b16 %v3721
        %v3818 = vunpack.c.l.b16 %v3722
        %v3819 = vunpack.c.l.b16 %v3723
        %v3820 = vunpack.c.l.b16 %v3724
        %v3821 = vunpack.c.l.b16 %v3725
        %v3822 = vunpack.c.l.b16 %v3726
        %v3823 = vunpack.c.l.b16 %v3727
        %v3824 = vunpack.c.l.b16 %v3728
        %v3825 = vunpack.c.l.b16 %v3729
        %v3826 = vunpack.c.l.b16 %v3730
        %v3827 = vpack.c.b16 %v3812, %v3811
        %v3828 = vpack.c.b16 %v3814, %v3813
        %v3829 = vpack.c.b16 %v3816, %v3815
        %v3830 = vpack.c.b16 %v3818, %v3817
        %v3831 = vpack.c.b16 %v3820, %v3819
        %v3832 = vpack.c.b16 %v3822, %v3821
        %v3833 = vpack.c.b16 %v3824, %v3823
        %v3834 = vpack.c.b16 %v3826, %v3825
        %3843 = vmatpush.bf16.msra.mxu0 %v3834
        %3844 = vmatpush.bf16.msra.mxu0 %v3833
        %3845 = vmatpush.bf16.msra.mxu0 %v3832
        %3846 = vmatpush.bf16.msra.mxu0 %v3831
        %3847 = vmatpush.bf16.msra.mxu0 %v3830
        %3848 = vmatpush.bf16.msra.mxu0 %v3829
        %3849 = vmatpush.bf16.msra.mxu0 %v3828
        %3850 = vmatpush.bf16.msra.mxu0 %v3827
        %3851 = vmatmul.bf16.gmra.mxu0 %v3763
        %v3852 = vpop.f32.mrf.mxu0
        %v3853 = vadd.f32 0.0, %v3852
        %v3854 = vpop.f32.mrf.mxu0
        %v3855 = vadd.f32 0.0, %v3854
        %3856 = vmatmul.bf16.gmra.mxu0 %v3764
        %v3857 = vpop.f32.mrf.mxu0
        %v3858 = vadd.f32 0.0, %v3857
        %v3859 = vpop.f32.mrf.mxu0
        %v3860 = vadd.f32 0.0, %v3859
        %3861 = vmatmul.bf16.gmra.mxu0 %v3765
        %v3862 = vpop.f32.mrf.mxu0
        %v3863 = vadd.f32 0.0, %v3862
        %v3864 = vpop.f32.mrf.mxu0
        %v3865 = vadd.f32 0.0, %v3864
        %3866 = vmatmul.bf16.gmra.mxu0 %v3766
        %v3867 = vpop.f32.mrf.mxu0
        %v3868 = vadd.f32 0.0, %v3867
        %v3869 = vpop.f32.mrf.mxu0
        %v3870 = vadd.f32 0.0, %v3869
        %3871 = vmatmul.bf16.gmra.mxu0 %v3767
        %v3872 = vpop.f32.mrf.mxu0
        %v3873 = vadd.f32 0.0, %v3872
        %v3874 = vpop.f32.mrf.mxu0
        %v3875 = vadd.f32 0.0, %v3874
        %3876 = vmatmul.bf16.gmra.mxu0 %v3768
        %v3877 = vpop.f32.mrf.mxu0
        %v3878 = vadd.f32 0.0, %v3877
        %v3879 = vpop.f32.mrf.mxu0
        %v3880 = vadd.f32 0.0, %v3879
        %3881 = vmatmul.bf16.gmra.mxu0 %v3769
        %v3882 = vpop.f32.mrf.mxu0
        %v3883 = vadd.f32 0.0, %v3882
        %v3884 = vpop.f32.mrf.mxu0
        %v3885 = vadd.f32 0.0, %v3884
        %3886 = vmatmul.bf16.gmra.mxu0 %v3770
        %v3887 = vpop.f32.mrf.mxu0
        %v3888 = vadd.f32 0.0, %v3887
        %v3889 = vpop.f32.mrf.mxu0
        %v3890 = vadd.f32 0.0, %v3889
        %3891 = vmatmul.bf16.gmra.mxu0 %v3771
        %v3892 = vpop.f32.mrf.mxu0
        %v3893 = vadd.f32 0.0, %v3892
        %v3894 = vpop.f32.mrf.mxu0
        %v3895 = vadd.f32 0.0, %v3894
        %3896 = vmatmul.bf16.gmra.mxu0 %v3772
        %v3897 = vpop.f32.mrf.mxu0
        %v3898 = vadd.f32 0.0, %v3897
        %v3899 = vpop.f32.mrf.mxu0
        %v3900 = vadd.f32 0.0, %v3899
        %3901 = vmatmul.bf16.gmra.mxu0 %v3773
        %v3902 = vpop.f32.mrf.mxu0
        %v3903 = vadd.f32 0.0, %v3902
        %v3904 = vpop.f32.mrf.mxu0
        %v3905 = vadd.f32 0.0, %v3904
        %3906 = vmatmul.bf16.gmra.mxu0 %v3774
        %v3907 = vpop.f32.mrf.mxu0
        %v3908 = vadd.f32 0.0, %v3907
        %v3909 = vpop.f32.mrf.mxu0
        %v3910 = vadd.f32 0.0, %v3909
        %3911 = vmatmul.bf16.gmra.mxu0 %v3775
        %v3912 = vpop.f32.mrf.mxu0
        %v3913 = vadd.f32 0.0, %v3912
        %v3914 = vpop.f32.mrf.mxu0
        %v3915 = vadd.f32 0.0, %v3914
        %3916 = vmatmul.bf16.gmra.mxu0 %v3776
        %v3917 = vpop.f32.mrf.mxu0
        %v3918 = vadd.f32 0.0, %v3917
        %v3919 = vpop.f32.mrf.mxu0
        %v3920 = vadd.f32 0.0, %v3919
        %3921 = vmatmul.bf16.gmra.mxu0 %v3777
        %v3922 = vpop.f32.mrf.mxu0
        %v3923 = vadd.f32 0.0, %v3922
        %v3924 = vpop.f32.mrf.mxu0
        %v3925 = vadd.f32 0.0, %v3924
        %3926 = vmatmul.bf16.gmra.mxu0 %v3778
        %v3927 = vpop.f32.mrf.mxu0
        %v3928 = vadd.f32 0.0, %v3927
        %v3929 = vpop.f32.mrf.mxu0
        %v3930 = vadd.f32 0.0, %v3929
        %3931 = vdwg.mxu0
        %v3932 = vadd.f32 %v3503, %v3853
        %v3933 = vadd.f32 %v3504, %v3855
        %v3934 = vadd.f32 %v3505, %v3858
        %v3935 = vadd.f32 %v3506, %v3860
        %v3936 = vadd.f32 %v3507, %v3863
        %v3937 = vadd.f32 %v3508, %v3865
        %v3938 = vadd.f32 %v3509, %v3868
        %v3939 = vadd.f32 %v3510, %v3870
        %v3940 = vadd.f32 %v3511, %v3873
        %v3941 = vadd.f32 %v3512, %v3875
        %v3942 = vadd.f32 %v3513, %v3878
        %v3943 = vadd.f32 %v3514, %v3880
        %v3944 = vadd.f32 %v3515, %v3883
        %v3945 = vadd.f32 %v3516, %v3885
        %v3946 = vadd.f32 %v3517, %v3888
        %v3947 = vadd.f32 %v3518, %v3890
        %v3948 = vadd.f32 %v3519, %v3893
        %v3949 = vadd.f32 %v3520, %v3895
        %v3950 = vadd.f32 %v3521, %v3898
        %v3951 = vadd.f32 %v3522, %v3900
        %v3952 = vadd.f32 %v3523, %v3903
        %v3953 = vadd.f32 %v3524, %v3905
        %v3954 = vadd.f32 %v3525, %v3908
        %v3955 = vadd.f32 %v3526, %v3910
        %v3956 = vadd.f32 %v3527, %v3913
        %v3957 = vadd.f32 %v3528, %v3915
        %v3958 = vadd.f32 %v3529, %v3918
        %v3959 = vadd.f32 %v3530, %v3920
        %v3960 = vadd.f32 %v3531, %v3923
        %v3961 = vadd.f32 %v3532, %v3925
        %v3962 = vadd.f32 %v3533, %v3928
        %v3963 = vadd.f32 %v3534, %v3930
        %s3964 = scalar_lea.vmem [#allocation2], 24
        %v3965 = vld [vmem:[%s3964] sm:$0xf]
        %v3966 = vld [vmem:[%s3964 + $0x4] sm:$0xf]
        %v3967 = vld [vmem:[%s3964 + $0xc] sm:$0xf]
        %v3968 = vld [vmem:[%s3964 + $0x10] sm:$0xf]
        %v3969 = vld [vmem:[%s3964 + $0x18] sm:$0xf]
        %v3970 = vld [vmem:[%s3964 + $0x1c] sm:$0xf]
        %v3971 = vld [vmem:[%s3964 + $0x24] sm:$0xf]
        %v3972 = vld [vmem:[%s3964 + $0x28] sm:$0xf]
        %v3973 = vld [vmem:[%s3964 + $0x30] sm:$0xf]
        %v3974 = vld [vmem:[%s3964 + $0x34] sm:$0xf]
        %v3975 = vld [vmem:[%s3964 + $0x3c] sm:$0xf]
        %v3976 = vld [vmem:[%s3964 + $0x40] sm:$0xf]
        %v3977 = vld [vmem:[%s3964 + $0x48] sm:$0xf]
        %v3978 = vld [vmem:[%s3964 + $0x4c] sm:$0xf]
        %v3979 = vld [vmem:[%s3964 + $0x54] sm:$0xf]
        %v3980 = vld [vmem:[%s3964 + $0x58] sm:$0xf]
        %v3981 = vld [vmem:[%s3964 + $0x60] sm:$0xf]
        %v3982 = vld [vmem:[%s3964 + $0x64] sm:$0xf]
        %v3983 = vld [vmem:[%s3964 + $0x6c] sm:$0xf]
        %v3984 = vld [vmem:[%s3964 + $0x70] sm:$0xf]
        %v3985 = vld [vmem:[%s3964 + $0x78] sm:$0xf]
        %v3986 = vld [vmem:[%s3964 + $0x7c] sm:$0xf]
        %v3987 = vld [vmem:[%s3964 + $0x84] sm:$0xf]
        %v3988 = vld [vmem:[%s3964 + $0x88] sm:$0xf]
        %v3989 = vld [vmem:[%s3964 + $0x90] sm:$0xf]
        %v3990 = vld [vmem:[%s3964 + $0x94] sm:$0xf]
        %v3991 = vld [vmem:[%s3964 + $0x9c] sm:$0xf]
        %v3992 = vld [vmem:[%s3964 + $0xa0] sm:$0xf]
        %v3993 = vld [vmem:[%s3964 + $0xa8] sm:$0xf]
        %v3994 = vld [vmem:[%s3964 + $0xac] sm:$0xf]
        %v3995 = vld [vmem:[%s3964 + $0xb4] sm:$0xf]
        %v3996 = vld [vmem:[%s3964 + $0xb8] sm:$0xf]
        %s3997 = sadd.s32 %s1240, 6
        %s3998 = smul.u32 %s3997, 16
        %s3999 = smul.addr %s3998, 4
        %s4000 = scalar_lea.vmem [#allocation9], %s3999
        %v4001 = vld [vmem:[%s4000] sm:$0xf]
        %v4002 = vld [vmem:[%s4000 + $0x4] sm:$0xf]
        %v4003 = vld [vmem:[%s4000 + $0x8] sm:$0xf]
        %v4004 = vld [vmem:[%s4000 + $0xc] sm:$0xf]
        %v4005 = vld [vmem:[%s4000 + $0x10] sm:$0xf]
        %v4006 = vld [vmem:[%s4000 + $0x14] sm:$0xf]
        %v4007 = vld [vmem:[%s4000 + $0x18] sm:$0xf]
        %v4008 = vld [vmem:[%s4000 + $0x1c] sm:$0xf]
        %v4009 = vld [vmem:[%s4000 + $0x20] sm:$0xf]
        %v4010 = vld [vmem:[%s4000 + $0x24] sm:$0xf]
        %v4011 = vld [vmem:[%s4000 + $0x28] sm:$0xf]
        %v4012 = vld [vmem:[%s4000 + $0x2c] sm:$0xf]
        %v4013 = vld [vmem:[%s4000 + $0x30] sm:$0xf]
        %v4014 = vld [vmem:[%s4000 + $0x34] sm:$0xf]
        %v4015 = vld [vmem:[%s4000 + $0x38] sm:$0xf]
        %v4016 = vld [vmem:[%s4000 + $0x3c] sm:$0xf]
        %v4049 = vunpack.c.l.b16 %v3965
        %v4050 = vunpack.c.l.b16 %v3966
        %v4051 = vunpack.c.l.b16 %v3967
        %v4052 = vunpack.c.l.b16 %v3968
        %v4053 = vunpack.c.l.b16 %v3969
        %v4054 = vunpack.c.l.b16 %v3970
        %v4055 = vunpack.c.l.b16 %v3971
        %v4056 = vunpack.c.l.b16 %v3972
        %v4057 = vunpack.c.l.b16 %v3973
        %v4058 = vunpack.c.l.b16 %v3974
        %v4059 = vunpack.c.l.b16 %v3975
        %v4060 = vunpack.c.l.b16 %v3976
        %v4061 = vunpack.c.l.b16 %v3977
        %v4062 = vunpack.c.l.b16 %v3978
        %v4063 = vunpack.c.l.b16 %v3979
        %v4064 = vunpack.c.l.b16 %v3980
        %v4065 = vunpack.c.l.b16 %v3981
        %v4066 = vunpack.c.l.b16 %v3982
        %v4067 = vunpack.c.l.b16 %v3983
        %v4068 = vunpack.c.l.b16 %v3984
        %v4069 = vunpack.c.l.b16 %v3985
        %v4070 = vunpack.c.l.b16 %v3986
        %v4071 = vunpack.c.l.b16 %v3987
        %v4072 = vunpack.c.l.b16 %v3988
        %v4073 = vunpack.c.l.b16 %v3989
        %v4074 = vunpack.c.l.b16 %v3990
        %v4075 = vunpack.c.l.b16 %v3991
        %v4076 = vunpack.c.l.b16 %v3992
        %v4077 = vunpack.c.l.b16 %v3993
        %v4078 = vunpack.c.l.b16 %v3994
        %v4079 = vunpack.c.l.b16 %v3995
        %v4080 = vunpack.c.l.b16 %v3996
        %v4081 = vpack.c.b16 %v4050, %v4049
        %v4082 = vpack.c.b16 %v4052, %v4051
        %v4083 = vpack.c.b16 %v4054, %v4053
        %v4084 = vpack.c.b16 %v4056, %v4055
        %v4085 = vpack.c.b16 %v4058, %v4057
        %v4086 = vpack.c.b16 %v4060, %v4059
        %v4087 = vpack.c.b16 %v4062, %v4061
        %v4088 = vpack.c.b16 %v4064, %v4063
        %v4089 = vpack.c.b16 %v4066, %v4065
        %v4090 = vpack.c.b16 %v4068, %v4067
        %v4091 = vpack.c.b16 %v4070, %v4069
        %v4092 = vpack.c.b16 %v4072, %v4071
        %v4093 = vpack.c.b16 %v4074, %v4073
        %v4094 = vpack.c.b16 %v4076, %v4075
        %v4095 = vpack.c.b16 %v4078, %v4077
        %v4096 = vpack.c.b16 %v4080, %v4079
        %v4129 = vunpack.c.l.b16 %v4001
        %v4130 = vunpack.c.l.b16 %v4002
        %v4131 = vunpack.c.l.b16 %v4003
        %v4132 = vunpack.c.l.b16 %v4004
        %v4133 = vunpack.c.l.b16 %v4005
        %v4134 = vunpack.c.l.b16 %v4006
        %v4135 = vunpack.c.l.b16 %v4007
        %v4136 = vunpack.c.l.b16 %v4008
        %v4137 = vunpack.c.l.b16 %v4009
        %v4138 = vunpack.c.l.b16 %v4010
        %v4139 = vunpack.c.l.b16 %v4011
        %v4140 = vunpack.c.l.b16 %v4012
        %v4141 = vunpack.c.l.b16 %v4013
        %v4142 = vunpack.c.l.b16 %v4014
        %v4143 = vunpack.c.l.b16 %v4015
        %v4144 = vunpack.c.l.b16 %v4016
        %v4145 = vpack.c.b16 %v4130, %v4129
        %v4146 = vpack.c.b16 %v4132, %v4131
        %v4147 = vpack.c.b16 %v4134, %v4133
        %v4148 = vpack.c.b16 %v4136, %v4135
        %v4149 = vpack.c.b16 %v4138, %v4137
        %v4150 = vpack.c.b16 %v4140, %v4139
        %v4151 = vpack.c.b16 %v4142, %v4141
        %v4152 = vpack.c.b16 %v4144, %v4143
        %4161 = vmatpush.bf16.msra.mxu0 %v4152
        %4162 = vmatpush.bf16.msra.mxu0 %v4151
        %4163 = vmatpush.bf16.msra.mxu0 %v4150
        %4164 = vmatpush.bf16.msra.mxu0 %v4149
        %4165 = vmatpush.bf16.msra.mxu0 %v4148
        %4166 = vmatpush.bf16.msra.mxu0 %v4147
        %4167 = vmatpush.bf16.msra.mxu0 %v4146
        %4168 = vmatpush.bf16.msra.mxu0 %v4145
        %4169 = vmatmul.bf16.gmra.mxu0 %v4081
        %v4170 = vpop.f32.mrf.mxu0
        %v4171 = vadd.f32 0.0, %v4170
        %v4172 = vpop.f32.mrf.mxu0
        %v4173 = vadd.f32 0.0, %v4172
        %4174 = vmatmul.bf16.gmra.mxu0 %v4082
        %v4175 = vpop.f32.mrf.mxu0
        %v4176 = vadd.f32 0.0, %v4175
        %v4177 = vpop.f32.mrf.mxu0
        %v4178 = vadd.f32 0.0, %v4177
        %4179 = vmatmul.bf16.gmra.mxu0 %v4083
        %v4180 = vpop.f32.mrf.mxu0
        %v4181 = vadd.f32 0.0, %v4180
        %v4182 = vpop.f32.mrf.mxu0
        %v4183 = vadd.f32 0.0, %v4182
        %4184 = vmatmul.bf16.gmra.mxu0 %v4084
        %v4185 = vpop.f32.mrf.mxu0
        %v4186 = vadd.f32 0.0, %v4185
        %v4187 = vpop.f32.mrf.mxu0
        %v4188 = vadd.f32 0.0, %v4187
        %4189 = vmatmul.bf16.gmra.mxu0 %v4085
        %v4190 = vpop.f32.mrf.mxu0
        %v4191 = vadd.f32 0.0, %v4190
        %v4192 = vpop.f32.mrf.mxu0
        %v4193 = vadd.f32 0.0, %v4192
        %4194 = vmatmul.bf16.gmra.mxu0 %v4086
        %v4195 = vpop.f32.mrf.mxu0
        %v4196 = vadd.f32 0.0, %v4195
        %v4197 = vpop.f32.mrf.mxu0
        %v4198 = vadd.f32 0.0, %v4197
        %4199 = vmatmul.bf16.gmra.mxu0 %v4087
        %v4200 = vpop.f32.mrf.mxu0
        %v4201 = vadd.f32 0.0, %v4200
        %v4202 = vpop.f32.mrf.mxu0
        %v4203 = vadd.f32 0.0, %v4202
        %4204 = vmatmul.bf16.gmra.mxu0 %v4088
        %v4205 = vpop.f32.mrf.mxu0
        %v4206 = vadd.f32 0.0, %v4205
        %v4207 = vpop.f32.mrf.mxu0
        %v4208 = vadd.f32 0.0, %v4207
        %4209 = vmatmul.bf16.gmra.mxu0 %v4089
        %v4210 = vpop.f32.mrf.mxu0
        %v4211 = vadd.f32 0.0, %v4210
        %v4212 = vpop.f32.mrf.mxu0
        %v4213 = vadd.f32 0.0, %v4212
        %4214 = vmatmul.bf16.gmra.mxu0 %v4090
        %v4215 = vpop.f32.mrf.mxu0
        %v4216 = vadd.f32 0.0, %v4215
        %v4217 = vpop.f32.mrf.mxu0
        %v4218 = vadd.f32 0.0, %v4217
        %4219 = vmatmul.bf16.gmra.mxu0 %v4091
        %v4220 = vpop.f32.mrf.mxu0
        %v4221 = vadd.f32 0.0, %v4220
        %v4222 = vpop.f32.mrf.mxu0
        %v4223 = vadd.f32 0.0, %v4222
        %4224 = vmatmul.bf16.gmra.mxu0 %v4092
        %v4225 = vpop.f32.mrf.mxu0
        %v4226 = vadd.f32 0.0, %v4225
        %v4227 = vpop.f32.mrf.mxu0
        %v4228 = vadd.f32 0.0, %v4227
        %4229 = vmatmul.bf16.gmra.mxu0 %v4093
        %v4230 = vpop.f32.mrf.mxu0
        %v4231 = vadd.f32 0.0, %v4230
        %v4232 = vpop.f32.mrf.mxu0
        %v4233 = vadd.f32 0.0, %v4232
        %4234 = vmatmul.bf16.gmra.mxu0 %v4094
        %v4235 = vpop.f32.mrf.mxu0
        %v4236 = vadd.f32 0.0, %v4235
        %v4237 = vpop.f32.mrf.mxu0
        %v4238 = vadd.f32 0.0, %v4237
        %4239 = vmatmul.bf16.gmra.mxu0 %v4095
        %v4240 = vpop.f32.mrf.mxu0
        %v4241 = vadd.f32 0.0, %v4240
        %v4242 = vpop.f32.mrf.mxu0
        %v4243 = vadd.f32 0.0, %v4242
        %4244 = vmatmul.bf16.gmra.mxu0 %v4096
        %v4245 = vpop.f32.mrf.mxu0
        %v4246 = vadd.f32 0.0, %v4245
        %v4247 = vpop.f32.mrf.mxu0
        %v4248 = vadd.f32 0.0, %v4247
        %4249 = vdwg.mxu0
        %v4250 = vadd.f32 %v3932, %v4171
        %v4251 = vadd.f32 %v3933, %v4173
        %v4252 = vadd.f32 %v3934, %v4176
        %v4253 = vadd.f32 %v3935, %v4178
        %v4254 = vadd.f32 %v3936, %v4181
        %v4255 = vadd.f32 %v3937, %v4183
        %v4256 = vadd.f32 %v3938, %v4186
        %v4257 = vadd.f32 %v3939, %v4188
        %v4258 = vadd.f32 %v3940, %v4191
        %v4259 = vadd.f32 %v3941, %v4193
        %v4260 = vadd.f32 %v3942, %v4196
        %v4261 = vadd.f32 %v3943, %v4198
        %v4262 = vadd.f32 %v3944, %v4201
        %v4263 = vadd.f32 %v3945, %v4203
        %v4264 = vadd.f32 %v3946, %v4206
        %v4265 = vadd.f32 %v3947, %v4208
        %v4266 = vadd.f32 %v3948, %v4211
        %v4267 = vadd.f32 %v3949, %v4213
        %v4268 = vadd.f32 %v3950, %v4216
        %v4269 = vadd.f32 %v3951, %v4218
        %v4270 = vadd.f32 %v3952, %v4221
        %v4271 = vadd.f32 %v3953, %v4223
        %v4272 = vadd.f32 %v3954, %v4226
        %v4273 = vadd.f32 %v3955, %v4228
        %v4274 = vadd.f32 %v3956, %v4231
        %v4275 = vadd.f32 %v3957, %v4233
        %v4276 = vadd.f32 %v3958, %v4236
        %v4277 = vadd.f32 %v3959, %v4238
        %v4278 = vadd.f32 %v3960, %v4241
        %v4279 = vadd.f32 %v3961, %v4243
        %v4280 = vadd.f32 %v3962, %v4246
        %v4281 = vadd.f32 %v3963, %v4248
        %v4282 = vld [vmem:[%s3964] sm:$0xf]
        %v4283 = vld [vmem:[%s3964 + $0x4] sm:$0xf]
        %v4284 = vld [vmem:[%s3964 + $0x8] sm:$0x1]
        %v4285 = vld [vmem:[%s3964 + $0xc] sm:$0xf]
        %v4286 = vld [vmem:[%s3964 + $0x10] sm:$0xf]
        %v4287 = vld [vmem:[%s3964 + $0x14] sm:$0x1]
        %v4288 = vld [vmem:[%s3964 + $0x18] sm:$0xf]
        %v4289 = vld [vmem:[%s3964 + $0x1c] sm:$0xf]
        %v4290 = vld [vmem:[%s3964 + $0x20] sm:$0x1]
        %v4291 = vld [vmem:[%s3964 + $0x24] sm:$0xf]
        %v4292 = vld [vmem:[%s3964 + $0x28] sm:$0xf]
        %v4293 = vld [vmem:[%s3964 + $0x2c] sm:$0x1]
        %v4294 = vld [vmem:[%s3964 + $0x30] sm:$0xf]
        %v4295 = vld [vmem:[%s3964 + $0x34] sm:$0xf]
        %v4296 = vld [vmem:[%s3964 + $0x38] sm:$0x1]
        %v4297 = vld [vmem:[%s3964 + $0x3c] sm:$0xf]
        %v4298 = vld [vmem:[%s3964 + $0x40] sm:$0xf]
        %v4299 = vld [vmem:[%s3964 + $0x44] sm:$0x1]
        %v4300 = vld [vmem:[%s3964 + $0x48] sm:$0xf]
        %v4301 = vld [vmem:[%s3964 + $0x4c] sm:$0xf]
        %v4302 = vld [vmem:[%s3964 + $0x50] sm:$0x1]
        %v4303 = vld [vmem:[%s3964 + $0x54] sm:$0xf]
        %v4304 = vld [vmem:[%s3964 + $0x58] sm:$0xf]
        %v4305 = vld [vmem:[%s3964 + $0x5c] sm:$0x1]
        %v4306 = vld [vmem:[%s3964 + $0x60] sm:$0xf]
        %v4307 = vld [vmem:[%s3964 + $0x64] sm:$0xf]
        %v4308 = vld [vmem:[%s3964 + $0x68] sm:$0x1]
        %v4309 = vld [vmem:[%s3964 + $0x6c] sm:$0xf]
        %v4310 = vld [vmem:[%s3964 + $0x70] sm:$0xf]
        %v4311 = vld [vmem:[%s3964 + $0x74] sm:$0x1]
        %v4312 = vld [vmem:[%s3964 + $0x78] sm:$0xf]
        %v4313 = vld [vmem:[%s3964 + $0x7c] sm:$0xf]
        %v4314 = vld [vmem:[%s3964 + $0x80] sm:$0x1]
        %v4315 = vld [vmem:[%s3964 + $0x84] sm:$0xf]
        %v4316 = vld [vmem:[%s3964 + $0x88] sm:$0xf]
        %v4317 = vld [vmem:[%s3964 + $0x8c] sm:$0x1]
        %v4318 = vld [vmem:[%s3964 + $0x90] sm:$0xf]
        %v4319 = vld [vmem:[%s3964 + $0x94] sm:$0xf]
        %v4320 = vld [vmem:[%s3964 + $0x98] sm:$0x1]
        %v4321 = vld [vmem:[%s3964 + $0x9c] sm:$0xf]
        %v4322 = vld [vmem:[%s3964 + $0xa0] sm:$0xf]
        %v4323 = vld [vmem:[%s3964 + $0xa4] sm:$0x1]
        %v4324 = vld [vmem:[%s3964 + $0xa8] sm:$0xf]
        %v4325 = vld [vmem:[%s3964 + $0xac] sm:$0xf]
        %v4326 = vld [vmem:[%s3964 + $0xb0] sm:$0x1]
        %v4327 = vld [vmem:[%s3964 + $0xb4] sm:$0xf]
        %v4328 = vld [vmem:[%s3964 + $0xb8] sm:$0xf]
        %v4329 = vld [vmem:[%s3964 + $0xbc] sm:$0x1]
        %v4331 = vshrl.u32 %v4282, 16
        %v4333 = vrot.slane %v4331, 4
        %v4334 = vshll.u32 %v4282, 16
        %v4336 = vrot.slane %v4334, 5
        %v4337 = vor.u32 %v4333, %v4336
        %v4338 = vrot.slane %v4337, 4
        %v4340 = vshll.u32 %v4283, 16
        %v4342 = vrot.slane %v4340, 5
        %v4343 = vsel %vm1278, %v4338, %v4342
        %v4344 = vshrl.u32 %v4283, 16
        %v4346 = vrot.slane %v4344, 4
        %v4347 = vor.u32 %v4346, %v4342
        %v4348 = vrot.slane %v4347, 4
        %v4350 = vshll.u32 %v4284, 16
        %v4352 = vrot.slane %v4350, 5
        %v4353 = vsel %vm1278, %v4348, %v4352
        %v4355 = vshrl.u32 %v4285, 16
        %v4357 = vrot.slane %v4355, 4
        %v4358 = vshll.u32 %v4285, 16
        %v4360 = vrot.slane %v4358, 5
        %v4361 = vor.u32 %v4357, %v4360
        %v4362 = vrot.slane %v4361, 4
        %v4364 = vshll.u32 %v4286, 16
        %v4366 = vrot.slane %v4364, 5
        %v4367 = vsel %vm1278, %v4362, %v4366
        %v4368 = vshrl.u32 %v4286, 16
        %v4370 = vrot.slane %v4368, 4
        %v4371 = vor.u32 %v4370, %v4366
        %v4372 = vrot.slane %v4371, 4
        %v4374 = vshll.u32 %v4287, 16
        %v4376 = vrot.slane %v4374, 5
        %v4377 = vsel %vm1278, %v4372, %v4376
        %v4379 = vshrl.u32 %v4288, 16
        %v4381 = vrot.slane %v4379, 4
        %v4382 = vshll.u32 %v4288, 16
        %v4384 = vrot.slane %v4382, 5
        %v4385 = vor.u32 %v4381, %v4384
        %v4386 = vrot.slane %v4385, 4
        %v4388 = vshll.u32 %v4289, 16
        %v4390 = vrot.slane %v4388, 5
        %v4391 = vsel %vm1278, %v4386, %v4390
        %v4392 = vshrl.u32 %v4289, 16
        %v4394 = vrot.slane %v4392, 4
        %v4395 = vor.u32 %v4394, %v4390
        %v4396 = vrot.slane %v4395, 4
        %v4398 = vshll.u32 %v4290, 16
        %v4400 = vrot.slane %v4398, 5
        %v4401 = vsel %vm1278, %v4396, %v4400
        %v4403 = vshrl.u32 %v4291, 16
        %v4405 = vrot.slane %v4403, 4
        %v4406 = vshll.u32 %v4291, 16
        %v4408 = vrot.slane %v4406, 5
        %v4409 = vor.u32 %v4405, %v4408
        %v4410 = vrot.slane %v4409, 4
        %v4412 = vshll.u32 %v4292, 16
        %v4414 = vrot.slane %v4412, 5
        %v4415 = vsel %vm1278, %v4410, %v4414
        %v4416 = vshrl.u32 %v4292, 16
        %v4418 = vrot.slane %v4416, 4
        %v4419 = vor.u32 %v4418, %v4414
        %v4420 = vrot.slane %v4419, 4
        %v4422 = vshll.u32 %v4293, 16
        %v4424 = vrot.slane %v4422, 5
        %v4425 = vsel %vm1278, %v4420, %v4424
        %v4427 = vshrl.u32 %v4294, 16
        %v4429 = vrot.slane %v4427, 4
        %v4430 = vshll.u32 %v4294, 16
        %v4432 = vrot.slane %v4430, 5
        %v4433 = vor.u32 %v4429, %v4432
        %v4434 = vrot.slane %v4433, 4
        %v4436 = vshll.u32 %v4295, 16
        %v4438 = vrot.slane %v4436, 5
        %v4439 = vsel %vm1278, %v4434, %v4438
        %v4440 = vshrl.u32 %v4295, 16
        %v4442 = vrot.slane %v4440, 4
        %v4443 = vor.u32 %v4442, %v4438
        %v4444 = vrot.slane %v4443, 4
        %v4446 = vshll.u32 %v4296, 16
        %v4448 = vrot.slane %v4446, 5
        %v4449 = vsel %vm1278, %v4444, %v4448
        %v4451 = vshrl.u32 %v4297, 16
        %v4453 = vrot.slane %v4451, 4
        %v4454 = vshll.u32 %v4297, 16
        %v4456 = vrot.slane %v4454, 5
        %v4457 = vor.u32 %v4453, %v4456
        %v4458 = vrot.slane %v4457, 4
        %v4460 = vshll.u32 %v4298, 16
        %v4462 = vrot.slane %v4460, 5
        %v4463 = vsel %vm1278, %v4458, %v4462
        %v4464 = vshrl.u32 %v4298, 16
        %v4466 = vrot.slane %v4464, 4
        %v4467 = vor.u32 %v4466, %v4462
        %v4468 = vrot.slane %v4467, 4
        %v4470 = vshll.u32 %v4299, 16
        %v4472 = vrot.slane %v4470, 5
        %v4473 = vsel %vm1278, %v4468, %v4472
        %v4475 = vshrl.u32 %v4300, 16
        %v4477 = vrot.slane %v4475, 4
        %v4478 = vshll.u32 %v4300, 16
        %v4480 = vrot.slane %v4478, 5
        %v4481 = vor.u32 %v4477, %v4480
        %v4482 = vrot.slane %v4481, 4
        %v4484 = vshll.u32 %v4301, 16
        %v4486 = vrot.slane %v4484, 5
        %v4487 = vsel %vm1278, %v4482, %v4486
        %v4488 = vshrl.u32 %v4301, 16
        %v4490 = vrot.slane %v4488, 4
        %v4491 = vor.u32 %v4490, %v4486
        %v4492 = vrot.slane %v4491, 4
        %v4494 = vshll.u32 %v4302, 16
        %v4496 = vrot.slane %v4494, 5
        %v4497 = vsel %vm1278, %v4492, %v4496
        %v4499 = vshrl.u32 %v4303, 16
        %v4501 = vrot.slane %v4499, 4
        %v4502 = vshll.u32 %v4303, 16
        %v4504 = vrot.slane %v4502, 5
        %v4505 = vor.u32 %v4501, %v4504
        %v4506 = vrot.slane %v4505, 4
        %v4508 = vshll.u32 %v4304, 16
        %v4510 = vrot.slane %v4508, 5
        %v4511 = vsel %vm1278, %v4506, %v4510
        %v4512 = vshrl.u32 %v4304, 16
        %v4514 = vrot.slane %v4512, 4
        %v4515 = vor.u32 %v4514, %v4510
        %v4516 = vrot.slane %v4515, 4
        %v4518 = vshll.u32 %v4305, 16
        %v4520 = vrot.slane %v4518, 5
        %v4521 = vsel %vm1278, %v4516, %v4520
        %v4523 = vshrl.u32 %v4306, 16
        %v4525 = vrot.slane %v4523, 4
        %v4526 = vshll.u32 %v4306, 16
        %v4528 = vrot.slane %v4526, 5
        %v4529 = vor.u32 %v4525, %v4528
        %v4530 = vrot.slane %v4529, 4
        %v4532 = vshll.u32 %v4307, 16
        %v4534 = vrot.slane %v4532, 5
        %v4535 = vsel %vm1278, %v4530, %v4534
        %v4536 = vshrl.u32 %v4307, 16
        %v4538 = vrot.slane %v4536, 4
        %v4539 = vor.u32 %v4538, %v4534
        %v4540 = vrot.slane %v4539, 4
        %v4542 = vshll.u32 %v4308, 16
        %v4544 = vrot.slane %v4542, 5
        %v4545 = vsel %vm1278, %v4540, %v4544
        %v4547 = vshrl.u32 %v4309, 16
        %v4549 = vrot.slane %v4547, 4
        %v4550 = vshll.u32 %v4309, 16
        %v4552 = vrot.slane %v4550, 5
        %v4553 = vor.u32 %v4549, %v4552
        %v4554 = vrot.slane %v4553, 4
        %v4556 = vshll.u32 %v4310, 16
        %v4558 = vrot.slane %v4556, 5
        %v4559 = vsel %vm1278, %v4554, %v4558
        %v4560 = vshrl.u32 %v4310, 16
        %v4562 = vrot.slane %v4560, 4
        %v4563 = vor.u32 %v4562, %v4558
        %v4564 = vrot.slane %v4563, 4
        %v4566 = vshll.u32 %v4311, 16
        %v4568 = vrot.slane %v4566, 5
        %v4569 = vsel %vm1278, %v4564, %v4568
        %v4571 = vshrl.u32 %v4312, 16
        %v4573 = vrot.slane %v4571, 4
        %v4574 = vshll.u32 %v4312, 16
        %v4576 = vrot.slane %v4574, 5
        %v4577 = vor.u32 %v4573, %v4576
        %v4578 = vrot.slane %v4577, 4
        %v4580 = vshll.u32 %v4313, 16
        %v4582 = vrot.slane %v4580, 5
        %v4583 = vsel %vm1278, %v4578, %v4582
        %v4584 = vshrl.u32 %v4313, 16
        %v4586 = vrot.slane %v4584, 4
        %v4587 = vor.u32 %v4586, %v4582
        %v4588 = vrot.slane %v4587, 4
        %v4590 = vshll.u32 %v4314, 16
        %v4592 = vrot.slane %v4590, 5
        %v4593 = vsel %vm1278, %v4588, %v4592
        %v4595 = vshrl.u32 %v4315, 16
        %v4597 = vrot.slane %v4595, 4
        %v4598 = vshll.u32 %v4315, 16
        %v4600 = vrot.slane %v4598, 5
        %v4601 = vor.u32 %v4597, %v4600
        %v4602 = vrot.slane %v4601, 4
        %v4604 = vshll.u32 %v4316, 16
        %v4606 = vrot.slane %v4604, 5
        %v4607 = vsel %vm1278, %v4602, %v4606
        %v4608 = vshrl.u32 %v4316, 16
        %v4610 = vrot.slane %v4608, 4
        %v4611 = vor.u32 %v4610, %v4606
        %v4612 = vrot.slane %v4611, 4
        %v4614 = vshll.u32 %v4317, 16
        %v4616 = vrot.slane %v4614, 5
        %v4617 = vsel %vm1278, %v4612, %v4616
        %v4619 = vshrl.u32 %v4318, 16
        %v4621 = vrot.slane %v4619, 4
        %v4622 = vshll.u32 %v4318, 16
        %v4624 = vrot.slane %v4622, 5
        %v4625 = vor.u32 %v4621, %v4624
        %v4626 = vrot.slane %v4625, 4
        %v4628 = vshll.u32 %v4319, 16
        %v4630 = vrot.slane %v4628, 5
        %v4631 = vsel %vm1278, %v4626, %v4630
        %v4632 = vshrl.u32 %v4319, 16
        %v4634 = vrot.slane %v4632, 4
        %v4635 = vor.u32 %v4634, %v4630
        %v4636 = vrot.slane %v4635, 4
        %v4638 = vshll.u32 %v4320, 16
        %v4640 = vrot.slane %v4638, 5
        %v4641 = vsel %vm1278, %v4636, %v4640
        %v4643 = vshrl.u32 %v4321, 16
        %v4645 = vrot.slane %v4643, 4
        %v4646 = vshll.u32 %v4321, 16
        %v4648 = vrot.slane %v4646, 5
        %v4649 = vor.u32 %v4645, %v4648
        %v4650 = vrot.slane %v4649, 4
        %v4652 = vshll.u32 %v4322, 16
        %v4654 = vrot.slane %v4652, 5
        %v4655 = vsel %vm1278, %v4650, %v4654
        %v4656 = vshrl.u32 %v4322, 16
        %v4658 = vrot.slane %v4656, 4
        %v4659 = vor.u32 %v4658, %v4654
        %v4660 = vrot.slane %v4659, 4
        %v4662 = vshll.u32 %v4323, 16
        %v4664 = vrot.slane %v4662, 5
        %v4665 = vsel %vm1278, %v4660, %v4664
        %v4667 = vshrl.u32 %v4324, 16
        %v4669 = vrot.slane %v4667, 4
        %v4670 = vshll.u32 %v4324, 16
        %v4672 = vrot.slane %v4670, 5
        %v4673 = vor.u32 %v4669, %v4672
        %v4674 = vrot.slane %v4673, 4
        %v4676 = vshll.u32 %v4325, 16
        %v4678 = vrot.slane %v4676, 5
        %v4679 = vsel %vm1278, %v4674, %v4678
        %v4680 = vshrl.u32 %v4325, 16
        %v4682 = vrot.slane %v4680, 4
        %v4683 = vor.u32 %v4682, %v4678
        %v4684 = vrot.slane %v4683, 4
        %v4686 = vshll.u32 %v4326, 16
        %v4688 = vrot.slane %v4686, 5
        %v4689 = vsel %vm1278, %v4684, %v4688
        %v4691 = vshrl.u32 %v4327, 16
        %v4693 = vrot.slane %v4691, 4
        %v4694 = vshll.u32 %v4327, 16
        %v4696 = vrot.slane %v4694, 5
        %v4697 = vor.u32 %v4693, %v4696
        %v4698 = vrot.slane %v4697, 4
        %v4700 = vshll.u32 %v4328, 16
        %v4702 = vrot.slane %v4700, 5
        %v4703 = vsel %vm1278, %v4698, %v4702
        %v4704 = vshrl.u32 %v4328, 16
        %v4706 = vrot.slane %v4704, 4
        %v4707 = vor.u32 %v4706, %v4702
        %v4708 = vrot.slane %v4707, 4
        %v4710 = vshll.u32 %v4329, 16
        %v4712 = vrot.slane %v4710, 5
        %v4713 = vsel %vm1278, %v4708, %v4712
        %s4714 = sadd.s32 %s1240, 7
        %s4715 = smul.u32 %s4714, 16
        %s4716 = smul.addr %s4715, 4
        %s4717 = scalar_lea.vmem [#allocation9], %s4716
        %v4718 = vld [vmem:[%s4717] sm:$0xf]
        %v4719 = vld [vmem:[%s4717 + $0x4] sm:$0xf]
        %v4720 = vld [vmem:[%s4717 + $0x8] sm:$0xf]
        %v4721 = vld [vmem:[%s4717 + $0xc] sm:$0xf]
        %v4722 = vld [vmem:[%s4717 + $0x10] sm:$0xf]
        %v4723 = vld [vmem:[%s4717 + $0x14] sm:$0xf]
        %v4724 = vld [vmem:[%s4717 + $0x18] sm:$0xf]
        %v4725 = vld [vmem:[%s4717 + $0x1c] sm:$0xf]
        %v4726 = vld [vmem:[%s4717 + $0x20] sm:$0xf]
        %v4727 = vld [vmem:[%s4717 + $0x24] sm:$0xf]
        %v4728 = vld [vmem:[%s4717 + $0x28] sm:$0xf]
        %v4729 = vld [vmem:[%s4717 + $0x2c] sm:$0xf]
        %v4730 = vld [vmem:[%s4717 + $0x30] sm:$0xf]
        %v4731 = vld [vmem:[%s4717 + $0x34] sm:$0xf]
        %v4732 = vld [vmem:[%s4717 + $0x38] sm:$0xf]
        %v4733 = vld [vmem:[%s4717 + $0x3c] sm:$0xf]
        %v4734 = vunpack.c.l.b16 %v4343
        %v4735 = vunpack.c.l.b16 %v4353
        %v4736 = vunpack.c.l.b16 %v4367
        %v4737 = vunpack.c.l.b16 %v4377
        %v4738 = vunpack.c.l.b16 %v4391
        %v4739 = vunpack.c.l.b16 %v4401
        %v4740 = vunpack.c.l.b16 %v4415
        %v4741 = vunpack.c.l.b16 %v4425
        %v4742 = vunpack.c.l.b16 %v4439
        %v4743 = vunpack.c.l.b16 %v4449
        %v4744 = vunpack.c.l.b16 %v4463
        %v4745 = vunpack.c.l.b16 %v4473
        %v4746 = vunpack.c.l.b16 %v4487
        %v4747 = vunpack.c.l.b16 %v4497
        %v4748 = vunpack.c.l.b16 %v4511
        %v4749 = vunpack.c.l.b16 %v4521
        %v4750 = vunpack.c.l.b16 %v4535
        %v4751 = vunpack.c.l.b16 %v4545
        %v4752 = vunpack.c.l.b16 %v4559
        %v4753 = vunpack.c.l.b16 %v4569
        %v4754 = vunpack.c.l.b16 %v4583
        %v4755 = vunpack.c.l.b16 %v4593
        %v4756 = vunpack.c.l.b16 %v4607
        %v4757 = vunpack.c.l.b16 %v4617
        %v4758 = vunpack.c.l.b16 %v4631
        %v4759 = vunpack.c.l.b16 %v4641
        %v4760 = vunpack.c.l.b16 %v4655
        %v4761 = vunpack.c.l.b16 %v4665
        %v4762 = vunpack.c.l.b16 %v4679
        %v4763 = vunpack.c.l.b16 %v4689
        %v4764 = vunpack.c.l.b16 %v4703
        %v4765 = vunpack.c.l.b16 %v4713
        %v4766 = vpack.c.b16 %v4735, %v4734
        %v4767 = vpack.c.b16 %v4737, %v4736
        %v4768 = vpack.c.b16 %v4739, %v4738
        %v4769 = vpack.c.b16 %v4741, %v4740
        %v4770 = vpack.c.b16 %v4743, %v4742
        %v4771 = vpack.c.b16 %v4745, %v4744
        %v4772 = vpack.c.b16 %v4747, %v4746
        %v4773 = vpack.c.b16 %v4749, %v4748
        %v4774 = vpack.c.b16 %v4751, %v4750
        %v4775 = vpack.c.b16 %v4753, %v4752
        %v4776 = vpack.c.b16 %v4755, %v4754
        %v4777 = vpack.c.b16 %v4757, %v4756
        %v4778 = vpack.c.b16 %v4759, %v4758
        %v4779 = vpack.c.b16 %v4761, %v4760
        %v4780 = vpack.c.b16 %v4763, %v4762
        %v4781 = vpack.c.b16 %v4765, %v4764
        %v4814 = vunpack.c.l.b16 %v4718
        %v4815 = vunpack.c.l.b16 %v4719
        %v4816 = vunpack.c.l.b16 %v4720
        %v4817 = vunpack.c.l.b16 %v4721
        %v4818 = vunpack.c.l.b16 %v4722
        %v4819 = vunpack.c.l.b16 %v4723
        %v4820 = vunpack.c.l.b16 %v4724
        %v4821 = vunpack.c.l.b16 %v4725
        %v4822 = vunpack.c.l.b16 %v4726
        %v4823 = vunpack.c.l.b16 %v4727
        %v4824 = vunpack.c.l.b16 %v4728
        %v4825 = vunpack.c.l.b16 %v4729
        %v4826 = vunpack.c.l.b16 %v4730
        %v4827 = vunpack.c.l.b16 %v4731
        %v4828 = vunpack.c.l.b16 %v4732
        %v4829 = vunpack.c.l.b16 %v4733
        %v4830 = vpack.c.b16 %v4815, %v4814
        %v4831 = vpack.c.b16 %v4817, %v4816
        %v4832 = vpack.c.b16 %v4819, %v4818
        %v4833 = vpack.c.b16 %v4821, %v4820
        %v4834 = vpack.c.b16 %v4823, %v4822
        %v4835 = vpack.c.b16 %v4825, %v4824
        %v4836 = vpack.c.b16 %v4827, %v4826
        %v4837 = vpack.c.b16 %v4829, %v4828
        %4846 = vmatpush.bf16.msra.mxu0 %v4837
        %4847 = vmatpush.bf16.msra.mxu0 %v4836
        %4848 = vmatpush.bf16.msra.mxu0 %v4835
        %4849 = vmatpush.bf16.msra.mxu0 %v4834
        %4850 = vmatpush.bf16.msra.mxu0 %v4833
        %4851 = vmatpush.bf16.msra.mxu0 %v4832
        %4852 = vmatpush.bf16.msra.mxu0 %v4831
        %4853 = vmatpush.bf16.msra.mxu0 %v4830
        %4854 = vmatmul.bf16.gmra.mxu0 %v4766
        %v4855 = vpop.f32.mrf.mxu0
        %v4856 = vadd.f32 0.0, %v4855
        %v4857 = vpop.f32.mrf.mxu0
        %v4858 = vadd.f32 0.0, %v4857
        %4859 = vmatmul.bf16.gmra.mxu0 %v4767
        %v4860 = vpop.f32.mrf.mxu0
        %v4861 = vadd.f32 0.0, %v4860
        %v4862 = vpop.f32.mrf.mxu0
        %v4863 = vadd.f32 0.0, %v4862
        %4864 = vmatmul.bf16.gmra.mxu0 %v4768
        %v4865 = vpop.f32.mrf.mxu0
        %v4866 = vadd.f32 0.0, %v4865
        %v4867 = vpop.f32.mrf.mxu0
        %v4868 = vadd.f32 0.0, %v4867
        %4869 = vmatmul.bf16.gmra.mxu0 %v4769
        %v4870 = vpop.f32.mrf.mxu0
        %v4871 = vadd.f32 0.0, %v4870
        %v4872 = vpop.f32.mrf.mxu0
        %v4873 = vadd.f32 0.0, %v4872
        %4874 = vmatmul.bf16.gmra.mxu0 %v4770
        %v4875 = vpop.f32.mrf.mxu0
        %v4876 = vadd.f32 0.0, %v4875
        %v4877 = vpop.f32.mrf.mxu0
        %v4878 = vadd.f32 0.0, %v4877
        %4879 = vmatmul.bf16.gmra.mxu0 %v4771
        %v4880 = vpop.f32.mrf.mxu0
        %v4881 = vadd.f32 0.0, %v4880
        %v4882 = vpop.f32.mrf.mxu0
        %v4883 = vadd.f32 0.0, %v4882
        %4884 = vmatmul.bf16.gmra.mxu0 %v4772
        %v4885 = vpop.f32.mrf.mxu0
        %v4886 = vadd.f32 0.0, %v4885
        %v4887 = vpop.f32.mrf.mxu0
        %v4888 = vadd.f32 0.0, %v4887
        %4889 = vmatmul.bf16.gmra.mxu0 %v4773
        %v4890 = vpop.f32.mrf.mxu0
        %v4891 = vadd.f32 0.0, %v4890
        %v4892 = vpop.f32.mrf.mxu0
        %v4893 = vadd.f32 0.0, %v4892
        %4894 = vmatmul.bf16.gmra.mxu0 %v4774
        %v4895 = vpop.f32.mrf.mxu0
        %v4896 = vadd.f32 0.0, %v4895
        %v4897 = vpop.f32.mrf.mxu0
        %v4898 = vadd.f32 0.0, %v4897
        %4899 = vmatmul.bf16.gmra.mxu0 %v4775
        %v4900 = vpop.f32.mrf.mxu0
        %v4901 = vadd.f32 0.0, %v4900
        %v4902 = vpop.f32.mrf.mxu0
        %v4903 = vadd.f32 0.0, %v4902
        %4904 = vmatmul.bf16.gmra.mxu0 %v4776
        %v4905 = vpop.f32.mrf.mxu0
        %v4906 = vadd.f32 0.0, %v4905
        %v4907 = vpop.f32.mrf.mxu0
        %v4908 = vadd.f32 0.0, %v4907
        %4909 = vmatmul.bf16.gmra.mxu0 %v4777
        %v4910 = vpop.f32.mrf.mxu0
        %v4911 = vadd.f32 0.0, %v4910
        %v4912 = vpop.f32.mrf.mxu0
        %v4913 = vadd.f32 0.0, %v4912
        %4914 = vmatmul.bf16.gmra.mxu0 %v4778
        %v4915 = vpop.f32.mrf.mxu0
        %v4916 = vadd.f32 0.0, %v4915
        %v4917 = vpop.f32.mrf.mxu0
        %v4918 = vadd.f32 0.0, %v4917
        %4919 = vmatmul.bf16.gmra.mxu0 %v4779
        %v4920 = vpop.f32.mrf.mxu0
        %v4921 = vadd.f32 0.0, %v4920
        %v4922 = vpop.f32.mrf.mxu0
        %v4923 = vadd.f32 0.0, %v4922
        %4924 = vmatmul.bf16.gmra.mxu0 %v4780
        %v4925 = vpop.f32.mrf.mxu0
        %v4926 = vadd.f32 0.0, %v4925
        %v4927 = vpop.f32.mrf.mxu0
        %v4928 = vadd.f32 0.0, %v4927
        %4929 = vmatmul.bf16.gmra.mxu0 %v4781
        %v4930 = vpop.f32.mrf.mxu0
        %v4931 = vadd.f32 0.0, %v4930
        %v4932 = vpop.f32.mrf.mxu0
        %v4933 = vadd.f32 0.0, %v4932
        %4934 = vdwg.mxu0
        %v4935 = vadd.f32 %v4250, %v4856
        %v4936 = vadd.f32 %v4251, %v4858
        %v4937 = vadd.f32 %v4252, %v4861
        %v4938 = vadd.f32 %v4253, %v4863
        %v4939 = vadd.f32 %v4254, %v4866
        %v4940 = vadd.f32 %v4255, %v4868
        %v4941 = vadd.f32 %v4256, %v4871
        %v4942 = vadd.f32 %v4257, %v4873
        %v4943 = vadd.f32 %v4258, %v4876
        %v4944 = vadd.f32 %v4259, %v4878
        %v4945 = vadd.f32 %v4260, %v4881
        %v4946 = vadd.f32 %v4261, %v4883
        %v4947 = vadd.f32 %v4262, %v4886
        %v4948 = vadd.f32 %v4263, %v4888
        %v4949 = vadd.f32 %v4264, %v4891
        %v4950 = vadd.f32 %v4265, %v4893
        %v4951 = vadd.f32 %v4266, %v4896
        %v4952 = vadd.f32 %v4267, %v4898
        %v4953 = vadd.f32 %v4268, %v4901
        %v4954 = vadd.f32 %v4269, %v4903
        %v4955 = vadd.f32 %v4270, %v4906
        %v4956 = vadd.f32 %v4271, %v4908
        %v4957 = vadd.f32 %v4272, %v4911
        %v4958 = vadd.f32 %v4273, %v4913
        %v4959 = vadd.f32 %v4274, %v4916
        %v4960 = vadd.f32 %v4275, %v4918
        %v4961 = vadd.f32 %v4276, %v4921
        %v4962 = vadd.f32 %v4277, %v4923
        %v4963 = vadd.f32 %v4278, %v4926
        %v4964 = vadd.f32 %v4279, %v4928
        %v4965 = vadd.f32 %v4280, %v4931
        %v4966 = vadd.f32 %v4281, %v4933
        %v4967 = vld [vmem:[%s3964] sm:$0xe]
        %v4968 = vld [vmem:[%s3964 + $0xc] sm:$0xe]
        %v4969 = vld [vmem:[%s3964 + $0x18] sm:$0xe]
        %v4970 = vld [vmem:[%s3964 + $0x24] sm:$0xe]
        %v4971 = vld [vmem:[%s3964 + $0x30] sm:$0xe]
        %v4972 = vld [vmem:[%s3964 + $0x3c] sm:$0xe]
        %v4973 = vld [vmem:[%s3964 + $0x48] sm:$0xe]
        %v4974 = vld [vmem:[%s3964 + $0x54] sm:$0xe]
        %v4975 = vld [vmem:[%s3964 + $0x60] sm:$0xe]
        %v4976 = vld [vmem:[%s3964 + $0x6c] sm:$0xe]
        %v4977 = vld [vmem:[%s3964 + $0x78] sm:$0xe]
        %v4978 = vld [vmem:[%s3964 + $0x84] sm:$0xe]
        %v4979 = vld [vmem:[%s3964 + $0x90] sm:$0xe]
        %v4980 = vld [vmem:[%s3964 + $0x9c] sm:$0xe]
        %v4981 = vld [vmem:[%s3964 + $0xa8] sm:$0xe]
        %v4982 = vld [vmem:[%s3964 + $0xb4] sm:$0xe]
        %v5031 = vrot.slane %v4967, 5
        %v5032 = vrot.slane %v5031, 4
        %v5033 = vrot.slane %v4283, 5
        %v5034 = vsel %vm2167, %v5032, %v5033
        %v5035 = vrot.slane %v5033, 4
        %v5036 = vrot.slane %v4284, 5
        %v5037 = vsel %vm2167, %v5035, %v5036
        %v5038 = vrot.slane %v4968, 5
        %v5039 = vrot.slane %v5038, 4
        %v5040 = vrot.slane %v4286, 5
        %v5041 = vsel %vm2167, %v5039, %v5040
        %v5042 = vrot.slane %v5040, 4
        %v5043 = vrot.slane %v4287, 5
        %v5044 = vsel %vm2167, %v5042, %v5043
        %v5045 = vrot.slane %v4969, 5
        %v5046 = vrot.slane %v5045, 4
        %v5047 = vrot.slane %v4289, 5
        %v5048 = vsel %vm2167, %v5046, %v5047
        %v5049 = vrot.slane %v5047, 4
        %v5050 = vrot.slane %v4290, 5
        %v5051 = vsel %vm2167, %v5049, %v5050
        %v5052 = vrot.slane %v4970, 5
        %v5053 = vrot.slane %v5052, 4
        %v5054 = vrot.slane %v4292, 5
        %v5055 = vsel %vm2167, %v5053, %v5054
        %v5056 = vrot.slane %v5054, 4
        %v5057 = vrot.slane %v4293, 5
        %v5058 = vsel %vm2167, %v5056, %v5057
        %v5059 = vrot.slane %v4971, 5
        %v5060 = vrot.slane %v5059, 4
        %v5061 = vrot.slane %v4295, 5
        %v5062 = vsel %vm2167, %v5060, %v5061
        %v5063 = vrot.slane %v5061, 4
        %v5064 = vrot.slane %v4296, 5
        %v5065 = vsel %vm2167, %v5063, %v5064
        %v5066 = vrot.slane %v4972, 5
        %v5067 = vrot.slane %v5066, 4
        %v5068 = vrot.slane %v4298, 5
        %v5069 = vsel %vm2167, %v5067, %v5068
        %v5070 = vrot.slane %v5068, 4
        %v5071 = vrot.slane %v4299, 5
        %v5072 = vsel %vm2167, %v5070, %v5071
        %v5073 = vrot.slane %v4973, 5
        %v5074 = vrot.slane %v5073, 4
        %v5075 = vrot.slane %v4301, 5
        %v5076 = vsel %vm2167, %v5074, %v5075
        %v5077 = vrot.slane %v5075, 4
        %v5078 = vrot.slane %v4302, 5
        %v5079 = vsel %vm2167, %v5077, %v5078
        %v5080 = vrot.slane %v4974, 5
        %v5081 = vrot.slane %v5080, 4
        %v5082 = vrot.slane %v4304, 5
        %v5083 = vsel %vm2167, %v5081, %v5082
        %v5084 = vrot.slane %v5082, 4
        %v5085 = vrot.slane %v4305, 5
        %v5086 = vsel %vm2167, %v5084, %v5085
        %v5087 = vrot.slane %v4975, 5
        %v5088 = vrot.slane %v5087, 4
        %v5089 = vrot.slane %v4307, 5
        %v5090 = vsel %vm2167, %v5088, %v5089
        %v5091 = vrot.slane %v5089, 4
        %v5092 = vrot.slane %v4308, 5
        %v5093 = vsel %vm2167, %v5091, %v5092
        %v5094 = vrot.slane %v4976, 5
        %v5095 = vrot.slane %v5094, 4
        %v5096 = vrot.slane %v4310, 5
        %v5097 = vsel %vm2167, %v5095, %v5096
        %v5098 = vrot.slane %v5096, 4
        %v5099 = vrot.slane %v4311, 5
        %v5100 = vsel %vm2167, %v5098, %v5099
        %v5101 = vrot.slane %v4977, 5
        %v5102 = vrot.slane %v5101, 4
        %v5103 = vrot.slane %v4313, 5
        %v5104 = vsel %vm2167, %v5102, %v5103
        %v5105 = vrot.slane %v5103, 4
        %v5106 = vrot.slane %v4314, 5
        %v5107 = vsel %vm2167, %v5105, %v5106
        %v5108 = vrot.slane %v4978, 5
        %v5109 = vrot.slane %v5108, 4
        %v5110 = vrot.slane %v4316, 5
        %v5111 = vsel %vm2167, %v5109, %v5110
        %v5112 = vrot.slane %v5110, 4
        %v5113 = vrot.slane %v4317, 5
        %v5114 = vsel %vm2167, %v5112, %v5113
        %v5115 = vrot.slane %v4979, 5
        %v5116 = vrot.slane %v5115, 4
        %v5117 = vrot.slane %v4319, 5
        %v5118 = vsel %vm2167, %v5116, %v5117
        %v5119 = vrot.slane %v5117, 4
        %v5120 = vrot.slane %v4320, 5
        %v5121 = vsel %vm2167, %v5119, %v5120
        %v5122 = vrot.slane %v4980, 5
        %v5123 = vrot.slane %v5122, 4
        %v5124 = vrot.slane %v4322, 5
        %v5125 = vsel %vm2167, %v5123, %v5124
        %v5126 = vrot.slane %v5124, 4
        %v5127 = vrot.slane %v4323, 5
        %v5128 = vsel %vm2167, %v5126, %v5127
        %v5129 = vrot.slane %v4981, 5
        %v5130 = vrot.slane %v5129, 4
        %v5131 = vrot.slane %v4325, 5
        %v5132 = vsel %vm2167, %v5130, %v5131
        %v5133 = vrot.slane %v5131, 4
        %v5134 = vrot.slane %v4326, 5
        %v5135 = vsel %vm2167, %v5133, %v5134
        %v5136 = vrot.slane %v4982, 5
        %v5137 = vrot.slane %v5136, 4
        %v5138 = vrot.slane %v4328, 5
        %v5139 = vsel %vm2167, %v5137, %v5138
        %v5140 = vrot.slane %v5138, 4
        %v5141 = vrot.slane %v4329, 5
        %v5142 = vsel %vm2167, %v5140, %v5141
        %s5143 = sadd.s32 %s1240, 8
        %s5144 = smul.u32 %s5143, 16
        %s5145 = smul.addr %s5144, 4
        %s5146 = scalar_lea.vmem [#allocation9], %s5145
        %v5147 = vld [vmem:[%s5146] sm:$0xf]
        %v5148 = vld [vmem:[%s5146 + $0x4] sm:$0xf]
        %v5149 = vld [vmem:[%s5146 + $0x8] sm:$0xf]
        %v5150 = vld [vmem:[%s5146 + $0xc] sm:$0xf]
        %v5151 = vld [vmem:[%s5146 + $0x10] sm:$0xf]
        %v5152 = vld [vmem:[%s5146 + $0x14] sm:$0xf]
        %v5153 = vld [vmem:[%s5146 + $0x18] sm:$0xf]
        %v5154 = vld [vmem:[%s5146 + $0x1c] sm:$0xf]
        %v5155 = vld [vmem:[%s5146 + $0x20] sm:$0xf]
        %v5156 = vld [vmem:[%s5146 + $0x24] sm:$0xf]
        %v5157 = vld [vmem:[%s5146 + $0x28] sm:$0xf]
        %v5158 = vld [vmem:[%s5146 + $0x2c] sm:$0xf]
        %v5159 = vld [vmem:[%s5146 + $0x30] sm:$0xf]
        %v5160 = vld [vmem:[%s5146 + $0x34] sm:$0xf]
        %v5161 = vld [vmem:[%s5146 + $0x38] sm:$0xf]
        %v5162 = vld [vmem:[%s5146 + $0x3c] sm:$0xf]
        %v5163 = vunpack.c.l.b16 %v5034
        %v5164 = vunpack.c.l.b16 %v5037
        %v5165 = vunpack.c.l.b16 %v5041
        %v5166 = vunpack.c.l.b16 %v5044
        %v5167 = vunpack.c.l.b16 %v5048
        %v5168 = vunpack.c.l.b16 %v5051
        %v5169 = vunpack.c.l.b16 %v5055
        %v5170 = vunpack.c.l.b16 %v5058
        %v5171 = vunpack.c.l.b16 %v5062
        %v5172 = vunpack.c.l.b16 %v5065
        %v5173 = vunpack.c.l.b16 %v5069
        %v5174 = vunpack.c.l.b16 %v5072
        %v5175 = vunpack.c.l.b16 %v5076
        %v5176 = vunpack.c.l.b16 %v5079
        %v5177 = vunpack.c.l.b16 %v5083
        %v5178 = vunpack.c.l.b16 %v5086
        %v5179 = vunpack.c.l.b16 %v5090
        %v5180 = vunpack.c.l.b16 %v5093
        %v5181 = vunpack.c.l.b16 %v5097
        %v5182 = vunpack.c.l.b16 %v5100
        %v5183 = vunpack.c.l.b16 %v5104
        %v5184 = vunpack.c.l.b16 %v5107
        %v5185 = vunpack.c.l.b16 %v5111
        %v5186 = vunpack.c.l.b16 %v5114
        %v5187 = vunpack.c.l.b16 %v5118
        %v5188 = vunpack.c.l.b16 %v5121
        %v5189 = vunpack.c.l.b16 %v5125
        %v5190 = vunpack.c.l.b16 %v5128
        %v5191 = vunpack.c.l.b16 %v5132
        %v5192 = vunpack.c.l.b16 %v5135
        %v5193 = vunpack.c.l.b16 %v5139
        %v5194 = vunpack.c.l.b16 %v5142
        %v5195 = vpack.c.b16 %v5164, %v5163
        %v5196 = vpack.c.b16 %v5166, %v5165
        %v5197 = vpack.c.b16 %v5168, %v5167
        %v5198 = vpack.c.b16 %v5170, %v5169
        %v5199 = vpack.c.b16 %v5172, %v5171
        %v5200 = vpack.c.b16 %v5174, %v5173
        %v5201 = vpack.c.b16 %v5176, %v5175
        %v5202 = vpack.c.b16 %v5178, %v5177
        %v5203 = vpack.c.b16 %v5180, %v5179
        %v5204 = vpack.c.b16 %v5182, %v5181
        %v5205 = vpack.c.b16 %v5184, %v5183
        %v5206 = vpack.c.b16 %v5186, %v5185
        %v5207 = vpack.c.b16 %v5188, %v5187
        %v5208 = vpack.c.b16 %v5190, %v5189
        %v5209 = vpack.c.b16 %v5192, %v5191
        %v5210 = vpack.c.b16 %v5194, %v5193
        %v5243 = vunpack.c.l.b16 %v5147
        %v5244 = vunpack.c.l.b16 %v5148
        %v5245 = vunpack.c.l.b16 %v5149
        %v5246 = vunpack.c.l.b16 %v5150
        %v5247 = vunpack.c.l.b16 %v5151
        %v5248 = vunpack.c.l.b16 %v5152
        %v5249 = vunpack.c.l.b16 %v5153
        %v5250 = vunpack.c.l.b16 %v5154
        %v5251 = vunpack.c.l.b16 %v5155
        %v5252 = vunpack.c.l.b16 %v5156
        %v5253 = vunpack.c.l.b16 %v5157
        %v5254 = vunpack.c.l.b16 %v5158
        %v5255 = vunpack.c.l.b16 %v5159
        %v5256 = vunpack.c.l.b16 %v5160
        %v5257 = vunpack.c.l.b16 %v5161
        %v5258 = vunpack.c.l.b16 %v5162
        %v5259 = vpack.c.b16 %v5244, %v5243
        %v5260 = vpack.c.b16 %v5246, %v5245
        %v5261 = vpack.c.b16 %v5248, %v5247
        %v5262 = vpack.c.b16 %v5250, %v5249
        %v5263 = vpack.c.b16 %v5252, %v5251
        %v5264 = vpack.c.b16 %v5254, %v5253
        %v5265 = vpack.c.b16 %v5256, %v5255
        %v5266 = vpack.c.b16 %v5258, %v5257
        %5275 = vmatpush.bf16.msra.mxu0 %v5266
        %5276 = vmatpush.bf16.msra.mxu0 %v5265
        %5277 = vmatpush.bf16.msra.mxu0 %v5264
        %5278 = vmatpush.bf16.msra.mxu0 %v5263
        %5279 = vmatpush.bf16.msra.mxu0 %v5262
        %5280 = vmatpush.bf16.msra.mxu0 %v5261
        %5281 = vmatpush.bf16.msra.mxu0 %v5260
        %5282 = vmatpush.bf16.msra.mxu0 %v5259
        %5283 = vmatmul.bf16.gmra.mxu0 %v5195
        %v5284 = vpop.f32.mrf.mxu0
        %v5285 = vadd.f32 0.0, %v5284
        %v5286 = vpop.f32.mrf.mxu0
        %v5287 = vadd.f32 0.0, %v5286
        %5288 = vmatmul.bf16.gmra.mxu0 %v5196
        %v5289 = vpop.f32.mrf.mxu0
        %v5290 = vadd.f32 0.0, %v5289
        %v5291 = vpop.f32.mrf.mxu0
        %v5292 = vadd.f32 0.0, %v5291
        %5293 = vmatmul.bf16.gmra.mxu0 %v5197
        %v5294 = vpop.f32.mrf.mxu0
        %v5295 = vadd.f32 0.0, %v5294
        %v5296 = vpop.f32.mrf.mxu0
        %v5297 = vadd.f32 0.0, %v5296
        %5298 = vmatmul.bf16.gmra.mxu0 %v5198
        %v5299 = vpop.f32.mrf.mxu0
        %v5300 = vadd.f32 0.0, %v5299
        %v5301 = vpop.f32.mrf.mxu0
        %v5302 = vadd.f32 0.0, %v5301
        %5303 = vmatmul.bf16.gmra.mxu0 %v5199
        %v5304 = vpop.f32.mrf.mxu0
        %v5305 = vadd.f32 0.0, %v5304
        %v5306 = vpop.f32.mrf.mxu0
        %v5307 = vadd.f32 0.0, %v5306
        %5308 = vmatmul.bf16.gmra.mxu0 %v5200
        %v5309 = vpop.f32.mrf.mxu0
        %v5310 = vadd.f32 0.0, %v5309
        %v5311 = vpop.f32.mrf.mxu0
        %v5312 = vadd.f32 0.0, %v5311
        %5313 = vmatmul.bf16.gmra.mxu0 %v5201
        %v5314 = vpop.f32.mrf.mxu0
        %v5315 = vadd.f32 0.0, %v5314
        %v5316 = vpop.f32.mrf.mxu0
        %v5317 = vadd.f32 0.0, %v5316
        %5318 = vmatmul.bf16.gmra.mxu0 %v5202
        %v5319 = vpop.f32.mrf.mxu0
        %v5320 = vadd.f32 0.0, %v5319
        %v5321 = vpop.f32.mrf.mxu0
        %v5322 = vadd.f32 0.0, %v5321
        %5323 = vmatmul.bf16.gmra.mxu0 %v5203
        %v5324 = vpop.f32.mrf.mxu0
        %v5325 = vadd.f32 0.0, %v5324
        %v5326 = vpop.f32.mrf.mxu0
        %v5327 = vadd.f32 0.0, %v5326
        %5328 = vmatmul.bf16.gmra.mxu0 %v5204
        %v5329 = vpop.f32.mrf.mxu0
        %v5330 = vadd.f32 0.0, %v5329
        %v5331 = vpop.f32.mrf.mxu0
        %v5332 = vadd.f32 0.0, %v5331
        %5333 = vmatmul.bf16.gmra.mxu0 %v5205
        %v5334 = vpop.f32.mrf.mxu0
        %v5335 = vadd.f32 0.0, %v5334
        %v5336 = vpop.f32.mrf.mxu0
        %v5337 = vadd.f32 0.0, %v5336
        %5338 = vmatmul.bf16.gmra.mxu0 %v5206
        %v5339 = vpop.f32.mrf.mxu0
        %v5340 = vadd.f32 0.0, %v5339
        %v5341 = vpop.f32.mrf.mxu0
        %v5342 = vadd.f32 0.0, %v5341
        %5343 = vmatmul.bf16.gmra.mxu0 %v5207
        %v5344 = vpop.f32.mrf.mxu0
        %v5345 = vadd.f32 0.0, %v5344
        %v5346 = vpop.f32.mrf.mxu0
        %v5347 = vadd.f32 0.0, %v5346
        %5348 = vmatmul.bf16.gmra.mxu0 %v5208
        %v5349 = vpop.f32.mrf.mxu0
        %v5350 = vadd.f32 0.0, %v5349
        %v5351 = vpop.f32.mrf.mxu0
        %v5352 = vadd.f32 0.0, %v5351
        %5353 = vmatmul.bf16.gmra.mxu0 %v5209
        %v5354 = vpop.f32.mrf.mxu0
        %v5355 = vadd.f32 0.0, %v5354
        %v5356 = vpop.f32.mrf.mxu0
        %v5357 = vadd.f32 0.0, %v5356
        %5358 = vmatmul.bf16.gmra.mxu0 %v5210
        %v5359 = vpop.f32.mrf.mxu0
        %v5360 = vadd.f32 0.0, %v5359
        %v5361 = vpop.f32.mrf.mxu0
        %v5362 = vadd.f32 0.0, %v5361
        %5363 = vdwg.mxu0
        %v5364 = vadd.f32 %v4935, %v5285
        %v5365 = vadd.f32 %v4936, %v5287
        %v5366 = vadd.f32 %v4937, %v5290
        %v5367 = vadd.f32 %v4938, %v5292
        %v5368 = vadd.f32 %v4939, %v5295
        %v5369 = vadd.f32 %v4940, %v5297
        %v5370 = vadd.f32 %v4941, %v5300
        %v5371 = vadd.f32 %v4942, %v5302
        %v5372 = vadd.f32 %v4943, %v5305
        %v5373 = vadd.f32 %v4944, %v5307
        %v5374 = vadd.f32 %v4945, %v5310
        %v5375 = vadd.f32 %v4946, %v5312
        %v5376 = vadd.f32 %v4947, %v5315
        %v5377 = vadd.f32 %v4948, %v5317
        %v5378 = vadd.f32 %v4949, %v5320
        %v5379 = vadd.f32 %v4950, %v5322
        %v5380 = vadd.f32 %v4951, %v5325
        %v5381 = vadd.f32 %v4952, %v5327
        %v5382 = vadd.f32 %v4953, %v5330
        %v5383 = vadd.f32 %v4954, %v5332
        %v5384 = vadd.f32 %v4955, %v5335
        %v5385 = vadd.f32 %v4956, %v5337
        %v5386 = vadd.f32 %v4957, %v5340
        %v5387 = vadd.f32 %v4958, %v5342
        %v5388 = vadd.f32 %v4959, %v5345
        %v5389 = vadd.f32 %v4960, %v5347
        %v5390 = vadd.f32 %v4961, %v5350
        %v5391 = vadd.f32 %v4962, %v5352
        %v5392 = vadd.f32 %v4963, %v5355
        %v5393 = vadd.f32 %v4964, %v5357
        %v5394 = vadd.f32 %v4965, %v5360
        %v5395 = vadd.f32 %v4966, %v5362
        %s5396 = scalar_lea.vmem %s4, %s29
        %v5397 = vld [vmem:[%s5396] sm:$0x1]
        %v5399 = vperm.slane %v5397, 0
        %v5401 = vadd.f32 %v5364, %v5399
        %v5402 = vadd.f32 %v5365, %v5399
        %v5403 = vadd.f32 %v5366, %v5399
        %v5404 = vadd.f32 %v5367, %v5399
        %v5405 = vadd.f32 %v5368, %v5399
        %v5406 = vadd.f32 %v5369, %v5399
        %v5407 = vadd.f32 %v5370, %v5399
        %v5408 = vadd.f32 %v5371, %v5399
        %v5409 = vadd.f32 %v5372, %v5399
        %v5410 = vadd.f32 %v5373, %v5399
        %v5411 = vadd.f32 %v5374, %v5399
        %v5412 = vadd.f32 %v5375, %v5399
        %v5413 = vadd.f32 %v5376, %v5399
        %v5414 = vadd.f32 %v5377, %v5399
        %v5415 = vadd.f32 %v5378, %v5399
        %v5416 = vadd.f32 %v5379, %v5399
        %v5417 = vadd.f32 %v5380, %v5399
        %v5418 = vadd.f32 %v5381, %v5399
        %v5419 = vadd.f32 %v5382, %v5399
        %v5420 = vadd.f32 %v5383, %v5399
        %v5421 = vadd.f32 %v5384, %v5399
        %v5422 = vadd.f32 %v5385, %v5399
        %v5423 = vadd.f32 %v5386, %v5399
        %v5424 = vadd.f32 %v5387, %v5399
        %v5425 = vadd.f32 %v5388, %v5399
        %v5426 = vadd.f32 %v5389, %v5399
        %v5427 = vadd.f32 %v5390, %v5399
        %v5428 = vadd.f32 %v5391, %v5399
        %v5429 = vadd.f32 %v5392, %v5399
        %v5430 = vadd.f32 %v5393, %v5399
        %v5431 = vadd.f32 %v5394, %v5399
        %v5432 = vadd.f32 %v5395, %v5399
        %vm5433 = vcmp.gt.f32.partialorder %v5401, 0.0
        %vm5434 = vcmp.gt.f32.partialorder %v5402, 0.0
        %vm5435 = vcmp.gt.f32.partialorder %v5403, 0.0
        %vm5436 = vcmp.gt.f32.partialorder %v5404, 0.0
        %vm5437 = vcmp.gt.f32.partialorder %v5405, 0.0
        %vm5438 = vcmp.gt.f32.partialorder %v5406, 0.0
        %vm5439 = vcmp.gt.f32.partialorder %v5407, 0.0
        %vm5440 = vcmp.gt.f32.partialorder %v5408, 0.0
        %vm5441 = vcmp.gt.f32.partialorder %v5409, 0.0
        %vm5442 = vcmp.gt.f32.partialorder %v5410, 0.0
        %vm5443 = vcmp.gt.f32.partialorder %v5411, 0.0
        %vm5444 = vcmp.gt.f32.partialorder %v5412, 0.0
        %vm5445 = vcmp.gt.f32.partialorder %v5413, 0.0
        %vm5446 = vcmp.gt.f32.partialorder %v5414, 0.0
        %vm5447 = vcmp.gt.f32.partialorder %v5415, 0.0
        %vm5448 = vcmp.gt.f32.partialorder %v5416, 0.0
        %vm5449 = vcmp.gt.f32.partialorder %v5417, 0.0
        %vm5450 = vcmp.gt.f32.partialorder %v5418, 0.0
        %vm5451 = vcmp.gt.f32.partialorder %v5419, 0.0
        %vm5452 = vcmp.gt.f32.partialorder %v5420, 0.0
        %vm5453 = vcmp.gt.f32.partialorder %v5421, 0.0
        %vm5454 = vcmp.gt.f32.partialorder %v5422, 0.0
        %vm5455 = vcmp.gt.f32.partialorder %v5423, 0.0
        %vm5456 = vcmp.gt.f32.partialorder %v5424, 0.0
        %vm5457 = vcmp.gt.f32.partialorder %v5425, 0.0
        %vm5458 = vcmp.gt.f32.partialorder %v5426, 0.0
        %vm5459 = vcmp.gt.f32.partialorder %v5427, 0.0
        %vm5460 = vcmp.gt.f32.partialorder %v5428, 0.0
        %vm5461 = vcmp.gt.f32.partialorder %v5429, 0.0
        %vm5462 = vcmp.gt.f32.partialorder %v5430, 0.0
        %vm5463 = vcmp.gt.f32.partialorder %v5431, 0.0
        %vm5464 = vcmp.gt.f32.partialorder %v5432, 0.0
        %v5465 = vmul.f32 %v5401, 0.1
        %v5466 = vmul.f32 %v5402, 0.1
        %v5467 = vmul.f32 %v5403, 0.1
        %v5468 = vmul.f32 %v5404, 0.1
        %v5469 = vmul.f32 %v5405, 0.1
        %v5470 = vmul.f32 %v5406, 0.1
        %v5471 = vmul.f32 %v5407, 0.1
        %v5472 = vmul.f32 %v5408, 0.1
        %v5473 = vmul.f32 %v5409, 0.1
        %v5474 = vmul.f32 %v5410, 0.1
        %v5475 = vmul.f32 %v5411, 0.1
        %v5476 = vmul.f32 %v5412, 0.1
        %v5477 = vmul.f32 %v5413, 0.1
        %v5478 = vmul.f32 %v5414, 0.1
        %v5479 = vmul.f32 %v5415, 0.1
        %v5480 = vmul.f32 %v5416, 0.1
        %v5481 = vmul.f32 %v5417, 0.1
        %v5482 = vmul.f32 %v5418, 0.1
        %v5483 = vmul.f32 %v5419, 0.1
        %v5484 = vmul.f32 %v5420, 0.1
        %v5485 = vmul.f32 %v5421, 0.1
        %v5486 = vmul.f32 %v5422, 0.1
        %v5487 = vmul.f32 %v5423, 0.1
        %v5488 = vmul.f32 %v5424, 0.1
        %v5489 = vmul.f32 %v5425, 0.1
        %v5490 = vmul.f32 %v5426, 0.1
        %v5491 = vmul.f32 %v5427, 0.1
        %v5492 = vmul.f32 %v5428, 0.1
        %v5493 = vmul.f32 %v5429, 0.1
        %v5494 = vmul.f32 %v5430, 0.1
        %v5495 = vmul.f32 %v5431, 0.1
        %v5496 = vmul.f32 %v5432, 0.1
        %v5497 = vsel %vm5433, %v5401, %v5465
        %v5498 = vsel %vm5434, %v5402, %v5466
        %v5499 = vsel %vm5435, %v5403, %v5467
        %v5500 = vsel %vm5436, %v5404, %v5468
        %v5501 = vsel %vm5437, %v5405, %v5469
        %v5502 = vsel %vm5438, %v5406, %v5470
        %v5503 = vsel %vm5439, %v5407, %v5471
        %v5504 = vsel %vm5440, %v5408, %v5472
        %v5505 = vsel %vm5441, %v5409, %v5473
        %v5506 = vsel %vm5442, %v5410, %v5474
        %v5507 = vsel %vm5443, %v5411, %v5475
        %v5508 = vsel %vm5444, %v5412, %v5476
        %v5509 = vsel %vm5445, %v5413, %v5477
        %v5510 = vsel %vm5446, %v5414, %v5478
        %v5511 = vsel %vm5447, %v5415, %v5479
        %v5512 = vsel %vm5448, %v5416, %v5480
        %v5513 = vsel %vm5449, %v5417, %v5481
        %v5514 = vsel %vm5450, %v5418, %v5482
        %v5515 = vsel %vm5451, %v5419, %v5483
        %v5516 = vsel %vm5452, %v5420, %v5484
        %v5517 = vsel %vm5453, %v5421, %v5485
        %v5518 = vsel %vm5454, %v5422, %v5486
        %v5519 = vsel %vm5455, %v5423, %v5487
        %v5520 = vsel %vm5456, %v5424, %v5488
        %v5521 = vsel %vm5457, %v5425, %v5489
        %v5522 = vsel %vm5458, %v5426, %v5490
        %v5523 = vsel %vm5459, %v5427, %v5491
        %v5524 = vsel %vm5460, %v5428, %v5492
        %v5525 = vsel %vm5461, %v5429, %v5493
        %v5526 = vsel %vm5462, %v5430, %v5494
        %v5527 = vsel %vm5463, %v5431, %v5495
        %v5528 = vsel %vm5464, %v5432, %v5496
        %v5529 = vld [vmem:[%s306] sm:$0xff]
        %v5530 = vld [vmem:[%s306 + $0x8] sm:$0xff]
        %v5531 = vld [vmem:[%s306 + $0x10] sm:$0xff]
        %v5532 = vld [vmem:[%s306 + $0x18] sm:$0xff]
        %v5533 = vld [vmem:[%s306 + $0x20] sm:$0xff]
        %v5534 = vld [vmem:[%s306 + $0x28] sm:$0xff]
        %v5535 = vld [vmem:[%s306 + $0x30] sm:$0xff]
        %v5536 = vld [vmem:[%s306 + $0x38] sm:$0xff]
        %v5537 = vld [vmem:[%s306 + $0x40] sm:$0xff]
        %v5538 = vld [vmem:[%s306 + $0x48] sm:$0xff]
        %v5539 = vld [vmem:[%s306 + $0x50] sm:$0xff]
        %v5540 = vld [vmem:[%s306 + $0x58] sm:$0xff]
        %v5541 = vld [vmem:[%s306 + $0x60] sm:$0xff]
        %v5542 = vld [vmem:[%s306 + $0x68] sm:$0xff]
        %v5543 = vld [vmem:[%s306 + $0x70] sm:$0xff]
        %v5544 = vld [vmem:[%s306 + $0x78] sm:$0xff]
        %v5545 = vld [vmem:[%s306 + $0x80] sm:$0xff]
        %v5546 = vld [vmem:[%s306 + $0x88] sm:$0xff]
        %v5547 = vld [vmem:[%s306 + $0x90] sm:$0xff]
        %v5548 = vld [vmem:[%s306 + $0x98] sm:$0xff]
        %v5549 = vld [vmem:[%s306 + $0xa0] sm:$0xff]
        %v5550 = vld [vmem:[%s306 + $0xa8] sm:$0xff]
        %v5551 = vld [vmem:[%s306 + $0xb0] sm:$0xff]
        %v5552 = vld [vmem:[%s306 + $0xb8] sm:$0xff]
        %v5553 = vld [vmem:[%s306 + $0xc0] sm:$0xff]
        %v5554 = vld [vmem:[%s306 + $0xc8] sm:$0xff]
        %v5555 = vld [vmem:[%s306 + $0xd0] sm:$0xff]
        %v5556 = vld [vmem:[%s306 + $0xd8] sm:$0xff]
        %v5557 = vld [vmem:[%s306 + $0xe0] sm:$0xff]
        %v5558 = vld [vmem:[%s306 + $0xe8] sm:$0xff]
        %v5559 = vld [vmem:[%s306 + $0xf0] sm:$0xff]
        %v5560 = vld [vmem:[%s306 + $0xf8] sm:$0xff]
        %v5561 = vadd.f32 %v5529, %v5497
        %v5562 = vadd.f32 %v5530, %v5498
        %v5563 = vadd.f32 %v5531, %v5499
        %v5564 = vadd.f32 %v5532, %v5500
        %v5565 = vadd.f32 %v5533, %v5501
        %v5566 = vadd.f32 %v5534, %v5502
        %v5567 = vadd.f32 %v5535, %v5503
        %v5568 = vadd.f32 %v5536, %v5504
        %v5569 = vadd.f32 %v5537, %v5505
        %v5570 = vadd.f32 %v5538, %v5506
        %v5571 = vadd.f32 %v5539, %v5507
        %v5572 = vadd.f32 %v5540, %v5508
        %v5573 = vadd.f32 %v5541, %v5509
        %v5574 = vadd.f32 %v5542, %v5510
        %v5575 = vadd.f32 %v5543, %v5511
        %v5576 = vadd.f32 %v5544, %v5512
        %v5577 = vadd.f32 %v5545, %v5513
        %v5578 = vadd.f32 %v5546, %v5514
        %v5579 = vadd.f32 %v5547, %v5515
        %v5580 = vadd.f32 %v5548, %v5516
        %v5581 = vadd.f32 %v5549, %v5517
        %v5582 = vadd.f32 %v5550, %v5518
        %v5583 = vadd.f32 %v5551, %v5519
        %v5584 = vadd.f32 %v5552, %v5520
        %v5585 = vadd.f32 %v5553, %v5521
        %v5586 = vadd.f32 %v5554, %v5522
        %v5587 = vadd.f32 %v5555, %v5523
        %v5588 = vadd.f32 %v5556, %v5524
        %v5589 = vadd.f32 %v5557, %v5525
        %v5590 = vadd.f32 %v5558, %v5526
        %v5591 = vadd.f32 %v5559, %v5527
        %v5592 = vadd.f32 %v5560, %v5528
        %5593 = vst [vmem:[%s306] sm:$0xff] %v5561
        %5594 = vst [vmem:[%s306 + $0x8] sm:$0xff] %v5562
        %5595 = vst [vmem:[%s306 + $0x10] sm:$0xff] %v5563
        %5596 = vst [vmem:[%s306 + $0x18] sm:$0xff] %v5564
        %5597 = vst [vmem:[%s306 + $0x20] sm:$0xff] %v5565
        %5598 = vst [vmem:[%s306 + $0x28] sm:$0xff] %v5566
        %5599 = vst [vmem:[%s306 + $0x30] sm:$0xff] %v5567
        %5600 = vst [vmem:[%s306 + $0x38] sm:$0xff] %v5568
        %5601 = vst [vmem:[%s306 + $0x40] sm:$0xff] %v5569
        %5602 = vst [vmem:[%s306 + $0x48] sm:$0xff] %v5570
        %5603 = vst [vmem:[%s306 + $0x50] sm:$0xff] %v5571
        %5604 = vst [vmem:[%s306 + $0x58] sm:$0xff] %v5572
        %5605 = vst [vmem:[%s306 + $0x60] sm:$0xff] %v5573
        %5606 = vst [vmem:[%s306 + $0x68] sm:$0xff] %v5574
        %5607 = vst [vmem:[%s306 + $0x70] sm:$0xff] %v5575
        %5608 = vst [vmem:[%s306 + $0x78] sm:$0xff] %v5576
        %5609 = vst [vmem:[%s306 + $0x80] sm:$0xff] %v5577
        %5610 = vst [vmem:[%s306 + $0x88] sm:$0xff] %v5578
        %5611 = vst [vmem:[%s306 + $0x90] sm:$0xff] %v5579
        %5612 = vst [vmem:[%s306 + $0x98] sm:$0xff] %v5580
        %5613 = vst [vmem:[%s306 + $0xa0] sm:$0xff] %v5581
        %5614 = vst [vmem:[%s306 + $0xa8] sm:$0xff] %v5582
        %5615 = vst [vmem:[%s306 + $0xb0] sm:$0xff] %v5583
        %5616 = vst [vmem:[%s306 + $0xb8] sm:$0xff] %v5584
        %5617 = vst [vmem:[%s306 + $0xc0] sm:$0xff] %v5585
        %5618 = vst [vmem:[%s306 + $0xc8] sm:$0xff] %v5586
        %5619 = vst [vmem:[%s306 + $0xd0] sm:$0xff] %v5587
        %5620 = vst [vmem:[%s306 + $0xd8] sm:$0xff] %v5588
        %5621 = vst [vmem:[%s306 + $0xe0] sm:$0xff] %v5589
        %5622 = vst [vmem:[%s306 + $0xe8] sm:$0xff] %v5590
        %5623 = vst [vmem:[%s306 + $0xf0] sm:$0xff] %v5591
        %5624 = vst [vmem:[%s306 + $0xf8] sm:$0xff] %v5592
        %s5625 = sand.u32 %s154, 1
        %s5626 = scalar_lea.sflag [#allocation5], %s5625
        %s5627 = sand.u32 %s154, 1
        %s5628 = smul.addr %s5627, 256
        %s5629 = scalar_lea.vmem [#allocation11], %s5628
        // Predicated region
        $region61: #{tpu_custom_call.1} parent=39 // pred_check
          %p5630 = pneg %p164
        $region62: #{tpu_custom_call.1} parent=39 // pred_check_branch
          %5632 = sbr.rel (%p5630) target = $region64
        $region63: #{tpu_custom_call.1} parent=39 // pred_region
          %5634 = vsyncadd %s5626, 0
          %s5635 = smul.addr %s28, 32
          %s5636 = smul.addr %s5635, 8
          %s5637 = scalar_lea.hbm %s5, %s5636
          %s5638 = sshll.u32 %s5629, 4
          %s5639 = int_to_ptr.vmem [resolvable:$true] %s5638
          %s5640 = sshll.u32 %s5637, 4
          %s5641 = int_to_ptr.hbm [resolvable:$true] %s5640
          %5646 = dma.vmem_to_hbm [thread:$0]  %s5639, 4096, %s5641, %s5626, 128, 128, 8
        $region64: #{tpu_custom_call.1} parent=39 // pred_fallthru
          _
      $region40: #{tpu_custom_call.1} parent=5 // pred_fallthru
        _
      %p5647 = scmp.le.s32.totalorder 2, %s19
      // Predicated region
      $region65: #{tpu_custom_call.1} parent=5 // pred_check
        %p5648 = pneg %p5647
      $region66: #{tpu_custom_call.1} parent=5 // pred_check_branch
        %5650 = sbr.rel (%p5648) target = $region68
      $region67: #{tpu_custom_call.1} parent=5 // pred_region
        %s5651 = ssub.s32 %s19, 2
        // Predicated region
        $region69: #{tpu_custom_call.1} parent=67 // pred_check
          %p5652 = pneg %p170
        $region70: #{tpu_custom_call.1} parent=67 // pred_check_branch
          %5654 = sbr.rel (%p5652) target = $region72
        $region71: #{tpu_custom_call.1} parent=67 // pred_region
          %s5655 = sand.u32 %s155, 1
          %s5656 = scalar_lea.sflag [#allocation5], %s5655
          %s5657 = sand.u32 %s155, 1
          %s5658 = smul.addr %s5657, 256
          %s5659 = scalar_lea.vmem [#allocation11], %s5658
          %5661 = dma.done %s5656, 4096
        $region72: #{tpu_custom_call.1} parent=67 // pred_fallthru
          _
      $region68: #{tpu_custom_call.1} parent=5 // pred_fallthru
        _
    $region6: #{tpu_custom_call.1} parent=1 // loop_footer
      %s23 = sadd.s32 1, %s19
    $region7: #{tpu_custom_call.1} parent=1 // loop_footer_branch
      %18 = sbr.rel target = $region3
    $region8: #{tpu_custom_call.1} parent=1 // loop_exit
      _
    %5662 = vsyncpa [#allocation4], 1
    %s5663 = scalar_lea.sflag [#allocation4], 1
    %5664 = vsyncpa %s5663, 1
    %5665 = vsyncpa [#allocation7], 1
    %5666 = vsyncpa [#allocation10], 1
    %5667 = vsyncpa [#allocation5], 1
    %s5668 = scalar_lea.sflag [#allocation5], 1
    %5669 = vsyncpa %s5668, 1

</llo_original>
